<compile_context>
chip_gen: v7x
topology: tpu7x:2x2x1
jax: 0.10.0
libtpu: 0.0.40
codegen_flags: <defaults>
</compile_context>

<pallas_src>
import functools

import jax
import jax.numpy as jnp
from jax.experimental import pallas as pl
from jax.experimental.pallas import tpu as pltpu


# ----------------------------------------------------------------------------- shared math helper
def _layer_norm(x, w, b, eps=1e-5):
    # PyTorch nn.LayerNorm: biased variance, eps inside sqrt.
    mean = jnp.mean(x, axis=-1, keepdims=True)
    var = jnp.mean((x - mean) ** 2, axis=-1, keepdims=True)
    return (x - mean) * jax.lax.rsqrt(var + eps) * w + b


# ----------------------------------------------------------------------------- fused encoder + head kernel
def fused_encoder_kernel(x_ref, w_ref, vec_ref, hw_ref, hb_ref, out_ref, act_ref,
                         *, num_heads, num_layers):
    l = pl.program_id(1)                   # layer index (inner, "arbitrary" axis)
    S, C = act_ref.shape
    H = num_heads
    hd = C // H

    # layer 0: pull this batch element's embedded tokens into the resident VMEM activation.
    @pl.when(l == 0)
    def _():
        act_ref[...] = x_ref[0]

    x = act_ref[...]                       # (S, C) f32, stays in VMEM across all layers
    w = w_ref[l]                           # (C, 6C) bf16 packed: [Win(3C) | Wout(C) | W1(C) | W2(C)]
    vec = vec_ref[l]                       # (10, C) f32 packed biases / LayerNorm params
    bq, bk, bv, bo = vec[0:1], vec[1:2], vec[2:3], vec[3:4]
    ln1_w, ln1_b = vec[4:5], vec[5:6]
    b1, b2 = vec[6:7], vec[7:8]
    ln2_w, ln2_b = vec[8:9], vec[9:10]

    xb = x.astype(jnp.bfloat16)

    # --- fused QKV projection: one MXU matmul (M=S, K=C, N=3C) ---
    qkv = jnp.dot(xb, w[:, 0:3 * C], preferred_element_type=jnp.float32)      # (S, 3C) f32
    scale = 1.0 / float(hd) ** 0.5
    q = ((qkv[:, 0 * C:1 * C] + bq) * scale).astype(jnp.bfloat16)
    k = (qkv[:, 1 * C:2 * C] + bk).astype(jnp.bfloat16)
    v = (qkv[:, 2 * C:3 * C] + bv).astype(jnp.bfloat16)

    # --- head-batched self-attention (module passes mask=None -> no mask) ---
    q_h = jnp.stack([q[:, h * hd:(h + 1) * hd] for h in range(H)], 0)         # (H, S, hd) bf16
    k_h = jnp.stack([k[:, h * hd:(h + 1) * hd] for h in range(H)], 0)
    v_h = jnp.stack([v[:, h * hd:(h + 1) * hd] for h in range(H)], 0)

    s = jnp.einsum('hqd,hkd->hqk', q_h, k_h,
                   preferred_element_type=jnp.float32)                        # (H, S, S) f32
    m = jnp.max(s, axis=-1, keepdims=True)
    p = jnp.exp(s - m)
    p = p * pl.reciprocal(jnp.sum(p, axis=-1, keepdims=True), approx=True)    # EUP, not VALU divide
    o_h = jnp.einsum('hqk,hkd->hqd', p.astype(jnp.bfloat16), v_h,
                     preferred_element_type=jnp.float32)                      # (H, S, hd)

    # per-head output projection, summed over heads (avoids a lane-axis concat of heads)
    wo_h = w[:, 3 * C:4 * C].reshape(H, hd, C)                                # (H, hd, C) bf16
    attn = jnp.sum(jnp.einsum('hqd,hdc->hqc', o_h.astype(jnp.bfloat16), wo_h,
                              preferred_element_type=jnp.float32), axis=0) + bo

    # --- residual + LayerNorm 1 (post-norm, PyTorch default norm_first=False) ---
    y = _layer_norm(x + attn, ln1_w, ln1_b)

    # --- feed-forward: relu(y @ W1 + b1) @ W2 + b2  (dim_feedforward == channels) ---
    h1 = jnp.maximum(
        jnp.dot(y.astype(jnp.bfloat16), w[:, 4 * C:5 * C],
                preferred_element_type=jnp.float32) + b1, 0.0)
    ff = jnp.dot(h1.astype(jnp.bfloat16), w[:, 5 * C:6 * C],
                 preferred_element_type=jnp.float32) + b2

    # --- residual + LayerNorm 2 ---
    new_x = _layer_norm(y + ff, ln2_w, ln2_b)

    # only persist the activation if another layer will read it
    @pl.when(l < num_layers - 1)
    def _():
        act_ref[...] = new_x

    # --- fused pick/place/rotate head on token 0, written only at the last layer ---
    @pl.when(l == num_layers - 1)
    def _():
        tok0 = new_x[0:1, :].astype(jnp.bfloat16)                             # (1, C)
        out_ref[0] = jnp.dot(tok0, hw_ref[...],
                             preferred_element_type=jnp.float32) + hb_ref[...]  # (1, 192)


def make_fused_call(B, S, C, L, num_heads, n_out):
    kernel = functools.partial(fused_encoder_kernel, num_heads=num_heads, num_layers=L)
    return pl.pallas_call(
        kernel,
        out_shape=jax.ShapeDtypeStruct((B, 1, n_out), jnp.float32),
        grid=(B, L),
        in_specs=[
            pl.BlockSpec((1, S, C), lambda b, l: (b, 0, 0)),        # embedded tokens (per batch)
            pl.BlockSpec((L, C, 6 * C), lambda b, l: (0, 0, 0)),    # ALL layer matrices, VMEM-resident
            pl.BlockSpec((L, 10, C), lambda b, l: (0, 0, 0)),       # ALL layer bias/LN vectors, resident
            pl.BlockSpec((C, n_out), lambda b, l: (0, 0)),          # head weight (bf16), resident
            pl.BlockSpec((1, n_out), lambda b, l: (0, 0)),          # head bias, resident
        ],
        out_specs=pl.BlockSpec((1, 1, n_out), lambda b, l: (b, 0, 0)),
        scratch_shapes=[pltpu.VMEM((S, C), jnp.float32)],           # resident activation
        compiler_params=pltpu.CompilerParams(
            dimension_semantics=("parallel", "arbitrary"),          # layer axis must stay ordered
            vmem_limit_bytes=32 * 1024 * 1024,
        ),
    )


# ----------------------------------------------------------------------------- glue (plain JAX)
def positional_encoding(channels, max_len):
    position = jnp.arange(max_len, dtype=jnp.float32)[:, None]
    div_term = jnp.exp(jnp.arange(0, channels, 2, dtype=jnp.float32)
                       * (-jnp.log(10000.0) / channels))
    pe = jnp.zeros((max_len, channels), dtype=jnp.float32)
    pe = pe.at[:, 0::2].set(jnp.sin(position * div_term))
    pe = pe.at[:, 1::2].set(jnp.cos(position * div_term))
    return pe


def build_tokens(params, x, q):
    """d / q / x token assembly + positional encoding (batch-first), matching the PyTorch forward."""
    b, h, w = x.shape
    hw = h * w
    C = params['qx_embedding'].shape[1]
    xe = params['qx_embedding'][x.reshape(b, hw)] + params['id_embedding'][0][None, None]
    qe = params['qx_embedding'][q.reshape(b, hw)] + params['id_embedding'][1][None, None]
    d = jnp.broadcast_to(params['d_embedding'][0][None, None], (b, 1, C))
    dqx = jnp.concatenate([d, qe, xe], axis=1)                      # (b, 1 + 2*hw, C)
    return dqx + params['pos_enc'][:1 + 2 * hw][None]


def init_params(key, channels=128, num_layers=6, max_len=5000):
    C = channels
    F = channels                        # dim_feedforward == channels in the module
    n_out = 64 + 64 + 64
    keys = jax.random.split(key, 5 + num_layers)
    nrm = lambda k, shp, s=0.02: s * jax.random.normal(k, shp, dtype=jnp.float32)
    params = {
        'qx_embedding': nrm(keys[0], (3, C)),
        'id_embedding': nrm(keys[1], (2, C)),
        'd_embedding': nrm(keys[2], (2, C)),
        'head_w': nrm(keys[3], (C, n_out)).astype(jnp.bfloat16),    # pick_place_rotate_linear.weight.T
        'head_b': nrm(keys[4], (1, n_out)),
        'pos_enc': positional_encoding(C, max_len),
    }
    w_all, vecs = [], []
    for i in range(num_layers):
        lk = jax.random.split(keys[5 + i], 10)
        # all matrices stored (in, out): [in_proj^T | out_proj^T | linear1^T | linear2^T] -> (C, 6C)
        w_all.append(jnp.concatenate([nrm(lk[0], (C, 3 * C)),
                                      nrm(lk[1], (C, C)),
                                      nrm(lk[2], (C, F)),
                                      nrm(lk[3], (F, C))], axis=1))
        vecs.append(jnp.stack([
            nrm(lk[4], (C,)), nrm(lk[5], (C,)), nrm(lk[6], (C,)),            # q / k / v bias
            nrm(lk[7], (C,)),                                                 # out_proj bias
            jnp.ones((C,), jnp.float32), jnp.zeros((C,), jnp.float32),        # ln1 weight / bias
            nrm(lk[8], (C,)), nrm(lk[9], (C,)),                               # ffn b1 / b2
            jnp.ones((C,), jnp.float32), jnp.zeros((C,), jnp.float32),        # ln2 weight / bias
        ], axis=0))
    params['w_all'] = jnp.stack(w_all, 0).astype(jnp.bfloat16)       # (L, C, 6C)
    params['vecs'] = jnp.stack(vecs, 0)                              # (L, 10, C) f32
    return params


def pick_place_rotate_forward(params, x, q, num_heads=4):
    b = x.shape[0]
    hw = x.shape[1] * x.shape[2]
    C = params['qx_embedding'].shape[1]
    L = params['w_all'].shape[0]
    n_out = params['head_w'].shape[1]
    S = 1 + 2 * hw
    assert C % num_heads == 0

    tokens = build_tokens(params, x, q)                              # (b, S, C) f32
    fused = make_fused_call(b, S, C, L, num_heads, n_out)
    head = fused(tokens, params['w_all'], params['vecs'],
                 params['head_w'], params['head_b'])                 # (b, 1, n_out)
    return head[:, 0, :]                                             # (b, 192) — PyTorch convention


# ----------------------------------------------------------------------------- pure-JAX reference
def reference_forward(params, x, q, num_heads=4):
    tokens = build_tokens(params, x, q)
    B, S, C = tokens.shape
    H = num_heads
    hd = C // H
    w_all = params['w_all'].astype(jnp.float32)
    act = tokens
    for li in range(w_all.shape[0]):
        wl, vl = w_all[li], params['vecs'][li]
        qkv = act @ wl[:, :3 * C]
        qq = (qkv[..., 0 * C:1 * C] + vl[0]) / float(hd) ** 0.5
        kk = qkv[..., 1 * C:2 * C] + vl[1]
        vv = qkv[..., 2 * C:3 * C] + vl[2]
        qh = qq.reshape(B, S, H, hd).transpose(0, 2, 1, 3)
        kh = kk.reshape(B, S, H, hd).transpose(0, 2, 1, 3)
        vh = vv.reshape(B, S, H, hd).transpose(0, 2, 1, 3)
        p = jax.nn.softmax(jnp.einsum('bhqd,bhkd->bhqk', qh, kh), axis=-1)
        o = jnp.einsum('bhqk,bhkd->bhqd', p, vh).transpose(0, 2, 1, 3).reshape(B, S, C)
        attn = o @ wl[:, 3 * C:4 * C] + vl[3]
        y = _layer_norm(act + attn, vl[4], vl[5])
        h1 = jnp.maximum(y @ wl[:, 4 * C:5 * C] + vl[6], 0.0)
        act = _layer_norm(y + h1 @ wl[:, 5 * C:6 * C] + vl[7], vl[8], vl[9])
    return act[:, 0, :] @ params['head_w'].astype(jnp.float32) + params['head_b'][0]


if __name__ == "__main__":
    channels, num_heads, num_layers = 128, 4, 6      # small, lane-dense stand-in for the default 256
    b, h, w = 2, 8, 8                                # seq = 1 + 2*h*w = 129 tokens

    key = jax.random.PRNGKey(0)
    pkey, xkey, qkey = jax.random.split(key, 3)
    params = init_params(pkey, channels=channels, num_layers=num_layers)

    x = jax.random.randint(xkey, (b, h, w), 0, 3, dtype=jnp.int32)
    q = jax.random.randint(qkey, (b, h, w), 0, 3, dtype=jnp.int32)

    out = jax.block_until_ready(pick_place_rotate_forward(params, x, q, num_heads=num_heads))
    assert out.shape == (b, 64 + 64 + 64), out.shape
    assert bool(jnp.all(jnp.isfinite(out)))

    # loose-tolerance check vs. a pure-JAX f32 reference (kernel uses bf16 MXU operands and an
    # approximate softmax reciprocal, so exact equality is not expected).
    ref = reference_forward(params, x, q, num_heads=num_heads)
    assert float(jnp.max(jnp.abs(out - ref))) < 5e-2

    print("KERNEL_OK")
</pallas_src>

<mosaic_0001>
module attributes {stable_mosaic.version = 11 : i64} {
  func.func @fused_encoder_kernel(%arg0: i32, %arg1: i32, %arg2: memref<1x129x128xf32, #tpu.memory_space<vmem>>, %arg3: memref<6x128x768xbf16, #tpu.memory_space<vmem>>, %arg4: memref<6x10x128xf32, #tpu.memory_space<vmem>>, %arg5: memref<128x192xbf16, #tpu.memory_space<vmem>>, %arg6: memref<1x192xf32, #tpu.memory_space<vmem>>, %arg7: memref<1x1x192xf32, #tpu.memory_space<vmem>>, %arg8: memref<129x128xf32, #tpu.memory_space<vmem>>) attributes {dimension_semantics = [#tpu.dimension_semantics<parallel>, #tpu.dimension_semantics<arbitrary>], iteration_bounds = array<i64: 2, 6>, scalar_prefetch = 0 : i64, scratch_operands = 1 : i64, tpu.core_type = #tpu.core_type<tc>, window_params = [{transform_indices = @transform_0, window_bounds = array<i64: 1, 129, 128>}, {pipeline_mode = #tpu.pipeline_mode<synchronous>, transform_indices = @transform_1, window_bounds = array<i64: 6, 128, 768>}, {pipeline_mode = #tpu.pipeline_mode<synchronous>, transform_indices = @transform_2, window_bounds = array<i64: 6, 10, 128>}, {pipeline_mode = #tpu.pipeline_mode<synchronous>, transform_indices = @transform_3, window_bounds = array<i64: 128, 192>}, {pipeline_mode = #tpu.pipeline_mode<synchronous>, transform_indices = @transform_4, window_bounds = array<i64: 1, 192>}, {transform_indices = @transform_5, window_bounds = array<i64: 1, 1, 192>}]} {
    %c0_i32 = arith.constant 0 : i32
    %0 = arith.cmpi eq, %arg1, %c0_i32 : i32
    %1 = arith.extui %0 : i1 to i32
    %c0_i32_0 = arith.constant 0 : i32
    %2 = arith.cmpi ne, %1, %c0_i32_0 : i32
    scf.if %2 {
      %c0_29 = arith.constant 0 : index
      %c0_30 = arith.constant 0 : index
      %c0_31 = arith.constant 0 : index
      %148 = vector.load %arg2[%c0_29, %c0_30, %c0_31] : memref<1x129x128xf32, #tpu.memory_space<vmem>>, vector<1x129x128xf32>
      %149 = vector.shape_cast %148 : vector<1x129x128xf32> to vector<129x128xf32>
      %c0_32 = arith.constant 0 : index
      %c0_33 = arith.constant 0 : index
      %150 = vector.load %arg8[%c0_32, %c0_33] : memref<129x128xf32, #tpu.memory_space<vmem>>, vector<129x128xf32>
      tpu.vector_store %arg8[%c0_32, %c0_33], %149 {strides = array<i32>} : memref<129x128xf32, #tpu.memory_space<vmem>>, vector<129x128xf32>,
    } else {
    }
    %c0 = arith.constant 0 : index
    %c0_1 = arith.constant 0 : index
    %3 = vector.load %arg8[%c0, %c0_1] : memref<129x128xf32, #tpu.memory_space<vmem>>, vector<129x128xf32>
    %4 = arith.index_cast %arg1 : i32 to index
    %c0_2 = arith.constant 0 : index
    %c0_3 = arith.constant 0 : index
    %5 = vector.load %arg3[%4, %c0_2, %c0_3] : memref<6x128x768xbf16, #tpu.memory_space<vmem>>, vector<1x128x768xbf16>
    %6 = vector.shape_cast %5 : vector<1x128x768xbf16> to vector<128x768xbf16>
    %7 = arith.index_cast %arg1 : i32 to index
    %c0_4 = arith.constant 0 : index
    %c0_5 = arith.constant 0 : index
    %8 = vector.load %arg4[%7, %c0_4, %c0_5] : memref<6x10x128xf32, #tpu.memory_space<vmem>>, vector<1x10x128xf32>
    %9 = vector.shape_cast %8 : vector<1x10x128xf32> to vector<10x128xf32>
    %10 = vector.extract_strided_slice %9 {offsets = [0, 0], sizes = [1, 128], strides = [1, 1]} : vector<10x128xf32> to vector<1x128xf32>
    %11 = vector.extract_strided_slice %9 {offsets = [1, 0], sizes = [1, 128], strides = [1, 1]} : vector<10x128xf32> to vector<1x128xf32>
    %12 = vector.extract_strided_slice %9 {offsets = [2, 0], sizes = [1, 128], strides = [1, 1]} : vector<10x128xf32> to vector<1x128xf32>
    %13 = vector.extract_strided_slice %9 {offsets = [3, 0], sizes = [1, 128], strides = [1, 1]} : vector<10x128xf32> to vector<1x128xf32>
    %14 = vector.extract_strided_slice %9 {offsets = [4, 0], sizes = [1, 128], strides = [1, 1]} : vector<10x128xf32> to vector<1x128xf32>
    %15 = vector.extract_strided_slice %9 {offsets = [5, 0], sizes = [1, 128], strides = [1, 1]} : vector<10x128xf32> to vector<1x128xf32>
    %16 = vector.extract_strided_slice %9 {offsets = [6, 0], sizes = [1, 128], strides = [1, 1]} : vector<10x128xf32> to vector<1x128xf32>
    %17 = vector.extract_strided_slice %9 {offsets = [7, 0], sizes = [1, 128], strides = [1, 1]} : vector<10x128xf32> to vector<1x128xf32>
    %18 = vector.extract_strided_slice %9 {offsets = [8, 0], sizes = [1, 128], strides = [1, 1]} : vector<10x128xf32> to vector<1x128xf32>
    %19 = vector.extract_strided_slice %9 {offsets = [9, 0], sizes = [1, 128], strides = [1, 1]} : vector<10x128xf32> to vector<1x128xf32>
    %20 = arith.truncf %3 : vector<129x128xf32> to vector<129x128xbf16>
    %21 = vector.extract_strided_slice %6 {offsets = [0, 0], sizes = [128, 384], strides = [1, 1]} : vector<128x768xbf16> to vector<128x384xbf16>
    %cst = arith.constant dense<0.000000e+00> : vector<129x384xf32>
    %22 = tpu.matmul %20, %21, %cst {dimension_numbers = #tpu.dot_dimension_numbers<[1], [0], [0], [1], [0, 0, 1, 1], [], []>} : vector<129x128xbf16>, vector<128x384xbf16>, vector<129x384xf32> -> vector<129x384xf32>
    %23 = vector.extract_strided_slice %22 {offsets = [0, 0], sizes = [129, 128], strides = [1, 1]} : vector<129x384xf32> to vector<129x128xf32>
    %24 = vector.broadcast %10 : vector<1x128xf32> to vector<129x128xf32>
    %25 = arith.addf %23, %24 : vector<129x128xf32>
    %cst_6 = arith.constant 0.176776692 : f32
    %26 = vector.broadcast %cst_6 : f32 to vector<129x128xf32>
    %27 = arith.mulf %25, %26 : vector<129x128xf32>
    %28 = arith.truncf %27 : vector<129x128xf32> to vector<129x128xbf16>
    %29 = vector.extract_strided_slice %22 {offsets = [0, 128], sizes = [129, 128], strides = [1, 1]} : vector<129x384xf32> to vector<129x128xf32>
    %30 = vector.broadcast %11 : vector<1x128xf32> to vector<129x128xf32>
    %31 = arith.addf %29, %30 : vector<129x128xf32>
    %32 = arith.truncf %31 : vector<129x128xf32> to vector<129x128xbf16>
    %33 = vector.extract_strided_slice %22 {offsets = [0, 256], sizes = [129, 128], strides = [1, 1]} : vector<129x384xf32> to vector<129x128xf32>
    %34 = vector.broadcast %12 : vector<1x128xf32> to vector<129x128xf32>
    %35 = arith.addf %33, %34 : vector<129x128xf32>
    %36 = arith.truncf %35 : vector<129x128xf32> to vector<129x128xbf16>
    %37 = vector.extract_strided_slice %28 {offsets = [0, 0], sizes = [129, 32], strides = [1, 1]} : vector<129x128xbf16> to vector<129x32xbf16>
    %38 = vector.extract_strided_slice %28 {offsets = [0, 32], sizes = [129, 32], strides = [1, 1]} : vector<129x128xbf16> to vector<129x32xbf16>
    %39 = vector.extract_strided_slice %28 {offsets = [0, 64], sizes = [129, 32], strides = [1, 1]} : vector<129x128xbf16> to vector<129x32xbf16>
    %40 = vector.extract_strided_slice %28 {offsets = [0, 96], sizes = [129, 32], strides = [1, 1]} : vector<129x128xbf16> to vector<129x32xbf16>
    %41 = vector.shape_cast %37 : vector<129x32xbf16> to vector<1x129x32xbf16>
    %42 = vector.shape_cast %38 : vector<129x32xbf16> to vector<1x129x32xbf16>
    %43 = vector.shape_cast %39 : vector<129x32xbf16> to vector<1x129x32xbf16>
    %44 = vector.shape_cast %40 : vector<129x32xbf16> to vector<1x129x32xbf16>
    %45 = tpu.concatenate %41, %42, %43, %44 in 0 : vector<1x129x32xbf16>, vector<1x129x32xbf16>, vector<1x129x32xbf16>, vector<1x129x32xbf16> -> vector<4x129x32xbf16>
    %46 = vector.extract_strided_slice %32 {offsets = [0, 0], sizes = [129, 32], strides = [1, 1]} : vector<129x128xbf16> to vector<129x32xbf16>
    %47 = vector.extract_strided_slice %32 {offsets = [0, 32], sizes = [129, 32], strides = [1, 1]} : vector<129x128xbf16> to vector<129x32xbf16>
    %48 = vector.extract_strided_slice %32 {offsets = [0, 64], sizes = [129, 32], strides = [1, 1]} : vector<129x128xbf16> to vector<129x32xbf16>
    %49 = vector.extract_strided_slice %32 {offsets = [0, 96], sizes = [129, 32], strides = [1, 1]} : vector<129x128xbf16> to vector<129x32xbf16>
    %50 = vector.shape_cast %46 : vector<129x32xbf16> to vector<1x129x32xbf16>
    %51 = vector.shape_cast %47 : vector<129x32xbf16> to vector<1x129x32xbf16>
    %52 = vector.shape_cast %48 : vector<129x32xbf16> to vector<1x129x32xbf16>
    %53 = vector.shape_cast %49 : vector<129x32xbf16> to vector<1x129x32xbf16>
    %54 = tpu.concatenate %50, %51, %52, %53 in 0 : vector<1x129x32xbf16>, vector<1x129x32xbf16>, vector<1x129x32xbf16>, vector<1x129x32xbf16> -> vector<4x129x32xbf16>
    %55 = vector.extract_strided_slice %36 {offsets = [0, 0], sizes = [129, 32], strides = [1, 1]} : vector<129x128xbf16> to vector<129x32xbf16>
    %56 = vector.extract_strided_slice %36 {offsets = [0, 32], sizes = [129, 32], strides = [1, 1]} : vector<129x128xbf16> to vector<129x32xbf16>
    %57 = vector.extract_strided_slice %36 {offsets = [0, 64], sizes = [129, 32], strides = [1, 1]} : vector<129x128xbf16> to vector<129x32xbf16>
    %58 = vector.extract_strided_slice %36 {offsets = [0, 96], sizes = [129, 32], strides = [1, 1]} : vector<129x128xbf16> to vector<129x32xbf16>
    %59 = vector.shape_cast %55 : vector<129x32xbf16> to vector<1x129x32xbf16>
    %60 = vector.shape_cast %56 : vector<129x32xbf16> to vector<1x129x32xbf16>
    %61 = vector.shape_cast %57 : vector<129x32xbf16> to vector<1x129x32xbf16>
    %62 = vector.shape_cast %58 : vector<129x32xbf16> to vector<1x129x32xbf16>
    %63 = tpu.concatenate %59, %60, %61, %62 in 0 : vector<1x129x32xbf16>, vector<1x129x32xbf16>, vector<1x129x32xbf16>, vector<1x129x32xbf16> -> vector<4x129x32xbf16>
    "tpu.trace_start"() <{level = 10 : i32, message = "hqd,hkd->hqk"}> : () -> ()
    %cst_7 = arith.constant dense<0.000000e+00> : vector<4x129x129xf32>
    %64 = tpu.matmul %45, %54, %cst_7 {dimension_numbers = #tpu.dot_dimension_numbers<[2], [2], [1], [1], [0, 0, 0, 1, 1, 1], [0], [0]>} : vector<4x129x32xbf16>, vector<4x129x32xbf16>, vector<4x129x129xf32> -> vector<4x129x129xf32>
    "tpu.trace_stop"() : () -> ()
    %cst_8 = arith.constant dense<0xFF800000> : vector<4x129xf32>
    %65 = vector.multi_reduction <maximumf>, %64, %cst_8 [2] : vector<4x129x129xf32> to vector<4x129xf32>
    %66 = vector.shape_cast %65 : vector<4x129xf32> to vector<4x129x1xf32>
    %67 = vector.broadcast %66 : vector<4x129x1xf32> to vector<4x129x129xf32>
    %68 = arith.subf %64, %67 : vector<4x129x129xf32>
    %69 = math.exp %68 : vector<4x129x129xf32>
    %cst_9 = arith.constant dense<0.000000e+00> : vector<4x129xf32>
    %70 = vector.multi_reduction <add>, %69, %cst_9 [2] : vector<4x129x129xf32> to vector<4x129xf32>
    %71 = vector.shape_cast %70 : vector<4x129xf32> to vector<4x129x1xf32>
    %72 = tpu.reciprocal %71 {approx = true} : vector<4x129x1xf32> -> vector<4x129x1xf32>
    %73 = vector.broadcast %72 : vector<4x129x1xf32> to vector<4x129x129xf32>
    %74 = arith.mulf %69, %73 : vector<4x129x129xf32>
    %75 = arith.truncf %74 : vector<4x129x129xf32> to vector<4x129x129xbf16>
    "tpu.trace_start"() <{level = 10 : i32, message = "hqk,hkd->hqd"}> : () -> ()
    %cst_10 = arith.constant dense<0.000000e+00> : vector<4x129x32xf32>
    %76 = tpu.matmul %75, %63, %cst_10 {dimension_numbers = #tpu.dot_dimension_numbers<[2], [1], [1], [2], [0, 0, 0, 1, 1, 2], [0], [0]>} : vector<4x129x129xbf16>, vector<4x129x32xbf16>, vector<4x129x32xf32> -> vector<4x129x32xf32>
    "tpu.trace_stop"() : () -> ()
    %77 = vector.extract_strided_slice %6 {offsets = [0, 384], sizes = [128, 128], strides = [1, 1]} : vector<128x768xbf16> to vector<128x128xbf16>
    %78 = vector.shape_cast %77 : vector<128x128xbf16> to vector<4x32x128xbf16>
    %79 = arith.truncf %76 : vector<4x129x32xf32> to vector<4x129x32xbf16>
    "tpu.trace_start"() <{level = 10 : i32, message = "hqd,hdc->hqc"}> : () -> ()
    %cst_11 = arith.constant dense<0.000000e+00> : vector<4x129x128xf32>
    %80 = tpu.matmul %79, %78, %cst_11 {dimension_numbers = #tpu.dot_dimension_numbers<[2], [1], [1], [2], [0, 0, 0, 1, 1, 2], [0], [0]>} : vector<4x129x32xbf16>, vector<4x32x128xbf16>, vector<4x129x128xf32> -> vector<4x129x128xf32>
    "tpu.trace_stop"() : () -> ()
    %cst_12 = arith.constant dense<0.000000e+00> : vector<129x128xf32>
    %81 = vector.multi_reduction <add>, %80, %cst_12 [0] : vector<4x129x128xf32> to vector<129x128xf32>
    %82 = vector.broadcast %13 : vector<1x128xf32> to vector<129x128xf32>
    %83 = arith.addf %81, %82 : vector<129x128xf32>
    %84 = arith.addf %3, %83 : vector<129x128xf32>
    %cst_13 = arith.constant dense<0.000000e+00> : vector<129xf32>
    %85 = vector.multi_reduction <add>, %84, %cst_13 [1] : vector<129x128xf32> to vector<129xf32>
    %86 = vector.shape_cast %85 : vector<129xf32> to vector<129x1xf32>
    %cst_14 = arith.constant 1.280000e+02 : f32
    %87 = vector.broadcast %cst_14 : f32 to vector<129x1xf32>
    %88 = arith.divf %86, %87 : vector<129x1xf32>
    %89 = vector.broadcast %88 : vector<129x1xf32> to vector<129x128xf32>
    %90 = arith.subf %84, %89 : vector<129x128xf32>
    %91 = arith.mulf %90, %90 : vector<129x128xf32>
    %cst_15 = arith.constant dense<0.000000e+00> : vector<129xf32>
    %92 = vector.multi_reduction <add>, %91, %cst_15 [1] : vector<129x128xf32> to vector<129xf32>
    %93 = vector.shape_cast %92 : vector<129xf32> to vector<129x1xf32>
    %cst_16 = arith.constant 1.280000e+02 : f32
    %94 = vector.broadcast %cst_16 : f32 to vector<129x1xf32>
    %95 = arith.divf %93, %94 : vector<129x1xf32>
    %96 = vector.broadcast %88 : vector<129x1xf32> to vector<129x128xf32>
    %97 = arith.subf %84, %96 : vector<129x128xf32>
    %cst_17 = arith.constant 9.99999974E-6 : f32
    %98 = vector.broadcast %cst_17 : f32 to vector<129x1xf32>
    %99 = arith.addf %95, %98 : vector<129x1xf32>
    %100 = math.rsqrt %99 : vector<129x1xf32>
    %101 = vector.broadcast %100 : vector<129x1xf32> to vector<129x128xf32>
    %102 = arith.mulf %97, %101 : vector<129x128xf32>
    %103 = vector.broadcast %14 : vector<1x128xf32> to vector<129x128xf32>
    %104 = arith.mulf %102, %103 : vector<129x128xf32>
    %105 = vector.broadcast %15 : vector<1x128xf32> to vector<129x128xf32>
    %106 = arith.addf %104, %105 : vector<129x128xf32>
    %107 = arith.truncf %106 : vector<129x128xf32> to vector<129x128xbf16>
    %108 = vector.extract_strided_slice %6 {offsets = [0, 512], sizes = [128, 128], strides = [1, 1]} : vector<128x768xbf16> to vector<128x128xbf16>
    %cst_18 = arith.constant dense<0.000000e+00> : vector<129x128xf32>
    %109 = tpu.matmul %107, %108, %cst_18 {dimension_numbers = #tpu.dot_dimension_numbers<[1], [0], [0], [1], [0, 0, 1, 1], [], []>} : vector<129x128xbf16>, vector<128x128xbf16>, vector<129x128xf32> -> vector<129x128xf32>
    %110 = vector.broadcast %16 : vector<1x128xf32> to vector<129x128xf32>
    %111 = arith.addf %109, %110 : vector<129x128xf32>
    %cst_19 = arith.constant 0.000000e+00 : f32
    %112 = vector.broadcast %cst_19 : f32 to vector<129x128xf32>
    %113 = arith.maximumf %111, %112 : vector<129x128xf32>
    %114 = arith.truncf %113 : vector<129x128xf32> to vector<129x128xbf16>
    %115 = vector.extract_strided_slice %6 {offsets = [0, 640], sizes = [128, 128], strides = [1, 1]} : vector<128x768xbf16> to vector<128x128xbf16>
    %cst_20 = arith.constant dense<0.000000e+00> : vector<129x128xf32>
    %116 = tpu.matmul %114, %115, %cst_20 {dimension_numbers = #tpu.dot_dimension_numbers<[1], [0], [0], [1], [0, 0, 1, 1], [], []>} : vector<129x128xbf16>, vector<128x128xbf16>, vector<129x128xf32> -> vector<129x128xf32>
    %117 = vector.broadcast %17 : vector<1x128xf32> to vector<129x128xf32>
    %118 = arith.addf %116, %117 : vector<129x128xf32>
    %119 = arith.addf %106, %118 : vector<129x128xf32>
    %cst_21 = arith.constant dense<0.000000e+00> : vector<129xf32>
    %120 = vector.multi_reduction <add>, %119, %cst_21 [1] : vector<129x128xf32> to vector<129xf32>
    %121 = vector.shape_cast %120 : vector<129xf32> to vector<129x1xf32>
    %cst_22 = arith.constant 1.280000e+02 : f32
    %122 = vector.broadcast %cst_22 : f32 to vector<129x1xf32>
    %123 = arith.divf %121, %122 : vector<129x1xf32>
    %124 = vector.broadcast %123 : vector<129x1xf32> to vector<129x128xf32>
    %125 = arith.subf %119, %124 : vector<129x128xf32>
    %126 = arith.mulf %125, %125 : vector<129x128xf32>
    %cst_23 = arith.constant dense<0.000000e+00> : vector<129xf32>
    %127 = vector.multi_reduction <add>, %126, %cst_23 [1] : vector<129x128xf32> to vector<129xf32>
    %128 = vector.shape_cast %127 : vector<129xf32> to vector<129x1xf32>
    %cst_24 = arith.constant 1.280000e+02 : f32
    %129 = vector.broadcast %cst_24 : f32 to vector<129x1xf32>
    %130 = arith.divf %128, %129 : vector<129x1xf32>
    %131 = vector.broadcast %123 : vector<129x1xf32> to vector<129x128xf32>
    %132 = arith.subf %119, %131 : vector<129x128xf32>
    %cst_25 = arith.constant 9.99999974E-6 : f32
    %133 = vector.broadcast %cst_25 : f32 to vector<129x1xf32>
    %134 = arith.addf %130, %133 : vector<129x1xf32>
    %135 = math.rsqrt %134 : vector<129x1xf32>
    %136 = vector.broadcast %135 : vector<129x1xf32> to vector<129x128xf32>
    %137 = arith.mulf %132, %136 : vector<129x128xf32>
    %138 = vector.broadcast %18 : vector<1x128xf32> to vector<129x128xf32>
    %139 = arith.mulf %137, %138 : vector<129x128xf32>
    %140 = vector.broadcast %19 : vector<1x128xf32> to vector<129x128xf32>
    %141 = arith.addf %139, %140 : vector<129x128xf32>
    %c5_i32 = arith.constant 5 : i32
    %142 = arith.cmpi slt, %arg1, %c5_i32 : i32
    %143 = arith.extui %142 : i1 to i32
    %c0_i32_26 = arith.constant 0 : i32
    %144 = arith.cmpi ne, %143, %c0_i32_26 : i32
    scf.if %144 {
      %c0_29 = arith.constant 0 : index
      %c0_30 = arith.constant 0 : index
      %148 = vector.load %arg8[%c0_29, %c0_30] : memref<129x128xf32, #tpu.memory_space<vmem>>, vector<129x128xf32>
      tpu.vector_store %arg8[%c0_29, %c0_30], %141 {strides = array<i32>} : memref<129x128xf32, #tpu.memory_space<vmem>>, vector<129x128xf32>,
    } else {
    }
    %c5_i32_27 = arith.constant 5 : i32
    %145 = arith.cmpi eq, %arg1, %c5_i32_27 : i32
    %146 = arith.extui %145 : i1 to i32
    %c0_i32_28 = arith.constant 0 : i32
    %147 = arith.cmpi ne, %146, %c0_i32_28 : i32
    scf.if %147 {
      %148 = vector.extract_strided_slice %141 {offsets = [0, 0], sizes = [1, 128], strides = [1, 1]} : vector<129x128xf32> to vector<1x128xf32>
      %149 = arith.truncf %148 : vector<1x128xf32> to vector<1x128xbf16>
      %c0_29 = arith.constant 0 : index
      %c0_30 = arith.constant 0 : index
      %150 = vector.load %arg5[%c0_29, %c0_30] : memref<128x192xbf16, #tpu.memory_space<vmem>>, vector<128x192xbf16>
      %cst_31 = arith.constant dense<0.000000e+00> : vector<1x192xf32>
      %151 = tpu.matmul %149, %150, %cst_31 {dimension_numbers = #tpu.dot_dimension_numbers<[1], [0], [0], [1], [0, 0, 1, 1], [], []>} : vector<1x128xbf16>, vector<128x192xbf16>, vector<1x192xf32> -> vector<1x192xf32>
      %c0_32 = arith.constant 0 : index
      %c0_33 = arith.constant 0 : index
      %152 = vector.load %arg6[%c0_32, %c0_33] : memref<1x192xf32, #tpu.memory_space<vmem>>, vector<1x192xf32>
      %153 = arith.addf %151, %152 : vector<1x192xf32>
      %c0_34 = arith.constant 0 : index
      %c0_35 = arith.constant 0 : index
      %c0_36 = arith.constant 0 : index
      %154 = vector.load %arg7[%c0_34, %c0_35, %c0_36] : memref<1x1x192xf32, #tpu.memory_space<vmem>>, vector<1x1x192xf32>
      %155 = vector.shape_cast %154 : vector<1x1x192xf32> to vector<1x192xf32>
      %156 = vector.shape_cast %153 : vector<1x192xf32> to vector<1x1x192xf32>
      tpu.vector_store %arg7[%c0_34, %c0_35, %c0_36], %156 {strides = array<i32>} : memref<1x1x192xf32, #tpu.memory_space<vmem>>, vector<1x1x192xf32>,
    } else {
    }
    return
  }
  func.func @transform_0(%arg0: i32, %arg1: i32) -> (i32, i32, i32) {
    %c0_i32 = arith.constant 0 : i32
    %c0_i32_0 = arith.constant 0 : i32
    %c0_i32_1 = arith.constant 0 : i32
    return %arg0, %c0_i32, %c0_i32_0 : i32, i32, i32
  }
  func.func @transform_1(%arg0: i32, %arg1: i32) -> (i32, i32, i32) {
    %c0_i32 = arith.constant 0 : i32
    %c0_i32_0 = arith.constant 0 : i32
    %c0_i32_1 = arith.constant 0 : i32
    %c0_i32_2 = arith.constant 0 : i32
    return %c0_i32, %c0_i32_0, %c0_i32_1 : i32, i32, i32
  }
  func.func @transform_2(%arg0: i32, %arg1: i32) -> (i32, i32, i32) {
    %c0_i32 = arith.constant 0 : i32
    %c0_i32_0 = arith.constant 0 : i32
    %c0_i32_1 = arith.constant 0 : i32
    %c0_i32_2 = arith.constant 0 : i32
    return %c0_i32, %c0_i32_0, %c0_i32_1 : i32, i32, i32
  }
  func.func @transform_3(%arg0: i32, %arg1: i32) -> (i32, i32) {
    %c0_i32 = arith.constant 0 : i32
    %c0_i32_0 = arith.constant 0 : i32
    %c0_i32_1 = arith.constant 0 : i32
    return %c0_i32, %c0_i32_0 : i32, i32
  }
  func.func @transform_4(%arg0: i32, %arg1: i32) -> (i32, i32) {
    %c0_i32 = arith.constant 0 : i32
    %c0_i32_0 = arith.constant 0 : i32
    %c0_i32_1 = arith.constant 0 : i32
    return %c0_i32, %c0_i32_0 : i32, i32
  }
  func.func @transform_5(%arg0: i32, %arg1: i32) -> (i32, i32, i32) {
    %c0_i32 = arith.constant 0 : i32
    %c0_i32_0 = arith.constant 0 : i32
    %c0_i32_1 = arith.constant 0 : i32
    return %arg0, %c0_i32, %c0_i32_0 : i32, i32, i32
  }
}

</mosaic_0001>

<llo_original>
// kernel: tpu_custom_call.1
$region0: #{tpu_custom_call.1}
  #allocation0 [shape = 'u32[]', space=smem, size = 0x4, offset = 0x4, fixed_abs, tag = 'smem constant byte address 0x4 - core index']
  #allocation1 [shape = 'u32[144,128]{1,0:T(1,128)}', space=vmem, size = 0x12000, scoped, tag = 'internal scratch']
  #allocation2 [shape = 'f32[129,128]{1,0:T(8,128)}', space=vmem, size = 0x11000, scoped, tag = 'scratch operand']
  %s0 = inlined_call_operand.vmem [shape: f32[2,129,128], index: 0, kind: input, shape index: {}]
  %s1 = inlined_call_operand.hbm [shape: bf16[6,128,768], index: 1, kind: input, shape index: {}]
  %s2 = inlined_call_operand.vmem [shape: f32[6,10,128], index: 2, kind: input, shape index: {}]
  %s3 = inlined_call_operand.vmem [shape: bf16[128,192], index: 3, kind: input, shape index: {}]
  %s4 = inlined_call_operand.hbm [shape: f32[1,192], index: 4, kind: input, shape index: {}]
  %s5 = inlined_call_operand.hbm [shape: f32[2,1,192], index: 5, kind: output, shape index: {}]
  %s6 = sld [smem:[#allocation0]]
  $region73: #{tpu_custom_call.1} parent=0
    _
  %s8 = ssub.s32 1, %s6
  %s9 = scalar_select 0, %s8, %s6
  $region1: #{tpu_custom_call.1} parent=0
    #allocation3 [shape = 'u8[1179648]{0}', space=vmem, size = 0x120000, scoped, tag = 'input window, operand 1, single buffered']
    #allocation4 [shape = 's32[2]{0}', space=sflag, size = 0x8, scoped, tag = 'scoped memory for tpu_custom_call.1']
    #allocation5 [shape = 's32[2]{0}', space=sflag, size = 0x8, scoped, tag = 'scoped memory for tpu_custom_call.1']
    #allocation6 [shape = 'u8[1024]{0}', space=vmem, size = 0x400, scoped, tag = 'input window, operand 4, single buffered']
    #allocation7 [shape = 's32[1]{0}', space=sflag, size = 0x4, scoped, tag = 'scoped memory for tpu_custom_call.1']
    #allocation8 [shape = 'u8[2048]{0}', space=vmem, size = 0x800, scoped, tag = 'output window, operand 0']
    %10 = vsyncpa [#allocation4], 0
    %11 = vsyncpa [#allocation7], 0
    %12 = vsyncpa [#allocation5], 0
    %s13 = scalar_lea.sflag [#allocation5], 1
    %14 = vsyncpa %s13, 0
    loop: start=0, step=1, limit=14
    $region2: #{tpu_custom_call.1} parent=1 // loop_pre_header
      _
    $region3: #{tpu_custom_call.1} parent=1 // loop_header
      %s16 = sphi 0, %s20
      %p17 = scmp.ge.s32.totalorder %s16, 14
      %s23 = sphi 0, %s35
      %s24 = sphi 0, %s31
      %s25 = sphi 0, %s23
      %s26 = sphi 0, %s24
      %s27 = sphi 0, %s25
      %s28 = sphi 0, %s26
      %s38 = sphi 0, %s40
      %s41 = sphi 0, %s38
      %s42 = sphi 0, %s41
      %s58 = sphi 0, %s42
      %s62 = sphi 0, %s62
      %s64 = sphi 0, %s62
      %s65 = sphi 0, %s64
      %s79 = sphi 0, %s65
      %s83 = sphi 0, %s83
      %s85 = sphi 0, %s83
      %s86 = sphi 0, %s85
      %s100 = sphi 0, %s86
      %s104 = sphi 0, %s104
      %s106 = sphi 0, %s104
      %s107 = sphi 0, %s106
      %s121 = sphi 0, %s107
      %s125 = sphi 0, %s125
      %s127 = sphi 0, %s125
      %s128 = sphi 0, %s127
      %s142 = sphi 0, %s128
      %s148 = sphi 0, %s150
      %s151 = sphi 0, %s148
      %s152 = sphi 0, %s151
      %s168 = sphi 0, %s152
    $region4: #{tpu_custom_call.1} parent=1 // loop_header_branch
      %19 = sbr.rel (%p17) target = $region8
    $region5: #{tpu_custom_call.1} parent=1 // loop_body
      %s21 = ssub.s32 %s16, 1
      %s22 = ssub.s32 %s16, 2
      %s29 = sadd.s32 1, %s24
      %p30 = scmp.ge.s32.totalorder %s29, 6
      %s31 = scalar_select %p30, 0, %s29
      %s32 = sadd.s32 1, %s23
      %s33 = scalar_select %p30, %s32, %s23
      %p34 = scmp.ge.s32.totalorder %s33, 2
      %s35 = scalar_select %p34, 0, %s33
      %s36 = ssub.s32 %s23, %s35
      %p37 = scmp.eq.s32.totalorder %s36, 0
      %s39 = sadd.s32 %s38, 1
      %s40 = scalar_select %p37, %s38, %s39
      %p43 = pneg %p37
      %p44 = scmp.eq.s32.totalorder %s16, 11
      %p45 = por %p43, %p44
      %p46 = scmp.ne.s32.totalorder %s38, %s41
      %p47 = scmp.eq.s32.totalorder %s16, 0
      %p48 = por %p46, %p47
      %p49 = scmp.ne.s32.totalorder %s38, %s41
      %p50 = scmp.eq.s32.totalorder %s21, 11
      %p51 = por %p49, %p50
      %p52 = scmp.ne.s32.totalorder %s41, %s42
      %p53 = scmp.eq.s32.totalorder %s21, 0
      %p54 = por %p52, %p53
      %p55 = scmp.ne.s32.totalorder %s41, %s42
      %p56 = scmp.eq.s32.totalorder %s22, 11
      %p57 = por %p55, %p56
      %p59 = scmp.ne.s32.totalorder %s42, %s58
      %p60 = scmp.eq.s32.totalorder %s22, 0
      %p61 = por %p59, %p60
      %s63 = sadd.s32 %s62, 1
      %p66 = scmp.eq.s32.totalorder %s16, 11
      %p67 = scmp.ne.s32.totalorder %s62, %s64
      %p68 = scmp.eq.s32.totalorder %s16, 0
      %p69 = por %p67, %p68
      %p70 = scmp.ne.s32.totalorder %s62, %s64
      %p71 = scmp.eq.s32.totalorder %s21, 11
      %p72 = por %p70, %p71
      %p73 = scmp.ne.s32.totalorder %s64, %s65
      %p74 = scmp.eq.s32.totalorder %s21, 0
      %p75 = por %p73, %p74
      %p76 = scmp.ne.s32.totalorder %s64, %s65
      %p77 = scmp.eq.s32.totalorder %s22, 11
      %p78 = por %p76, %p77
      %p80 = scmp.ne.s32.totalorder %s65, %s79
      %p81 = scmp.eq.s32.totalorder %s22, 0
      %p82 = por %p80, %p81
      %s84 = sadd.s32 %s83, 1
      %p87 = scmp.eq.s32.totalorder %s16, 11
      %p88 = scmp.ne.s32.totalorder %s83, %s85
      %p89 = scmp.eq.s32.totalorder %s16, 0
      %p90 = por %p88, %p89
      %p91 = scmp.ne.s32.totalorder %s83, %s85
      %p92 = scmp.eq.s32.totalorder %s21, 11
      %p93 = por %p91, %p92
      %p94 = scmp.ne.s32.totalorder %s85, %s86
      %p95 = scmp.eq.s32.totalorder %s21, 0
      %p96 = por %p94, %p95
      %p97 = scmp.ne.s32.totalorder %s85, %s86
      %p98 = scmp.eq.s32.totalorder %s22, 11
      %p99 = por %p97, %p98
      %p101 = scmp.ne.s32.totalorder %s86, %s100
      %p102 = scmp.eq.s32.totalorder %s22, 0
      %p103 = por %p101, %p102
      %s105 = sadd.s32 %s104, 1
      %p108 = scmp.eq.s32.totalorder %s16, 11
      %p109 = scmp.ne.s32.totalorder %s104, %s106
      %p110 = scmp.eq.s32.totalorder %s16, 0
      %p111 = por %p109, %p110
      %p112 = scmp.ne.s32.totalorder %s104, %s106
      %p113 = scmp.eq.s32.totalorder %s21, 11
      %p114 = por %p112, %p113
      %p115 = scmp.ne.s32.totalorder %s106, %s107
      %p116 = scmp.eq.s32.totalorder %s21, 0
      %p117 = por %p115, %p116
      %p118 = scmp.ne.s32.totalorder %s106, %s107
      %p119 = scmp.eq.s32.totalorder %s22, 11
      %p120 = por %p118, %p119
      %p122 = scmp.ne.s32.totalorder %s107, %s121
      %p123 = scmp.eq.s32.totalorder %s22, 0
      %p124 = por %p122, %p123
      %s126 = sadd.s32 %s125, 1
      %p129 = scmp.eq.s32.totalorder %s16, 11
      %p130 = scmp.ne.s32.totalorder %s125, %s127
      %p131 = scmp.eq.s32.totalorder %s16, 0
      %p132 = por %p130, %p131
      %p133 = scmp.ne.s32.totalorder %s125, %s127
      %p134 = scmp.eq.s32.totalorder %s21, 11
      %p135 = por %p133, %p134
      %p136 = scmp.ne.s32.totalorder %s127, %s128
      %p137 = scmp.eq.s32.totalorder %s21, 0
      %p138 = por %p136, %p137
      %p139 = scmp.ne.s32.totalorder %s127, %s128
      %p140 = scmp.eq.s32.totalorder %s22, 11
      %p141 = por %p139, %p140
      %p143 = scmp.ne.s32.totalorder %s128, %s142
      %p144 = scmp.eq.s32.totalorder %s22, 0
      %p145 = por %p143, %p144
      %s146 = ssub.s32 %s23, %s35
      %p147 = scmp.eq.s32.totalorder %s146, 0
      %s149 = sadd.s32 %s148, 1
      %s150 = scalar_select %p147, %s148, %s149
      %p153 = pneg %p147
      %p154 = scmp.eq.s32.totalorder %s16, 11
      %p155 = por %p153, %p154
      %p156 = scmp.ne.s32.totalorder %s148, %s151
      %p157 = scmp.eq.s32.totalorder %s16, 0
      %p158 = por %p156, %p157
      %p159 = scmp.ne.s32.totalorder %s148, %s151
      %p160 = scmp.eq.s32.totalorder %s21, 11
      %p161 = por %p159, %p160
      %p162 = scmp.ne.s32.totalorder %s151, %s152
      %p163 = scmp.eq.s32.totalorder %s21, 0
      %p164 = por %p162, %p163
      %p165 = scmp.ne.s32.totalorder %s151, %s152
      %p166 = scmp.eq.s32.totalorder %s22, 11
      %p167 = por %p165, %p166
      %p169 = scmp.ne.s32.totalorder %s152, %s168
      %p170 = scmp.eq.s32.totalorder %s22, 0
      %p171 = por %p169, %p170
      %p172 = scmp.le.s32.totalorder 1, %s16
      %p173 = scmp.lt.s32.totalorder %s16, 13
      %p174 = pnand %p172, %p173
      %p175 = pneg %p174
      // Predicated region
      $region9: #{tpu_custom_call.1} parent=5 // pred_check
        _
      $region10: #{tpu_custom_call.1} parent=5 // pred_check_branch
        %177 = sbr.rel (%p174) target = $region12
      $region11: #{tpu_custom_call.1} parent=5 // pred_region
        %s178 = ssub.s32 %s16, 1
        // Predicated region
        $region13: #{tpu_custom_call.1} parent=11 // pred_check
          %p179 = pneg %p75
        $region14: #{tpu_custom_call.1} parent=11 // pred_check_branch
          %181 = sbr.rel (%p179) target = $region16
        $region15: #{tpu_custom_call.1} parent=11 // pred_region
          %s183 = ssub.s32 36864, 36864
          %184 = vsyncadd [#allocation4], %s183
          %s185 = sshll.u32 [#allocation3], 4
          %s186 = int_to_ptr.vmem [resolvable:$true] %s185
          %191 = dma.hbm_to_vmem [thread:$0]  %s1, 36864, %s186, [#allocation4], 384, 384, 24
        $region16: #{tpu_custom_call.1} parent=11 // pred_fallthru
          _
        // Predicated region
        $region17: #{tpu_custom_call.1} parent=11 // pred_check
          %p192 = pneg %p96
        $region18: #{tpu_custom_call.1} parent=11 // pred_check_branch
          %194 = sbr.rel (%p192) target = $region20
        $region19: #{tpu_custom_call.1} parent=11 // pred_region
          _
        $region20: #{tpu_custom_call.1} parent=11 // pred_fallthru
          _
        // Predicated region
        $region21: #{tpu_custom_call.1} parent=11 // pred_check
          %p195 = pneg %p117
        $region22: #{tpu_custom_call.1} parent=11 // pred_check_branch
          %197 = sbr.rel (%p195) target = $region24
        $region23: #{tpu_custom_call.1} parent=11 // pred_region
          _
        $region24: #{tpu_custom_call.1} parent=11 // pred_fallthru
          _
        // Predicated region
        $region25: #{tpu_custom_call.1} parent=11 // pred_check
          %p198 = pneg %p138
        $region26: #{tpu_custom_call.1} parent=11 // pred_check_branch
          %200 = sbr.rel (%p198) target = $region28
        $region27: #{tpu_custom_call.1} parent=11 // pred_region
          %s202 = ssub.s32 32, 32
          %203 = vsyncadd [#allocation7], %s202
          %s205 = sshll.u32 [#allocation6], 4
          %s206 = int_to_ptr.vmem [resolvable:$true] %s205
          %208 = dma.hbm_to_vmem [thread:$0]  %s4, 32, %s206, [#allocation7]
        $region28: #{tpu_custom_call.1} parent=11 // pred_fallthru
          _
      $region12: #{tpu_custom_call.1} parent=5 // pred_fallthru
        _
      %p209 = scmp.lt.s32.totalorder %s16, 12
      // Predicated region
      $region29: #{tpu_custom_call.1} parent=5 // pred_check
        %p210 = pneg %p209
      $region30: #{tpu_custom_call.1} parent=5 // pred_check_branch
        %212 = sbr.rel (%p210) target = $region32
      $region31: #{tpu_custom_call.1} parent=5 // pred_region
        // Predicated region
        $region33: #{tpu_custom_call.1} parent=31 // pred_check
          %p213 = pneg %p48
        $region34: #{tpu_custom_call.1} parent=31 // pred_check_branch
          %215 = sbr.rel (%p213) target = $region36
        $region35: #{tpu_custom_call.1} parent=31 // pred_region
          %p216 = scmp.lt.s32.totalorder %s23, 1
          %s217 = scalar_select %p216, %s23, 1
          %s218 = smul.addr %s217, 17
          %s219 = smul.addr %s218, 8
          %s220 = scalar_lea.vmem %s0, %s219
        $region36: #{tpu_custom_call.1} parent=31 // pred_fallthru
          _
      $region32: #{tpu_custom_call.1} parent=5 // pred_fallthru
        _
      %p221 = scmp.le.s32.totalorder 1, %s16
      %p222 = scmp.lt.s32.totalorder %s16, 13
      %p223 = pnand %p221, %p222
      %p224 = pneg %p223
      // Predicated region
      $region37: #{tpu_custom_call.1} parent=5 // pred_check
        _
      $region38: #{tpu_custom_call.1} parent=5 // pred_check_branch
        %226 = sbr.rel (%p223) target = $region40
      $region39: #{tpu_custom_call.1} parent=5 // pred_region
        %s227 = ssub.s32 %s16, 1
        // Predicated region
        $region41: #{tpu_custom_call.1} parent=39 // pred_check
          %p228 = pneg %p75
        $region42: #{tpu_custom_call.1} parent=39 // pred_check_branch
          %230 = sbr.rel (%p228) target = $region44
        $region43: #{tpu_custom_call.1} parent=39 // pred_region
          %231 = dma.done [#allocation4], 36864
        $region44: #{tpu_custom_call.1} parent=39 // pred_fallthru
          _
        // Predicated region
        $region45: #{tpu_custom_call.1} parent=39 // pred_check
          %p232 = pneg %p138
        $region46: #{tpu_custom_call.1} parent=39 // pred_check_branch
          %234 = sbr.rel (%p232) target = $region48
        $region47: #{tpu_custom_call.1} parent=39 // pred_region
          %235 = dma.done [#allocation7], 32
        $region48: #{tpu_custom_call.1} parent=39 // pred_fallthru
          _
        %p236 = scmp.lt.s32.totalorder %s25, 1
        %s237 = scalar_select %p236, %s25, 1
        %s238 = smul.addr %s237, 17
        %s239 = smul.addr %s238, 8
        %s240 = scalar_lea.vmem %s0, %s239
        %p241 = pneg %p54
        %p242 = pneg %p51
        %p243 = pneg %p75
        %p244 = pneg %p72
        %p245 = pneg %p96
        %p246 = pneg %p93
        %p247 = pneg %p117
        %p248 = pneg %p114
        %p249 = pneg %p138
        %p250 = pneg %p135
        %p251 = pneg %p164
        %p252 = pneg %p161
        %s253 = sand.u32 %s151, 1
        %s254 = scalar_lea.sflag [#allocation5], %s253
        %s255 = sand.u32 %s151, 1
        %s256 = smul.addr %s255, 2
        %s257 = scalar_lea.vmem [#allocation8], %s256
        %p258 = scmp.lt.s32.totalorder %s25, 1
        %s259 = scalar_select %p258, %s25, 1
        %s260 = smul.addr %s259, 17
        %s261 = smul.addr %s260, 8
        %s262 = scalar_lea.vmem %s0, %s261
        %p264 = scmp.eq.s32.totalorder %s26, 0
        // Predicated region
        $region49: #{tpu_custom_call.1} parent=39 // pred_check
          %p265 = pneg %p264
        $region50: #{tpu_custom_call.1} parent=39 // pred_check_branch
          %267 = sbr.rel (%p265) target = $region52
        $region51: #{tpu_custom_call.1} parent=39 // pred_region
          %v268 = vld [vmem:[%s262] sm:$0xff]
          %v269 = vld [vmem:[%s262 + $0x8] sm:$0xff]
          %v270 = vld [vmem:[%s262 + $0x10] sm:$0xff]
          %v271 = vld [vmem:[%s262 + $0x18] sm:$0xff]
          %v272 = vld [vmem:[%s262 + $0x20] sm:$0xff]
          %v273 = vld [vmem:[%s262 + $0x28] sm:$0xff]
          %v274 = vld [vmem:[%s262 + $0x30] sm:$0xff]
          %v275 = vld [vmem:[%s262 + $0x38] sm:$0xff]
          %v276 = vld [vmem:[%s262 + $0x40] sm:$0xff]
          %v277 = vld [vmem:[%s262 + $0x48] sm:$0xff]
          %v278 = vld [vmem:[%s262 + $0x50] sm:$0xff]
          %v279 = vld [vmem:[%s262 + $0x58] sm:$0xff]
          %v280 = vld [vmem:[%s262 + $0x60] sm:$0xff]
          %v281 = vld [vmem:[%s262 + $0x68] sm:$0xff]
          %v282 = vld [vmem:[%s262 + $0x70] sm:$0xff]
          %v283 = vld [vmem:[%s262 + $0x78] sm:$0xff]
          %v284 = vld [vmem:[%s262 + $0x80] sm:$0x1]
          %285 = vst [vmem:[#allocation2] sm:$0xff] %v268
          %286 = vst [vmem:[#allocation2 + $0x8] sm:$0xff] %v269
          %287 = vst [vmem:[#allocation2 + $0x10] sm:$0xff] %v270
          %288 = vst [vmem:[#allocation2 + $0x18] sm:$0xff] %v271
          %289 = vst [vmem:[#allocation2 + $0x20] sm:$0xff] %v272
          %290 = vst [vmem:[#allocation2 + $0x28] sm:$0xff] %v273
          %291 = vst [vmem:[#allocation2 + $0x30] sm:$0xff] %v274
          %292 = vst [vmem:[#allocation2 + $0x38] sm:$0xff] %v275
          %293 = vst [vmem:[#allocation2 + $0x40] sm:$0xff] %v276
          %294 = vst [vmem:[#allocation2 + $0x48] sm:$0xff] %v277
          %295 = vst [vmem:[#allocation2 + $0x50] sm:$0xff] %v278
          %296 = vst [vmem:[#allocation2 + $0x58] sm:$0xff] %v279
          %297 = vst [vmem:[#allocation2 + $0x60] sm:$0xff] %v280
          %298 = vst [vmem:[#allocation2 + $0x68] sm:$0xff] %v281
          %299 = vst [vmem:[#allocation2 + $0x70] sm:$0xff] %v282
          %300 = vst [vmem:[#allocation2 + $0x78] sm:$0xff] %v283
          %301 = vst [vmem:[#allocation2 + $0x80] sm:$0x1] %v284
        $region52: #{tpu_custom_call.1} parent=39 // pred_fallthru
          _
        %v302 = vld [vmem:[#allocation2] sm:$0xff]
        %v303 = vld [vmem:[#allocation2 + $0x8] sm:$0xff]
        %v304 = vld [vmem:[#allocation2 + $0x10] sm:$0xff]
        %v305 = vld [vmem:[#allocation2 + $0x18] sm:$0xff]
        %v306 = vld [vmem:[#allocation2 + $0x20] sm:$0xff]
        %v307 = vld [vmem:[#allocation2 + $0x28] sm:$0xff]
        %v308 = vld [vmem:[#allocation2 + $0x30] sm:$0xff]
        %v309 = vld [vmem:[#allocation2 + $0x38] sm:$0xff]
        %v310 = vld [vmem:[#allocation2 + $0x40] sm:$0xff]
        %v311 = vld [vmem:[#allocation2 + $0x48] sm:$0xff]
        %v312 = vld [vmem:[#allocation2 + $0x50] sm:$0xff]
        %v313 = vld [vmem:[#allocation2 + $0x58] sm:$0xff]
        %v314 = vld [vmem:[#allocation2 + $0x60] sm:$0xff]
        %v315 = vld [vmem:[#allocation2 + $0x68] sm:$0xff]
        %v316 = vld [vmem:[#allocation2 + $0x70] sm:$0xff]
        %v317 = vld [vmem:[#allocation2 + $0x78] sm:$0xff]
        %v318 = vld [vmem:[#allocation2 + $0x80] sm:$0x1]
        %s319 = smul.u32 %s26, 96
        %s320 = smul.addr %s319, 4
        %s321 = scalar_lea.vmem [#allocation3], %s320
        %v322 = vld [vmem:[%s321] sm:$0xff]
        %v323 = vld [vmem:[%s321 + $0x8] sm:$0xff]
        %v324 = vld [vmem:[%s321 + $0x10] sm:$0xff]
        %v325 = vld [vmem:[%s321 + $0x18] sm:$0xff]
        %v326 = vld [vmem:[%s321 + $0x20] sm:$0xff]
        %v327 = vld [vmem:[%s321 + $0x28] sm:$0xff]
        %v328 = vld [vmem:[%s321 + $0x30] sm:$0xff]
        %v329 = vld [vmem:[%s321 + $0x38] sm:$0xff]
        %v330 = vld [vmem:[%s321 + $0x40] sm:$0xff]
        %v331 = vld [vmem:[%s321 + $0x48] sm:$0xff]
        %v332 = vld [vmem:[%s321 + $0x50] sm:$0xff]
        %v333 = vld [vmem:[%s321 + $0x58] sm:$0xff]
        %v334 = vld [vmem:[%s321 + $0x60] sm:$0xff]
        %v335 = vld [vmem:[%s321 + $0x68] sm:$0xff]
        %v336 = vld [vmem:[%s321 + $0x70] sm:$0xff]
        %v337 = vld [vmem:[%s321 + $0x78] sm:$0xff]
        %v338 = vld [vmem:[%s321 + $0x80] sm:$0xff]
        %v339 = vld [vmem:[%s321 + $0x88] sm:$0xff]
        %v340 = vld [vmem:[%s321 + $0x90] sm:$0xff]
        %v341 = vld [vmem:[%s321 + $0x98] sm:$0xff]
        %v342 = vld [vmem:[%s321 + $0xa0] sm:$0xff]
        %v343 = vld [vmem:[%s321 + $0xa8] sm:$0xff]
        %v344 = vld [vmem:[%s321 + $0xb0] sm:$0xff]
        %v345 = vld [vmem:[%s321 + $0xb8] sm:$0xff]
        %v346 = vld [vmem:[%s321 + $0xc0] sm:$0xff]
        %v347 = vld [vmem:[%s321 + $0xc8] sm:$0xff]
        %v348 = vld [vmem:[%s321 + $0xd0] sm:$0xff]
        %v349 = vld [vmem:[%s321 + $0xd8] sm:$0xff]
        %v350 = vld [vmem:[%s321 + $0xe0] sm:$0xff]
        %v351 = vld [vmem:[%s321 + $0xe8] sm:$0xff]
        %v352 = vld [vmem:[%s321 + $0xf0] sm:$0xff]
        %v353 = vld [vmem:[%s321 + $0xf8] sm:$0xff]
        %v354 = vld [vmem:[%s321 + $0x100] sm:$0xff]
        %v355 = vld [vmem:[%s321 + $0x108] sm:$0xff]
        %v356 = vld [vmem:[%s321 + $0x110] sm:$0xff]
        %v357 = vld [vmem:[%s321 + $0x118] sm:$0xff]
        %v358 = vld [vmem:[%s321 + $0x120] sm:$0xff]
        %v359 = vld [vmem:[%s321 + $0x128] sm:$0xff]
        %v360 = vld [vmem:[%s321 + $0x130] sm:$0xff]
        %v361 = vld [vmem:[%s321 + $0x138] sm:$0xff]
        %v362 = vld [vmem:[%s321 + $0x140] sm:$0xff]
        %v363 = vld [vmem:[%s321 + $0x148] sm:$0xff]
        %v364 = vld [vmem:[%s321 + $0x150] sm:$0xff]
        %v365 = vld [vmem:[%s321 + $0x158] sm:$0xff]
        %v366 = vld [vmem:[%s321 + $0x160] sm:$0xff]
        %v367 = vld [vmem:[%s321 + $0x168] sm:$0xff]
        %v368 = vld [vmem:[%s321 + $0x170] sm:$0xff]
        %v369 = vld [vmem:[%s321 + $0x178] sm:$0xff]
        %s370 = smul.u32 %s26, 16
        %s371 = scalar_lea.vmem %s2, %s370
        %v372 = vld [vmem:[%s371] sm:$0xff]
        %v373 = vld [vmem:[%s371 + $0x8] sm:$0x3]
        %v374 = vpack.c.bf16 %v303, %v302
        %v375 = vpack.c.bf16 %v305, %v304
        %v376 = vpack.c.bf16 %v307, %v306
        %v377 = vpack.c.bf16 %v309, %v308
        %v378 = vpack.c.bf16 %v311, %v310
        %v379 = vpack.c.bf16 %v313, %v312
        %v380 = vpack.c.bf16 %v315, %v314
        %v381 = vpack.c.bf16 %v317, %v316
        %v382 = vpack.c.bf16 %v318, %v318
        %v415 = vunpack.c.l.b16 %v322
        %v416 = vunpack.c.h.b16 %v322
        %v417 = vunpack.c.l.b16 %v323
        %v418 = vunpack.c.l.b16 %v325
        %v419 = vunpack.c.h.b16 %v325
        %v420 = vunpack.c.l.b16 %v326
        %v421 = vunpack.c.l.b16 %v328
        %v422 = vunpack.c.h.b16 %v328
        %v423 = vunpack.c.l.b16 %v329
        %v424 = vunpack.c.l.b16 %v331
        %v425 = vunpack.c.h.b16 %v331
        %v426 = vunpack.c.l.b16 %v332
        %v427 = vunpack.c.l.b16 %v334
        %v428 = vunpack.c.h.b16 %v334
        %v429 = vunpack.c.l.b16 %v335
        %v430 = vunpack.c.l.b16 %v337
        %v431 = vunpack.c.h.b16 %v337
        %v432 = vunpack.c.l.b16 %v338
        %v433 = vunpack.c.l.b16 %v340
        %v434 = vunpack.c.h.b16 %v340
        %v435 = vunpack.c.l.b16 %v341
        %v436 = vunpack.c.l.b16 %v343
        %v437 = vunpack.c.h.b16 %v343
        %v438 = vunpack.c.l.b16 %v344
        %v439 = vunpack.c.l.b16 %v346
        %v440 = vunpack.c.h.b16 %v346
        %v441 = vunpack.c.l.b16 %v347
        %v442 = vunpack.c.l.b16 %v349
        %v443 = vunpack.c.h.b16 %v349
        %v444 = vunpack.c.l.b16 %v350
        %v445 = vunpack.c.l.b16 %v352
        %v446 = vunpack.c.h.b16 %v352
        %v447 = vunpack.c.l.b16 %v353
        %v448 = vunpack.c.l.b16 %v355
        %v449 = vunpack.c.h.b16 %v355
        %v450 = vunpack.c.l.b16 %v356
        %v451 = vunpack.c.l.b16 %v358
        %v452 = vunpack.c.h.b16 %v358
        %v453 = vunpack.c.l.b16 %v359
        %v454 = vunpack.c.l.b16 %v361
        %v455 = vunpack.c.h.b16 %v361
        %v456 = vunpack.c.l.b16 %v362
        %v457 = vunpack.c.l.b16 %v364
        %v458 = vunpack.c.h.b16 %v364
        %v459 = vunpack.c.l.b16 %v365
        %v460 = vunpack.c.l.b16 %v367
        %v461 = vunpack.c.h.b16 %v367
        %v462 = vunpack.c.l.b16 %v368
        %v463 = vpack.c.b16 %v418, %v415
        %v464 = vpack.c.b16 %v419, %v416
        %v465 = vpack.c.b16 %v420, %v417
        %v466 = vpack.c.b16 %v424, %v421
        %v467 = vpack.c.b16 %v425, %v422
        %v468 = vpack.c.b16 %v426, %v423
        %v469 = vpack.c.b16 %v430, %v427
        %v470 = vpack.c.b16 %v431, %v428
        %v471 = vpack.c.b16 %v432, %v429
        %v472 = vpack.c.b16 %v436, %v433
        %v473 = vpack.c.b16 %v437, %v434
        %v474 = vpack.c.b16 %v438, %v435
        %v475 = vpack.c.b16 %v442, %v439
        %v476 = vpack.c.b16 %v443, %v440
        %v477 = vpack.c.b16 %v444, %v441
        %v478 = vpack.c.b16 %v448, %v445
        %v479 = vpack.c.b16 %v449, %v446
        %v480 = vpack.c.b16 %v450, %v447
        %v481 = vpack.c.b16 %v454, %v451
        %v482 = vpack.c.b16 %v455, %v452
        %v483 = vpack.c.b16 %v456, %v453
        %v484 = vpack.c.b16 %v460, %v457
        %v485 = vpack.c.b16 %v461, %v458
        %v486 = vpack.c.b16 %v462, %v459
        %511 = vmatprep.subr.bf16.mxu0 %v464
        %512 = vmatpush1.bf16.msra.mxu0 %v463
        %513 = vmatprep.subr.bf16.mxu0 %v467
        %514 = vmatpush1.bf16.msra.mxu0 %v466
        %515 = vmatprep.subr.bf16.mxu0 %v470
        %516 = vmatpush1.bf16.msra.mxu0 %v469
        %517 = vmatprep.subr.bf16.mxu0 %v473
        %518 = vmatpush1.bf16.msra.mxu0 %v472
        %519 = vmatprep.subr.bf16.mxu0 %v476
        %520 = vmatpush1.bf16.msra.mxu0 %v475
        %521 = vmatprep.subr.bf16.mxu0 %v479
        %522 = vmatpush1.bf16.msra.mxu0 %v478
        %523 = vmatprep.subr.bf16.mxu0 %v482
        %524 = vmatpush1.bf16.msra.mxu0 %v481
        %525 = vmatprep.subr.bf16.mxu0 %v485
        %526 = vmatpush1.bf16.msra.mxu0 %v484
        %527 = vmatprep.subr.bf16.mxu0 0
        %528 = vmatpush1.bf16.msra.mxu0 0
        %529 = vmatprep.subr.bf16.mxu0 0
        %530 = vmatpush1.bf16.msra.mxu0 0
        %531 = vmatprep.subr.bf16.mxu0 0
        %532 = vmatpush1.bf16.msra.mxu0 0
        %533 = vmatprep.subr.bf16.mxu0 0
        %534 = vmatpush1.bf16.msra.mxu0 0
        %535 = vmatprep.subr.bf16.mxu0 0
        %536 = vmatpush1.bf16.msra.mxu0 0
        %537 = vmatprep.subr.bf16.mxu0 0
        %538 = vmatpush1.bf16.msra.mxu0 0
        %539 = vmatprep.subr.bf16.mxu0 0
        %540 = vmatpush1.bf16.msra.mxu0 0
        %541 = vmatprep.subr.bf16.mxu0 0
        %542 = vmatpush1.bf16.msra.mxu0 0
        %543 = vmatprep.mubr.bf16.mxu0 0
        %544 = vmatmul.mubr.bf16.gmra.mrb[0].mxu0 %v374
        %v545 = vpop.f32.mrb[0].mxu0
        %v546 = vadd.f32 0.0, %v545
        %v547 = vpop.f32.mrb[0].mxu0
        %v548 = vadd.f32 0.0, %v547
        %v549 = vpop.f32.mrb[0].mxu0
        %v550 = vadd.f32 0.0, %v549
        %v551 = vpop.f32.mrb[0].mxu0
        %v552 = vadd.f32 0.0, %v551
        %553 = vmatprep.mubr.bf16.mxu0 0
        %554 = vmatmul.mubr.bf16.gmra.mrb[0].mxu0 %v375
        %v555 = vpop.f32.mrb[0].mxu0
        %v556 = vadd.f32 0.0, %v555
        %v557 = vpop.f32.mrb[0].mxu0
        %v558 = vadd.f32 0.0, %v557
        %v559 = vpop.f32.mrb[0].mxu0
        %v560 = vadd.f32 0.0, %v559
        %v561 = vpop.f32.mrb[0].mxu0
        %v562 = vadd.f32 0.0, %v561
        %563 = vmatprep.mubr.bf16.mxu0 0
        %564 = vmatmul.mubr.bf16.gmra.mrb[0].mxu0 %v376
        %v565 = vpop.f32.mrb[0].mxu0
        %v566 = vadd.f32 0.0, %v565
        %v567 = vpop.f32.mrb[0].mxu0
        %v568 = vadd.f32 0.0, %v567
        %v569 = vpop.f32.mrb[0].mxu0
        %v570 = vadd.f32 0.0, %v569
        %v571 = vpop.f32.mrb[0].mxu0
        %v572 = vadd.f32 0.0, %v571
        %573 = vmatprep.mubr.bf16.mxu0 0
        %574 = vmatmul.mubr.bf16.gmra.mrb[0].mxu0 %v377
        %v575 = vpop.f32.mrb[0].mxu0
        %v576 = vadd.f32 0.0, %v575
        %v577 = vpop.f32.mrb[0].mxu0
        %v578 = vadd.f32 0.0, %v577
        %v579 = vpop.f32.mrb[0].mxu0
        %v580 = vadd.f32 0.0, %v579
        %v581 = vpop.f32.mrb[0].mxu0
        %v582 = vadd.f32 0.0, %v581
        %583 = vmatprep.mubr.bf16.mxu0 0
        %584 = vmatmul.mubr.bf16.gmra.mrb[0].mxu0 %v378
        %v585 = vpop.f32.mrb[0].mxu0
        %v586 = vadd.f32 0.0, %v585
        %v587 = vpop.f32.mrb[0].mxu0
        %v588 = vadd.f32 0.0, %v587
        %v589 = vpop.f32.mrb[0].mxu0
        %v590 = vadd.f32 0.0, %v589
        %v591 = vpop.f32.mrb[0].mxu0
        %v592 = vadd.f32 0.0, %v591
        %593 = vmatprep.mubr.bf16.mxu0 0
        %594 = vmatmul.mubr.bf16.gmra.mrb[0].mxu0 %v379
        %v595 = vpop.f32.mrb[0].mxu0
        %v596 = vadd.f32 0.0, %v595
        %v597 = vpop.f32.mrb[0].mxu0
        %v598 = vadd.f32 0.0, %v597
        %v599 = vpop.f32.mrb[0].mxu0
        %v600 = vadd.f32 0.0, %v599
        %v601 = vpop.f32.mrb[0].mxu0
        %v602 = vadd.f32 0.0, %v601
        %603 = vmatprep.mubr.bf16.mxu0 0
        %604 = vmatmul.mubr.bf16.gmra.mrb[0].mxu0 %v380
        %v605 = vpop.f32.mrb[0].mxu0
        %v606 = vadd.f32 0.0, %v605
        %v607 = vpop.f32.mrb[0].mxu0
        %v608 = vadd.f32 0.0, %v607
        %v609 = vpop.f32.mrb[0].mxu0
        %v610 = vadd.f32 0.0, %v609
        %v611 = vpop.f32.mrb[0].mxu0
        %v612 = vadd.f32 0.0, %v611
        %613 = vmatprep.mubr.bf16.mxu0 0
        %614 = vmatmul.mubr.bf16.gmra.mrb[0].mxu0 %v381
        %v615 = vpop.f32.mrb[0].mxu0
        %v616 = vadd.f32 0.0, %v615
        %v617 = vpop.f32.mrb[0].mxu0
        %v618 = vadd.f32 0.0, %v617
        %v619 = vpop.f32.mrb[0].mxu0
        %v620 = vadd.f32 0.0, %v619
        %v621 = vpop.f32.mrb[0].mxu0
        %v622 = vadd.f32 0.0, %v621
        %623 = vmatprep.mubr.bf16.mxu0 0
        %624 = vmatmul.mubr.bf16.gmra.mrb[0].mxu0 %v382
        %v625 = vpop.f32.mrb[0].mxu0
        %v626 = vadd.f32 0.0, %v625
        %v627 = vpop.f32.mrb[0].mxu0
        %v628 = vadd.f32 0.0, %v627
        %v629 = vpop.f32.mrb[0].mxu0
        %v630 = vpop.f32.mrb[0].mxu0
        %631 = vdwg.mxu0
        %632 = vmatprep.subr.bf16.mxu0 0
        %633 = vmatpush1.bf16.msra.mxu0 %v465
        %634 = vmatprep.subr.bf16.mxu0 0
        %635 = vmatpush1.bf16.msra.mxu0 %v468
        %636 = vmatprep.subr.bf16.mxu0 0
        %637 = vmatpush1.bf16.msra.mxu0 %v471
        %638 = vmatprep.subr.bf16.mxu0 0
        %639 = vmatpush1.bf16.msra.mxu0 %v474
        %640 = vmatprep.subr.bf16.mxu0 0
        %641 = vmatpush1.bf16.msra.mxu0 %v477
        %642 = vmatprep.subr.bf16.mxu0 0
        %643 = vmatpush1.bf16.msra.mxu0 %v480
        %644 = vmatprep.subr.bf16.mxu0 0
        %645 = vmatpush1.bf16.msra.mxu0 %v483
        %646 = vmatprep.subr.bf16.mxu0 0
        %647 = vmatpush1.bf16.msra.mxu0 %v486
        %648 = vmatprep.subr.bf16.mxu0 0
        %649 = vmatpush1.bf16.msra.mxu0 0
        %650 = vmatprep.subr.bf16.mxu0 0
        %651 = vmatpush1.bf16.msra.mxu0 0
        %652 = vmatprep.subr.bf16.mxu0 0
        %653 = vmatpush1.bf16.msra.mxu0 0
        %654 = vmatprep.subr.bf16.mxu0 0
        %655 = vmatpush1.bf16.msra.mxu0 0
        %656 = vmatprep.subr.bf16.mxu0 0
        %657 = vmatpush1.bf16.msra.mxu0 0
        %658 = vmatprep.subr.bf16.mxu0 0
        %659 = vmatpush1.bf16.msra.mxu0 0
        %660 = vmatprep.subr.bf16.mxu0 0
        %661 = vmatpush1.bf16.msra.mxu0 0
        %662 = vmatprep.subr.bf16.mxu0 0
        %663 = vmatpush1.bf16.msra.mxu0 0
        %664 = vmatprep.mubr.bf16.mxu0 0
        %665 = vmatmul.mubr.bf16.gmra.mrb[0].mxu0 %v374
        %v666 = vpop.f32.mrb[0].mxu0
        %v667 = vadd.f32 0.0, %v666
        %v668 = vpop.f32.mrb[0].mxu0
        %v669 = vpop.f32.mrb[0].mxu0
        %v670 = vadd.f32 0.0, %v669
        %v671 = vpop.f32.mrb[0].mxu0
        %672 = vmatprep.mubr.bf16.mxu0 0
        %673 = vmatmul.mubr.bf16.gmra.mrb[0].mxu0 %v375
        %v674 = vpop.f32.mrb[0].mxu0
        %v675 = vadd.f32 0.0, %v674
        %v676 = vpop.f32.mrb[0].mxu0
        %v677 = vpop.f32.mrb[0].mxu0
        %v678 = vadd.f32 0.0, %v677
        %v679 = vpop.f32.mrb[0].mxu0
        %680 = vmatprep.mubr.bf16.mxu0 0
        %681 = vmatmul.mubr.bf16.gmra.mrb[0].mxu0 %v376
        %v682 = vpop.f32.mrb[0].mxu0
        %v683 = vadd.f32 0.0, %v682
        %v684 = vpop.f32.mrb[0].mxu0
        %v685 = vpop.f32.mrb[0].mxu0
        %v686 = vadd.f32 0.0, %v685
        %v687 = vpop.f32.mrb[0].mxu0
        %688 = vmatprep.mubr.bf16.mxu0 0
        %689 = vmatmul.mubr.bf16.gmra.mrb[0].mxu0 %v377
        %v690 = vpop.f32.mrb[0].mxu0
        %v691 = vadd.f32 0.0, %v690
        %v692 = vpop.f32.mrb[0].mxu0
        %v693 = vpop.f32.mrb[0].mxu0
        %v694 = vadd.f32 0.0, %v693
        %v695 = vpop.f32.mrb[0].mxu0
        %696 = vmatprep.mubr.bf16.mxu0 0
        %697 = vmatmul.mubr.bf16.gmra.mrb[0].mxu0 %v378
        %v698 = vpop.f32.mrb[0].mxu0
        %v699 = vadd.f32 0.0, %v698
        %v700 = vpop.f32.mrb[0].mxu0
        %v701 = vpop.f32.mrb[0].mxu0
        %v702 = vadd.f32 0.0, %v701
        %v703 = vpop.f32.mrb[0].mxu0
        %704 = vmatprep.mubr.bf16.mxu0 0
        %705 = vmatmul.mubr.bf16.gmra.mrb[0].mxu0 %v379
        %v706 = vpop.f32.mrb[0].mxu0
        %v707 = vadd.f32 0.0, %v706
        %v708 = vpop.f32.mrb[0].mxu0
        %v709 = vpop.f32.mrb[0].mxu0
        %v710 = vadd.f32 0.0, %v709
        %v711 = vpop.f32.mrb[0].mxu0
        %712 = vmatprep.mubr.bf16.mxu0 0
        %713 = vmatmul.mubr.bf16.gmra.mrb[0].mxu0 %v380
        %v714 = vpop.f32.mrb[0].mxu0
        %v715 = vadd.f32 0.0, %v714
        %v716 = vpop.f32.mrb[0].mxu0
        %v717 = vpop.f32.mrb[0].mxu0
        %v718 = vadd.f32 0.0, %v717
        %v719 = vpop.f32.mrb[0].mxu0
        %720 = vmatprep.mubr.bf16.mxu0 0
        %721 = vmatmul.mubr.bf16.gmra.mrb[0].mxu0 %v381
        %v722 = vpop.f32.mrb[0].mxu0
        %v723 = vadd.f32 0.0, %v722
        %v724 = vpop.f32.mrb[0].mxu0
        %v725 = vpop.f32.mrb[0].mxu0
        %v726 = vadd.f32 0.0, %v725
        %v727 = vpop.f32.mrb[0].mxu0
        %728 = vmatprep.mubr.bf16.mxu0 0
        %729 = vmatmul.mubr.bf16.gmra.mrb[0].mxu0 %v382
        %v730 = vpop.f32.mrb[0].mxu0
        %v731 = vadd.f32 0.0, %v730
        %v732 = vpop.f32.mrb[0].mxu0
        %v733 = vpop.f32.mrb[0].mxu0
        %v734 = vpop.f32.mrb[0].mxu0
        %735 = vdwg.mxu0
        %v736 = vlaneseq
        %v737 = vshrl.u32 %v736, 7
        %v738 = vsub.s32 0, %v737
        %v739 = vrot.slane %v372, %v738
        %v740 = vadd.f32 %v546, %v739
        %v741 = vadd.f32 %v550, %v739
        %v742 = vadd.f32 %v556, %v739
        %v743 = vadd.f32 %v560, %v739
        %v744 = vadd.f32 %v566, %v739
        %v745 = vadd.f32 %v570, %v739
        %v746 = vadd.f32 %v576, %v739
        %v747 = vadd.f32 %v580, %v739
        %v748 = vadd.f32 %v586, %v739
        %v749 = vadd.f32 %v590, %v739
        %v750 = vadd.f32 %v596, %v739
        %v751 = vadd.f32 %v600, %v739
        %v752 = vadd.f32 %v606, %v739
        %v753 = vadd.f32 %v610, %v739
        %v754 = vadd.f32 %v616, %v739
        %v755 = vadd.f32 %v620, %v739
        %v756 = vadd.f32 %v626, %v739
        %v757 = vmul.f32 %v740, 0.17677669
        %v758 = vmul.f32 %v741, 0.17677669
        %v759 = vmul.f32 %v742, 0.17677669
        %v760 = vmul.f32 %v743, 0.17677669
        %v761 = vmul.f32 %v744, 0.17677669
        %v762 = vmul.f32 %v745, 0.17677669
        %v763 = vmul.f32 %v746, 0.17677669
        %v764 = vmul.f32 %v747, 0.17677669
        %v765 = vmul.f32 %v748, 0.17677669
        %v766 = vmul.f32 %v749, 0.17677669
        %v767 = vmul.f32 %v750, 0.17677669
        %v768 = vmul.f32 %v751, 0.17677669
        %v769 = vmul.f32 %v752, 0.17677669
        %v770 = vmul.f32 %v753, 0.17677669
        %v771 = vmul.f32 %v754, 0.17677669
        %v772 = vmul.f32 %v755, 0.17677669
        %v773 = vmul.f32 %v756, 0.17677669
        %v774 = vpack.c.bf16 %v758, %v757
        %v775 = vpack.c.bf16 %v760, %v759
        %v776 = vpack.c.bf16 %v762, %v761
        %v777 = vpack.c.bf16 %v764, %v763
        %v778 = vpack.c.bf16 %v766, %v765
        %v779 = vpack.c.bf16 %v768, %v767
        %v780 = vpack.c.bf16 %v770, %v769
        %v781 = vpack.c.bf16 %v772, %v771
        %v782 = vpack.c.bf16 %v773, %v773
        %v783 = vlaneseq
        %v784 = vshrl.u32 %v783, 7
        %v785 = vsub.s32 1, %v784
        %v786 = vrot.slane %v372, %v785
        %v787 = vadd.f32 %v548, %v786
        %v788 = vadd.f32 %v552, %v786
        %v789 = vadd.f32 %v558, %v786
        %v790 = vadd.f32 %v562, %v786
        %v791 = vadd.f32 %v568, %v786
        %v792 = vadd.f32 %v572, %v786
        %v793 = vadd.f32 %v578, %v786
        %v794 = vadd.f32 %v582, %v786
        %v795 = vadd.f32 %v588, %v786
        %v796 = vadd.f32 %v592, %v786
        %v797 = vadd.f32 %v598, %v786
        %v798 = vadd.f32 %v602, %v786
        %v799 = vadd.f32 %v608, %v786
        %v800 = vadd.f32 %v612, %v786
        %v801 = vadd.f32 %v618, %v786
        %v802 = vadd.f32 %v622, %v786
        %v803 = vadd.f32 %v628, %v786
        %v804 = vpack.c.bf16 %v788, %v787
        %v805 = vpack.c.bf16 %v790, %v789
        %v806 = vpack.c.bf16 %v792, %v791
        %v807 = vpack.c.bf16 %v794, %v793
        %v808 = vpack.c.bf16 %v796, %v795
        %v809 = vpack.c.bf16 %v798, %v797
        %v810 = vpack.c.bf16 %v800, %v799
        %v811 = vpack.c.bf16 %v802, %v801
        %v812 = vpack.c.bf16 %v803, %v803
        %v813 = vlaneseq
        %v814 = vshrl.u32 %v813, 7
        %v815 = vsub.s32 2, %v814
        %v816 = vrot.slane %v372, %v815
        %v817 = vadd.f32 %v667, %v816
        %v818 = vadd.f32 %v670, %v816
        %v819 = vadd.f32 %v675, %v816
        %v820 = vadd.f32 %v678, %v816
        %v821 = vadd.f32 %v683, %v816
        %v822 = vadd.f32 %v686, %v816
        %v823 = vadd.f32 %v691, %v816
        %v824 = vadd.f32 %v694, %v816
        %v825 = vadd.f32 %v699, %v816
        %v826 = vadd.f32 %v702, %v816
        %v827 = vadd.f32 %v707, %v816
        %v828 = vadd.f32 %v710, %v816
        %v829 = vadd.f32 %v715, %v816
        %v830 = vadd.f32 %v718, %v816
        %v831 = vadd.f32 %v723, %v816
        %v832 = vadd.f32 %v726, %v816
        %v833 = vadd.f32 %v731, %v816
        %v834 = vpack.c.bf16 %v818, %v817
        %v835 = vpack.c.bf16 %v820, %v819
        %v836 = vpack.c.bf16 %v822, %v821
        %v837 = vpack.c.bf16 %v824, %v823
        %v838 = vpack.c.bf16 %v826, %v825
        %v839 = vpack.c.bf16 %v828, %v827
        %v840 = vpack.c.bf16 %v830, %v829
        %v841 = vpack.c.bf16 %v832, %v831
        %v842 = vpack.c.bf16 %v833, %v833
        %852 = vrot.lane.b32.xlu0 %v774, 96
        %v853 = vpop.permute.xlu0 %852
        %854 = vrot.lane.b32.xlu0 %v775, 96
        %v855 = vpop.permute.xlu0 %854
        %856 = vrot.lane.b32.xlu0 %v776, 96
        %v857 = vpop.permute.xlu0 %856
        %858 = vrot.lane.b32.xlu0 %v777, 96
        %v859 = vpop.permute.xlu0 %858
        %860 = vrot.lane.b32.xlu0 %v778, 96
        %v861 = vpop.permute.xlu0 %860
        %862 = vrot.lane.b32.xlu0 %v779, 96
        %v863 = vpop.permute.xlu0 %862
        %864 = vrot.lane.b32.xlu0 %v780, 96
        %v865 = vpop.permute.xlu0 %864
        %866 = vrot.lane.b32.xlu0 %v781, 96
        %v867 = vpop.permute.xlu0 %866
        %868 = vrot.lane.b32.xlu0 %v782, 96
        %v869 = vpop.permute.xlu0 %868
        %870 = vrot.lane.b32.xlu0 %v774, 64
        %v871 = vpop.permute.xlu0 %870
        %872 = vrot.lane.b32.xlu0 %v775, 64
        %v873 = vpop.permute.xlu0 %872
        %874 = vrot.lane.b32.xlu0 %v776, 64
        %v875 = vpop.permute.xlu0 %874
        %876 = vrot.lane.b32.xlu0 %v777, 64
        %v877 = vpop.permute.xlu0 %876
        %878 = vrot.lane.b32.xlu0 %v778, 64
        %v879 = vpop.permute.xlu0 %878
        %880 = vrot.lane.b32.xlu0 %v779, 64
        %v881 = vpop.permute.xlu0 %880
        %882 = vrot.lane.b32.xlu0 %v780, 64
        %v883 = vpop.permute.xlu0 %882
        %884 = vrot.lane.b32.xlu0 %v781, 64
        %v885 = vpop.permute.xlu0 %884
        %886 = vrot.lane.b32.xlu0 %v782, 64
        %v887 = vpop.permute.xlu0 %886
        %888 = vrot.lane.b32.xlu0 %v774, 32
        %v889 = vpop.permute.xlu0 %888
        %890 = vrot.lane.b32.xlu0 %v775, 32
        %v891 = vpop.permute.xlu0 %890
        %892 = vrot.lane.b32.xlu0 %v776, 32
        %v893 = vpop.permute.xlu0 %892
        %894 = vrot.lane.b32.xlu0 %v777, 32
        %v895 = vpop.permute.xlu0 %894
        %896 = vrot.lane.b32.xlu0 %v778, 32
        %v897 = vpop.permute.xlu0 %896
        %898 = vrot.lane.b32.xlu0 %v779, 32
        %v899 = vpop.permute.xlu0 %898
        %900 = vrot.lane.b32.xlu0 %v780, 32
        %v901 = vpop.permute.xlu0 %900
        %902 = vrot.lane.b32.xlu0 %v781, 32
        %v903 = vpop.permute.xlu0 %902
        %904 = vrot.lane.b32.xlu0 %v782, 32
        %v905 = vpop.permute.xlu0 %904
        %915 = vrot.lane.b32.xlu0 %v804, 96
        %v916 = vpop.permute.xlu0 %915
        %917 = vrot.lane.b32.xlu0 %v805, 96
        %v918 = vpop.permute.xlu0 %917
        %919 = vrot.lane.b32.xlu0 %v806, 96
        %v920 = vpop.permute.xlu0 %919
        %921 = vrot.lane.b32.xlu0 %v807, 96
        %v922 = vpop.permute.xlu0 %921
        %923 = vrot.lane.b32.xlu0 %v808, 96
        %v924 = vpop.permute.xlu0 %923
        %925 = vrot.lane.b32.xlu0 %v809, 96
        %v926 = vpop.permute.xlu0 %925
        %927 = vrot.lane.b32.xlu0 %v810, 96
        %v928 = vpop.permute.xlu0 %927
        %929 = vrot.lane.b32.xlu0 %v811, 96
        %v930 = vpop.permute.xlu0 %929
        %931 = vrot.lane.b32.xlu0 %v812, 96
        %v932 = vpop.permute.xlu0 %931
        %933 = vrot.lane.b32.xlu0 %v804, 64
        %v934 = vpop.permute.xlu0 %933
        %935 = vrot.lane.b32.xlu0 %v805, 64
        %v936 = vpop.permute.xlu0 %935
        %937 = vrot.lane.b32.xlu0 %v806, 64
        %v938 = vpop.permute.xlu0 %937
        %939 = vrot.lane.b32.xlu0 %v807, 64
        %v940 = vpop.permute.xlu0 %939
        %941 = vrot.lane.b32.xlu0 %v808, 64
        %v942 = vpop.permute.xlu0 %941
        %943 = vrot.lane.b32.xlu0 %v809, 64
        %v944 = vpop.permute.xlu0 %943
        %945 = vrot.lane.b32.xlu0 %v810, 64
        %v946 = vpop.permute.xlu0 %945
        %947 = vrot.lane.b32.xlu0 %v811, 64
        %v948 = vpop.permute.xlu0 %947
        %949 = vrot.lane.b32.xlu0 %v812, 64
        %v950 = vpop.permute.xlu0 %949
        %951 = vrot.lane.b32.xlu0 %v804, 32
        %v952 = vpop.permute.xlu0 %951
        %953 = vrot.lane.b32.xlu0 %v805, 32
        %v954 = vpop.permute.xlu0 %953
        %955 = vrot.lane.b32.xlu0 %v806, 32
        %v956 = vpop.permute.xlu0 %955
        %957 = vrot.lane.b32.xlu0 %v807, 32
        %v958 = vpop.permute.xlu0 %957
        %959 = vrot.lane.b32.xlu0 %v808, 32
        %v960 = vpop.permute.xlu0 %959
        %961 = vrot.lane.b32.xlu0 %v809, 32
        %v962 = vpop.permute.xlu0 %961
        %963 = vrot.lane.b32.xlu0 %v810, 32
        %v964 = vpop.permute.xlu0 %963
        %965 = vrot.lane.b32.xlu0 %v811, 32
        %v966 = vpop.permute.xlu0 %965
        %967 = vrot.lane.b32.xlu0 %v812, 32
        %v968 = vpop.permute.xlu0 %967
        %978 = vrot.lane.b32.xlu0 %v834, 96
        %v979 = vpop.permute.xlu0 %978
        %980 = vrot.lane.b32.xlu0 %v835, 96
        %v981 = vpop.permute.xlu0 %980
        %982 = vrot.lane.b32.xlu0 %v836, 96
        %v983 = vpop.permute.xlu0 %982
        %984 = vrot.lane.b32.xlu0 %v837, 96
        %v985 = vpop.permute.xlu0 %984
        %986 = vrot.lane.b32.xlu0 %v838, 96
        %v987 = vpop.permute.xlu0 %986
        %988 = vrot.lane.b32.xlu0 %v839, 96
        %v989 = vpop.permute.xlu0 %988
        %990 = vrot.lane.b32.xlu0 %v840, 96
        %v991 = vpop.permute.xlu0 %990
        %992 = vrot.lane.b32.xlu0 %v841, 96
        %v993 = vpop.permute.xlu0 %992
        %994 = vrot.lane.b32.xlu0 %v842, 96
        %v995 = vpop.permute.xlu0 %994
        %1004 = vrot.lane.b32.xlu0 %v834, 64
        %v1005 = vpop.permute.xlu0 %1004
        %1006 = vrot.lane.b32.xlu0 %v835, 64
        %v1007 = vpop.permute.xlu0 %1006
        %1008 = vrot.lane.b32.xlu0 %v836, 64
        %v1009 = vpop.permute.xlu0 %1008
        %1010 = vrot.lane.b32.xlu0 %v837, 64
        %v1011 = vpop.permute.xlu0 %1010
        %1012 = vrot.lane.b32.xlu0 %v838, 64
        %v1013 = vpop.permute.xlu0 %1012
        %1014 = vrot.lane.b32.xlu0 %v839, 64
        %v1015 = vpop.permute.xlu0 %1014
        %1016 = vrot.lane.b32.xlu0 %v840, 64
        %v1017 = vpop.permute.xlu0 %1016
        %1018 = vrot.lane.b32.xlu0 %v841, 64
        %v1019 = vpop.permute.xlu0 %1018
        %1020 = vrot.lane.b32.xlu0 %v842, 64
        %v1021 = vpop.permute.xlu0 %1020
        %1030 = vrot.lane.b32.xlu0 %v834, 32
        %v1031 = vpop.permute.xlu0 %1030
        %1032 = vrot.lane.b32.xlu0 %v835, 32
        %v1033 = vpop.permute.xlu0 %1032
        %1034 = vrot.lane.b32.xlu0 %v836, 32
        %v1035 = vpop.permute.xlu0 %1034
        %1036 = vrot.lane.b32.xlu0 %v837, 32
        %v1037 = vpop.permute.xlu0 %1036
        %1038 = vrot.lane.b32.xlu0 %v838, 32
        %v1039 = vpop.permute.xlu0 %1038
        %1040 = vrot.lane.b32.xlu0 %v839, 32
        %v1041 = vpop.permute.xlu0 %1040
        %1042 = vrot.lane.b32.xlu0 %v840, 32
        %v1043 = vpop.permute.xlu0 %1042
        %1044 = vrot.lane.b32.xlu0 %v841, 32
        %v1045 = vpop.permute.xlu0 %1044
        %1046 = vrot.lane.b32.xlu0 %v842, 32
        %v1047 = vpop.permute.xlu0 %1046
        %vm1056 = vcmask 261120
        %v1058 = vsel %vm1056, %v774, 0
        %v1061 = vsel %vm1056, %v775, 0
        %v1064 = vsel %vm1056, %v776, 0
        %v1067 = vsel %vm1056, %v777, 0
        %v1070 = vsel %vm1056, %v778, 0
        %v1073 = vsel %vm1056, %v779, 0
        %v1076 = vsel %vm1056, %v780, 0
        %v1079 = vsel %vm1056, %v781, 0
        %v1082 = vsel %vm1056, %v782, 0
        %v1085 = vsel %vm1056, %v804, 0
        %v1088 = vsel %vm1056, %v805, 0
        %v1091 = vsel %vm1056, %v806, 0
        %v1094 = vsel %vm1056, %v807, 0
        %v1097 = vsel %vm1056, %v808, 0
        %v1100 = vsel %vm1056, %v809, 0
        %v1103 = vsel %vm1056, %v810, 0
        %v1106 = vsel %vm1056, %v811, 0
        %v1109 = vsel %vm1056, %v812, 0
        %1111 = vmatprep.subr.bf16.mxu0 0
        %1112 = vmatpush1.bf16.xpose.msra.mxu0 %v1085
        %1113 = vmatprep.subr.bf16.mxu0 0
        %1114 = vmatpush1.bf16.xpose.msra.mxu0 %v1088
        %1115 = vmatprep.subr.bf16.mxu0 0
        %1116 = vmatpush1.bf16.xpose.msra.mxu0 %v1091
        %1117 = vmatprep.subr.bf16.mxu0 0
        %1118 = vmatpush1.bf16.xpose.msra.mxu0 %v1094
        %1119 = vmatprep.subr.bf16.mxu0 0
        %1120 = vmatpush1.bf16.xpose.msra.mxu0 %v1097
        %1121 = vmatprep.subr.bf16.mxu0 0
        %1122 = vmatpush1.bf16.xpose.msra.mxu0 %v1100
        %1123 = vmatprep.subr.bf16.mxu0 0
        %1124 = vmatpush1.bf16.xpose.msra.mxu0 %v1103
        %1125 = vmatprep.subr.bf16.mxu0 0
        %1126 = vmatpush1.bf16.xpose.msra.mxu0 %v1106
        %1127 = vmatprep.subr.bf16.mxu0 0
        %1128 = vmatpush1.bf16.xpose.msra.mxu0 %v1109
        %1129 = vmatprep.subr.bf16.mxu0 0
        %1130 = vmatpush1.bf16.xpose.msra.mxu0 0
        %1131 = vmatprep.subr.bf16.mxu0 0
        %1132 = vmatpush1.bf16.xpose.msra.mxu0 0
        %1133 = vmatprep.subr.bf16.mxu0 0
        %1134 = vmatpush1.bf16.xpose.msra.mxu0 0
        %1135 = vmatprep.subr.bf16.mxu0 0
        %1136 = vmatpush1.bf16.xpose.msra.mxu0 0
        %1137 = vmatprep.subr.bf16.mxu0 0
        %1138 = vmatpush1.bf16.xpose.msra.mxu0 0
        %1139 = vmatprep.subr.bf16.mxu0 0
        %1140 = vmatpush1.bf16.xpose.msra.mxu0 0
        %1141 = vmatprep.subr.bf16.mxu0 0
        %1142 = vmatpush1.bf16.xpose.msra.mxu0 0
        %1143 = vmatprep.mubr.bf16.mxu0 0
        %1144 = vmatmul.mubr.bf16.gmra.mrb[0].mxu0 %v1058
        %v1145 = vpop.f32.mrb[0].mxu0
        %v1146 = vadd.f32 0.0, %v1145
        %v1147 = vpop.f32.mrb[0].mxu0
        %v1148 = vadd.f32 0.0, %v1147
        %v1149 = vpop.f32.mrb[0].mxu0
        %v1150 = vadd.f32 0.0, %v1149
        %v1151 = vpop.f32.mrb[0].mxu0
        %v1152 = vadd.f32 0.0, %v1151
        %1153 = vmatprep.mubr.bf16.mxu0 0
        %1154 = vmatmul.mubr.bf16.gmra.mrb[0].mxu0 %v1061
        %v1155 = vpop.f32.mrb[0].mxu0
        %v1156 = vadd.f32 0.0, %v1155
        %v1157 = vpop.f32.mrb[0].mxu0
        %v1158 = vadd.f32 0.0, %v1157
        %v1159 = vpop.f32.mrb[0].mxu0
        %v1160 = vadd.f32 0.0, %v1159
        %v1161 = vpop.f32.mrb[0].mxu0
        %v1162 = vadd.f32 0.0, %v1161
        %1163 = vmatprep.mubr.bf16.mxu0 0
        %1164 = vmatmul.mubr.bf16.gmra.mrb[0].mxu0 %v1064
        %v1165 = vpop.f32.mrb[0].mxu0
        %v1166 = vadd.f32 0.0, %v1165
        %v1167 = vpop.f32.mrb[0].mxu0
        %v1168 = vadd.f32 0.0, %v1167
        %v1169 = vpop.f32.mrb[0].mxu0
        %v1170 = vadd.f32 0.0, %v1169
        %v1171 = vpop.f32.mrb[0].mxu0
        %v1172 = vadd.f32 0.0, %v1171
        %1173 = vmatprep.mubr.bf16.mxu0 0
        %1174 = vmatmul.mubr.bf16.gmra.mrb[0].mxu0 %v1067
        %v1175 = vpop.f32.mrb[0].mxu0
        %v1176 = vadd.f32 0.0, %v1175
        %v1177 = vpop.f32.mrb[0].mxu0
        %v1178 = vadd.f32 0.0, %v1177
        %v1179 = vpop.f32.mrb[0].mxu0
        %v1180 = vadd.f32 0.0, %v1179
        %v1181 = vpop.f32.mrb[0].mxu0
        %v1182 = vadd.f32 0.0, %v1181
        %1183 = vmatprep.mubr.bf16.mxu0 0
        %1184 = vmatmul.mubr.bf16.gmra.mrb[0].mxu0 %v1070
        %v1185 = vpop.f32.mrb[0].mxu0
        %v1186 = vadd.f32 0.0, %v1185
        %v1187 = vpop.f32.mrb[0].mxu0
        %v1188 = vadd.f32 0.0, %v1187
        %v1189 = vpop.f32.mrb[0].mxu0
        %v1190 = vadd.f32 0.0, %v1189
        %v1191 = vpop.f32.mrb[0].mxu0
        %v1192 = vadd.f32 0.0, %v1191
        %1193 = vmatprep.mubr.bf16.mxu0 0
        %1194 = vmatmul.mubr.bf16.gmra.mrb[0].mxu0 %v1073
        %v1195 = vpop.f32.mrb[0].mxu0
        %v1196 = vadd.f32 0.0, %v1195
        %v1197 = vpop.f32.mrb[0].mxu0
        %v1198 = vadd.f32 0.0, %v1197
        %v1199 = vpop.f32.mrb[0].mxu0
        %v1200 = vadd.f32 0.0, %v1199
        %v1201 = vpop.f32.mrb[0].mxu0
        %v1202 = vadd.f32 0.0, %v1201
        %1203 = vmatprep.mubr.bf16.mxu0 0
        %1204 = vmatmul.mubr.bf16.gmra.mrb[0].mxu0 %v1076
        %v1205 = vpop.f32.mrb[0].mxu0
        %v1206 = vadd.f32 0.0, %v1205
        %v1207 = vpop.f32.mrb[0].mxu0
        %v1208 = vadd.f32 0.0, %v1207
        %v1209 = vpop.f32.mrb[0].mxu0
        %v1210 = vadd.f32 0.0, %v1209
        %v1211 = vpop.f32.mrb[0].mxu0
        %v1212 = vadd.f32 0.0, %v1211
        %1213 = vmatprep.mubr.bf16.mxu0 0
        %1214 = vmatmul.mubr.bf16.gmra.mrb[0].mxu0 %v1079
        %v1215 = vpop.f32.mrb[0].mxu0
        %v1216 = vadd.f32 0.0, %v1215
        %v1217 = vpop.f32.mrb[0].mxu0
        %v1218 = vadd.f32 0.0, %v1217
        %v1219 = vpop.f32.mrb[0].mxu0
        %v1220 = vadd.f32 0.0, %v1219
        %v1221 = vpop.f32.mrb[0].mxu0
        %v1222 = vadd.f32 0.0, %v1221
        %1223 = vmatprep.mubr.bf16.mxu0 0
        %1224 = vmatmul.mubr.bf16.gmra.mrb[0].mxu0 %v1082
        %v1225 = vpop.f32.mrb[0].mxu0
        %v1226 = vadd.f32 0.0, %v1225
        %v1227 = vpop.f32.mrb[0].mxu0
        %v1228 = vadd.f32 0.0, %v1227
        %v1229 = vpop.f32.mrb[0].mxu0
        %v1230 = vpop.f32.mrb[0].mxu0
        %1231 = vdwg.mxu0
        %v1233 = vsel %vm1056, %v853, 0
        %v1236 = vsel %vm1056, %v855, 0
        %v1239 = vsel %vm1056, %v857, 0
        %v1242 = vsel %vm1056, %v859, 0
        %v1245 = vsel %vm1056, %v861, 0
        %v1248 = vsel %vm1056, %v863, 0
        %v1251 = vsel %vm1056, %v865, 0
        %v1254 = vsel %vm1056, %v867, 0
        %v1257 = vsel %vm1056, %v869, 0
        %v1260 = vsel %vm1056, %v916, 0
        %v1263 = vsel %vm1056, %v918, 0
        %v1266 = vsel %vm1056, %v920, 0
        %v1269 = vsel %vm1056, %v922, 0
        %v1272 = vsel %vm1056, %v924, 0
        %v1275 = vsel %vm1056, %v926, 0
        %v1278 = vsel %vm1056, %v928, 0
        %v1281 = vsel %vm1056, %v930, 0
        %v1284 = vsel %vm1056, %v932, 0
        %1286 = vmatprep.subr.bf16.mxu0 0
        %1287 = vmatpush1.bf16.xpose.msra.mxu0 %v1260
        %1288 = vmatprep.subr.bf16.mxu0 0
        %1289 = vmatpush1.bf16.xpose.msra.mxu0 %v1263
        %1290 = vmatprep.subr.bf16.mxu0 0
        %1291 = vmatpush1.bf16.xpose.msra.mxu0 %v1266
        %1292 = vmatprep.subr.bf16.mxu0 0
        %1293 = vmatpush1.bf16.xpose.msra.mxu0 %v1269
        %1294 = vmatprep.subr.bf16.mxu0 0
        %1295 = vmatpush1.bf16.xpose.msra.mxu0 %v1272
        %1296 = vmatprep.subr.bf16.mxu0 0
        %1297 = vmatpush1.bf16.xpose.msra.mxu0 %v1275
        %1298 = vmatprep.subr.bf16.mxu0 0
        %1299 = vmatpush1.bf16.xpose.msra.mxu0 %v1278
        %1300 = vmatprep.subr.bf16.mxu0 0
        %1301 = vmatpush1.bf16.xpose.msra.mxu0 %v1281
        %1302 = vmatprep.subr.bf16.mxu0 0
        %1303 = vmatpush1.bf16.xpose.msra.mxu0 %v1284
        %1304 = vmatprep.subr.bf16.mxu0 0
        %1305 = vmatpush1.bf16.xpose.msra.mxu0 0
        %1306 = vmatprep.subr.bf16.mxu0 0
        %1307 = vmatpush1.bf16.xpose.msra.mxu0 0
        %1308 = vmatprep.subr.bf16.mxu0 0
        %1309 = vmatpush1.bf16.xpose.msra.mxu0 0
        %1310 = vmatprep.subr.bf16.mxu0 0
        %1311 = vmatpush1.bf16.xpose.msra.mxu0 0
        %1312 = vmatprep.subr.bf16.mxu0 0
        %1313 = vmatpush1.bf16.xpose.msra.mxu0 0
        %1314 = vmatprep.subr.bf16.mxu0 0
        %1315 = vmatpush1.bf16.xpose.msra.mxu0 0
        %1316 = vmatprep.subr.bf16.mxu0 0
        %1317 = vmatpush1.bf16.xpose.msra.mxu0 0
        %1318 = vmatprep.mubr.bf16.mxu0 0
        %1319 = vmatmul.mubr.bf16.gmra.mrb[0].mxu0 %v1233
        %v1320 = vpop.f32.mrb[0].mxu0
        %v1321 = vadd.f32 0.0, %v1320
        %v1322 = vpop.f32.mrb[0].mxu0
        %v1323 = vadd.f32 0.0, %v1322
        %v1324 = vpop.f32.mrb[0].mxu0
        %v1325 = vadd.f32 0.0, %v1324
        %v1326 = vpop.f32.mrb[0].mxu0
        %v1327 = vadd.f32 0.0, %v1326
        %1328 = vmatprep.mubr.bf16.mxu0 0
        %1329 = vmatmul.mubr.bf16.gmra.mrb[0].mxu0 %v1236
        %v1330 = vpop.f32.mrb[0].mxu0
        %v1331 = vadd.f32 0.0, %v1330
        %v1332 = vpop.f32.mrb[0].mxu0
        %v1333 = vadd.f32 0.0, %v1332
        %v1334 = vpop.f32.mrb[0].mxu0
        %v1335 = vadd.f32 0.0, %v1334
        %v1336 = vpop.f32.mrb[0].mxu0
        %v1337 = vadd.f32 0.0, %v1336
        %1338 = vmatprep.mubr.bf16.mxu0 0
        %1339 = vmatmul.mubr.bf16.gmra.mrb[0].mxu0 %v1239
        %v1340 = vpop.f32.mrb[0].mxu0
        %v1341 = vadd.f32 0.0, %v1340
        %v1342 = vpop.f32.mrb[0].mxu0
        %v1343 = vadd.f32 0.0, %v1342
        %v1344 = vpop.f32.mrb[0].mxu0
        %v1345 = vadd.f32 0.0, %v1344
        %v1346 = vpop.f32.mrb[0].mxu0
        %v1347 = vadd.f32 0.0, %v1346
        %1348 = vmatprep.mubr.bf16.mxu0 0
        %1349 = vmatmul.mubr.bf16.gmra.mrb[0].mxu0 %v1242
        %v1350 = vpop.f32.mrb[0].mxu0
        %v1351 = vadd.f32 0.0, %v1350
        %v1352 = vpop.f32.mrb[0].mxu0
        %v1353 = vadd.f32 0.0, %v1352
        %v1354 = vpop.f32.mrb[0].mxu0
        %v1355 = vadd.f32 0.0, %v1354
        %v1356 = vpop.f32.mrb[0].mxu0
        %v1357 = vadd.f32 0.0, %v1356
        %1358 = vmatprep.mubr.bf16.mxu0 0
        %1359 = vmatmul.mubr.bf16.gmra.mrb[0].mxu0 %v1245
        %v1360 = vpop.f32.mrb[0].mxu0
        %v1361 = vadd.f32 0.0, %v1360
        %v1362 = vpop.f32.mrb[0].mxu0
        %v1363 = vadd.f32 0.0, %v1362
        %v1364 = vpop.f32.mrb[0].mxu0
        %v1365 = vadd.f32 0.0, %v1364
        %v1366 = vpop.f32.mrb[0].mxu0
        %v1367 = vadd.f32 0.0, %v1366
        %1368 = vmatprep.mubr.bf16.mxu0 0
        %1369 = vmatmul.mubr.bf16.gmra.mrb[0].mxu0 %v1248
        %v1370 = vpop.f32.mrb[0].mxu0
        %v1371 = vadd.f32 0.0, %v1370
        %v1372 = vpop.f32.mrb[0].mxu0
        %v1373 = vadd.f32 0.0, %v1372
        %v1374 = vpop.f32.mrb[0].mxu0
        %v1375 = vadd.f32 0.0, %v1374
        %v1376 = vpop.f32.mrb[0].mxu0
        %v1377 = vadd.f32 0.0, %v1376
        %1378 = vmatprep.mubr.bf16.mxu0 0
        %1379 = vmatmul.mubr.bf16.gmra.mrb[0].mxu0 %v1251
        %v1380 = vpop.f32.mrb[0].mxu0
        %v1381 = vadd.f32 0.0, %v1380
        %v1382 = vpop.f32.mrb[0].mxu0
        %v1383 = vadd.f32 0.0, %v1382
        %v1384 = vpop.f32.mrb[0].mxu0
        %v1385 = vadd.f32 0.0, %v1384
        %v1386 = vpop.f32.mrb[0].mxu0
        %v1387 = vadd.f32 0.0, %v1386
        %1388 = vmatprep.mubr.bf16.mxu0 0
        %1389 = vmatmul.mubr.bf16.gmra.mrb[0].mxu0 %v1254
        %v1390 = vpop.f32.mrb[0].mxu0
        %v1391 = vadd.f32 0.0, %v1390
        %v1392 = vpop.f32.mrb[0].mxu0
        %v1393 = vadd.f32 0.0, %v1392
        %v1394 = vpop.f32.mrb[0].mxu0
        %v1395 = vadd.f32 0.0, %v1394
        %v1396 = vpop.f32.mrb[0].mxu0
        %v1397 = vadd.f32 0.0, %v1396
        %1398 = vmatprep.mubr.bf16.mxu0 0
        %1399 = vmatmul.mubr.bf16.gmra.mrb[0].mxu0 %v1257
        %v1400 = vpop.f32.mrb[0].mxu0
        %v1401 = vadd.f32 0.0, %v1400
        %v1402 = vpop.f32.mrb[0].mxu0
        %v1403 = vadd.f32 0.0, %v1402
        %v1404 = vpop.f32.mrb[0].mxu0
        %v1405 = vpop.f32.mrb[0].mxu0
        %1406 = vdwg.mxu0
        %v1408 = vsel %vm1056, %v871, 0
        %v1411 = vsel %vm1056, %v873, 0
        %v1414 = vsel %vm1056, %v875, 0
        %v1417 = vsel %vm1056, %v877, 0
        %v1420 = vsel %vm1056, %v879, 0
        %v1423 = vsel %vm1056, %v881, 0
        %v1426 = vsel %vm1056, %v883, 0
        %v1429 = vsel %vm1056, %v885, 0
        %v1432 = vsel %vm1056, %v887, 0
        %v1435 = vsel %vm1056, %v934, 0
        %v1438 = vsel %vm1056, %v936, 0
        %v1441 = vsel %vm1056, %v938, 0
        %v1444 = vsel %vm1056, %v940, 0
        %v1447 = vsel %vm1056, %v942, 0
        %v1450 = vsel %vm1056, %v944, 0
        %v1453 = vsel %vm1056, %v946, 0
        %v1456 = vsel %vm1056, %v948, 0
        %v1459 = vsel %vm1056, %v950, 0
        %1461 = vmatprep.subr.bf16.mxu0 0
        %1462 = vmatpush1.bf16.xpose.msra.mxu0 %v1435
        %1463 = vmatprep.subr.bf16.mxu0 0
        %1464 = vmatpush1.bf16.xpose.msra.mxu0 %v1438
        %1465 = vmatprep.subr.bf16.mxu0 0
        %1466 = vmatpush1.bf16.xpose.msra.mxu0 %v1441
        %1467 = vmatprep.subr.bf16.mxu0 0
        %1468 = vmatpush1.bf16.xpose.msra.mxu0 %v1444
        %1469 = vmatprep.subr.bf16.mxu0 0
        %1470 = vmatpush1.bf16.xpose.msra.mxu0 %v1447
        %1471 = vmatprep.subr.bf16.mxu0 0
        %1472 = vmatpush1.bf16.xpose.msra.mxu0 %v1450
        %1473 = vmatprep.subr.bf16.mxu0 0
        %1474 = vmatpush1.bf16.xpose.msra.mxu0 %v1453
        %1475 = vmatprep.subr.bf16.mxu0 0
        %1476 = vmatpush1.bf16.xpose.msra.mxu0 %v1456
        %1477 = vmatprep.subr.bf16.mxu0 0
        %1478 = vmatpush1.bf16.xpose.msra.mxu0 %v1459
        %1479 = vmatprep.subr.bf16.mxu0 0
        %1480 = vmatpush1.bf16.xpose.msra.mxu0 0
        %1481 = vmatprep.subr.bf16.mxu0 0
        %1482 = vmatpush1.bf16.xpose.msra.mxu0 0
        %1483 = vmatprep.subr.bf16.mxu0 0
        %1484 = vmatpush1.bf16.xpose.msra.mxu0 0
        %1485 = vmatprep.subr.bf16.mxu0 0
        %1486 = vmatpush1.bf16.xpose.msra.mxu0 0
        %1487 = vmatprep.subr.bf16.mxu0 0
        %1488 = vmatpush1.bf16.xpose.msra.mxu0 0
        %1489 = vmatprep.subr.bf16.mxu0 0
        %1490 = vmatpush1.bf16.xpose.msra.mxu0 0
        %1491 = vmatprep.subr.bf16.mxu0 0
        %1492 = vmatpush1.bf16.xpose.msra.mxu0 0
        %1493 = vmatprep.mubr.bf16.mxu0 0
        %1494 = vmatmul.mubr.bf16.gmra.mrb[0].mxu0 %v1408
        %v1495 = vpop.f32.mrb[0].mxu0
        %v1496 = vadd.f32 0.0, %v1495
        %v1497 = vpop.f32.mrb[0].mxu0
        %v1498 = vadd.f32 0.0, %v1497
        %v1499 = vpop.f32.mrb[0].mxu0
        %v1500 = vadd.f32 0.0, %v1499
        %v1501 = vpop.f32.mrb[0].mxu0
        %v1502 = vadd.f32 0.0, %v1501
        %1503 = vmatprep.mubr.bf16.mxu0 0
        %1504 = vmatmul.mubr.bf16.gmra.mrb[0].mxu0 %v1411
        %v1505 = vpop.f32.mrb[0].mxu0
        %v1506 = vadd.f32 0.0, %v1505
        %v1507 = vpop.f32.mrb[0].mxu0
        %v1508 = vadd.f32 0.0, %v1507
        %v1509 = vpop.f32.mrb[0].mxu0
        %v1510 = vadd.f32 0.0, %v1509
        %v1511 = vpop.f32.mrb[0].mxu0
        %v1512 = vadd.f32 0.0, %v1511
        %1513 = vmatprep.mubr.bf16.mxu0 0
        %1514 = vmatmul.mubr.bf16.gmra.mrb[0].mxu0 %v1414
        %v1515 = vpop.f32.mrb[0].mxu0
        %v1516 = vadd.f32 0.0, %v1515
        %v1517 = vpop.f32.mrb[0].mxu0
        %v1518 = vadd.f32 0.0, %v1517
        %v1519 = vpop.f32.mrb[0].mxu0
        %v1520 = vadd.f32 0.0, %v1519
        %v1521 = vpop.f32.mrb[0].mxu0
        %v1522 = vadd.f32 0.0, %v1521
        %1523 = vmatprep.mubr.bf16.mxu0 0
        %1524 = vmatmul.mubr.bf16.gmra.mrb[0].mxu0 %v1417
        %v1525 = vpop.f32.mrb[0].mxu0
        %v1526 = vadd.f32 0.0, %v1525
        %v1527 = vpop.f32.mrb[0].mxu0
        %v1528 = vadd.f32 0.0, %v1527
        %v1529 = vpop.f32.mrb[0].mxu0
        %v1530 = vadd.f32 0.0, %v1529
        %v1531 = vpop.f32.mrb[0].mxu0
        %v1532 = vadd.f32 0.0, %v1531
        %1533 = vmatprep.mubr.bf16.mxu0 0
        %1534 = vmatmul.mubr.bf16.gmra.mrb[0].mxu0 %v1420
        %v1535 = vpop.f32.mrb[0].mxu0
        %v1536 = vadd.f32 0.0, %v1535
        %v1537 = vpop.f32.mrb[0].mxu0
        %v1538 = vadd.f32 0.0, %v1537
        %v1539 = vpop.f32.mrb[0].mxu0
        %v1540 = vadd.f32 0.0, %v1539
        %v1541 = vpop.f32.mrb[0].mxu0
        %v1542 = vadd.f32 0.0, %v1541
        %1543 = vmatprep.mubr.bf16.mxu0 0
        %1544 = vmatmul.mubr.bf16.gmra.mrb[0].mxu0 %v1423
        %v1545 = vpop.f32.mrb[0].mxu0
        %v1546 = vadd.f32 0.0, %v1545
        %v1547 = vpop.f32.mrb[0].mxu0
        %v1548 = vadd.f32 0.0, %v1547
        %v1549 = vpop.f32.mrb[0].mxu0
        %v1550 = vadd.f32 0.0, %v1549
        %v1551 = vpop.f32.mrb[0].mxu0
        %v1552 = vadd.f32 0.0, %v1551
        %1553 = vmatprep.mubr.bf16.mxu0 0
        %1554 = vmatmul.mubr.bf16.gmra.mrb[0].mxu0 %v1426
        %v1555 = vpop.f32.mrb[0].mxu0
        %v1556 = vadd.f32 0.0, %v1555
        %v1557 = vpop.f32.mrb[0].mxu0
        %v1558 = vadd.f32 0.0, %v1557
        %v1559 = vpop.f32.mrb[0].mxu0
        %v1560 = vadd.f32 0.0, %v1559
        %v1561 = vpop.f32.mrb[0].mxu0
        %v1562 = vadd.f32 0.0, %v1561
        %1563 = vmatprep.mubr.bf16.mxu0 0
        %1564 = vmatmul.mubr.bf16.gmra.mrb[0].mxu0 %v1429
        %v1565 = vpop.f32.mrb[0].mxu0
        %v1566 = vadd.f32 0.0, %v1565
        %v1567 = vpop.f32.mrb[0].mxu0
        %v1568 = vadd.f32 0.0, %v1567
        %v1569 = vpop.f32.mrb[0].mxu0
        %v1570 = vadd.f32 0.0, %v1569
        %v1571 = vpop.f32.mrb[0].mxu0
        %v1572 = vadd.f32 0.0, %v1571
        %1573 = vmatprep.mubr.bf16.mxu0 0
        %1574 = vmatmul.mubr.bf16.gmra.mrb[0].mxu0 %v1432
        %v1575 = vpop.f32.mrb[0].mxu0
        %v1576 = vadd.f32 0.0, %v1575
        %v1577 = vpop.f32.mrb[0].mxu0
        %v1578 = vadd.f32 0.0, %v1577
        %v1579 = vpop.f32.mrb[0].mxu0
        %v1580 = vpop.f32.mrb[0].mxu0
        %1581 = vdwg.mxu0
        %v1583 = vsel %vm1056, %v889, 0
        %v1586 = vsel %vm1056, %v891, 0
        %v1589 = vsel %vm1056, %v893, 0
        %v1592 = vsel %vm1056, %v895, 0
        %v1595 = vsel %vm1056, %v897, 0
        %v1598 = vsel %vm1056, %v899, 0
        %v1601 = vsel %vm1056, %v901, 0
        %v1604 = vsel %vm1056, %v903, 0
        %v1607 = vsel %vm1056, %v905, 0
        %v1610 = vsel %vm1056, %v952, 0
        %v1613 = vsel %vm1056, %v954, 0
        %v1616 = vsel %vm1056, %v956, 0
        %v1619 = vsel %vm1056, %v958, 0
        %v1622 = vsel %vm1056, %v960, 0
        %v1625 = vsel %vm1056, %v962, 0
        %v1628 = vsel %vm1056, %v964, 0
        %v1631 = vsel %vm1056, %v966, 0
        %v1634 = vsel %vm1056, %v968, 0
        %1636 = vmatprep.subr.bf16.mxu0 0
        %1637 = vmatpush1.bf16.xpose.msra.mxu0 %v1610
        %1638 = vmatprep.subr.bf16.mxu0 0
        %1639 = vmatpush1.bf16.xpose.msra.mxu0 %v1613
        %1640 = vmatprep.subr.bf16.mxu0 0
        %1641 = vmatpush1.bf16.xpose.msra.mxu0 %v1616
        %1642 = vmatprep.subr.bf16.mxu0 0
        %1643 = vmatpush1.bf16.xpose.msra.mxu0 %v1619
        %1644 = vmatprep.subr.bf16.mxu0 0
        %1645 = vmatpush1.bf16.xpose.msra.mxu0 %v1622
        %1646 = vmatprep.subr.bf16.mxu0 0
        %1647 = vmatpush1.bf16.xpose.msra.mxu0 %v1625
        %1648 = vmatprep.subr.bf16.mxu0 0
        %1649 = vmatpush1.bf16.xpose.msra.mxu0 %v1628
        %1650 = vmatprep.subr.bf16.mxu0 0
        %1651 = vmatpush1.bf16.xpose.msra.mxu0 %v1631
        %1652 = vmatprep.subr.bf16.mxu0 0
        %1653 = vmatpush1.bf16.xpose.msra.mxu0 %v1634
        %1654 = vmatprep.subr.bf16.mxu0 0
        %1655 = vmatpush1.bf16.xpose.msra.mxu0 0
        %1656 = vmatprep.subr.bf16.mxu0 0
        %1657 = vmatpush1.bf16.xpose.msra.mxu0 0
        %1658 = vmatprep.subr.bf16.mxu0 0
        %1659 = vmatpush1.bf16.xpose.msra.mxu0 0
        %1660 = vmatprep.subr.bf16.mxu0 0
        %1661 = vmatpush1.bf16.xpose.msra.mxu0 0
        %1662 = vmatprep.subr.bf16.mxu0 0
        %1663 = vmatpush1.bf16.xpose.msra.mxu0 0
        %1664 = vmatprep.subr.bf16.mxu0 0
        %1665 = vmatpush1.bf16.xpose.msra.mxu0 0
        %1666 = vmatprep.subr.bf16.mxu0 0
        %1667 = vmatpush1.bf16.xpose.msra.mxu0 0
        %1668 = vmatprep.mubr.bf16.mxu0 0
        %1669 = vmatmul.mubr.bf16.gmra.mrb[0].mxu0 %v1583
        %v1670 = vpop.f32.mrb[0].mxu0
        %v1671 = vadd.f32 0.0, %v1670
        %v1672 = vpop.f32.mrb[0].mxu0
        %v1673 = vadd.f32 0.0, %v1672
        %v1674 = vpop.f32.mrb[0].mxu0
        %v1675 = vadd.f32 0.0, %v1674
        %v1676 = vpop.f32.mrb[0].mxu0
        %v1677 = vadd.f32 0.0, %v1676
        %1678 = vmatprep.mubr.bf16.mxu0 0
        %1679 = vmatmul.mubr.bf16.gmra.mrb[0].mxu0 %v1586
        %v1680 = vpop.f32.mrb[0].mxu0
        %v1681 = vadd.f32 0.0, %v1680
        %v1682 = vpop.f32.mrb[0].mxu0
        %v1683 = vadd.f32 0.0, %v1682
        %v1684 = vpop.f32.mrb[0].mxu0
        %v1685 = vadd.f32 0.0, %v1684
        %v1686 = vpop.f32.mrb[0].mxu0
        %v1687 = vadd.f32 0.0, %v1686
        %1688 = vmatprep.mubr.bf16.mxu0 0
        %1689 = vmatmul.mubr.bf16.gmra.mrb[0].mxu0 %v1589
        %v1690 = vpop.f32.mrb[0].mxu0
        %v1691 = vadd.f32 0.0, %v1690
        %v1692 = vpop.f32.mrb[0].mxu0
        %v1693 = vadd.f32 0.0, %v1692
        %v1694 = vpop.f32.mrb[0].mxu0
        %v1695 = vadd.f32 0.0, %v1694
        %v1696 = vpop.f32.mrb[0].mxu0
        %v1697 = vadd.f32 0.0, %v1696
        %1698 = vmatprep.mubr.bf16.mxu0 0
        %1699 = vmatmul.mubr.bf16.gmra.mrb[0].mxu0 %v1592
        %v1700 = vpop.f32.mrb[0].mxu0
        %v1701 = vadd.f32 0.0, %v1700
        %v1702 = vpop.f32.mrb[0].mxu0
        %v1703 = vadd.f32 0.0, %v1702
        %v1704 = vpop.f32.mrb[0].mxu0
        %v1705 = vadd.f32 0.0, %v1704
        %v1706 = vpop.f32.mrb[0].mxu0
        %v1707 = vadd.f32 0.0, %v1706
        %1708 = vmatprep.mubr.bf16.mxu0 0
        %1709 = vmatmul.mubr.bf16.gmra.mrb[0].mxu0 %v1595
        %v1710 = vpop.f32.mrb[0].mxu0
        %v1711 = vadd.f32 0.0, %v1710
        %v1712 = vpop.f32.mrb[0].mxu0
        %v1713 = vadd.f32 0.0, %v1712
        %v1714 = vpop.f32.mrb[0].mxu0
        %v1715 = vadd.f32 0.0, %v1714
        %v1716 = vpop.f32.mrb[0].mxu0
        %v1717 = vadd.f32 0.0, %v1716
        %1718 = vmatprep.mubr.bf16.mxu0 0
        %1719 = vmatmul.mubr.bf16.gmra.mrb[0].mxu0 %v1598
        %v1720 = vpop.f32.mrb[0].mxu0
        %v1721 = vadd.f32 0.0, %v1720
        %v1722 = vpop.f32.mrb[0].mxu0
        %v1723 = vadd.f32 0.0, %v1722
        %v1724 = vpop.f32.mrb[0].mxu0
        %v1725 = vadd.f32 0.0, %v1724
        %v1726 = vpop.f32.mrb[0].mxu0
        %v1727 = vadd.f32 0.0, %v1726
        %1728 = vmatprep.mubr.bf16.mxu0 0
        %1729 = vmatmul.mubr.bf16.gmra.mrb[0].mxu0 %v1601
        %v1730 = vpop.f32.mrb[0].mxu0
        %v1731 = vadd.f32 0.0, %v1730
        %v1732 = vpop.f32.mrb[0].mxu0
        %v1733 = vadd.f32 0.0, %v1732
        %v1734 = vpop.f32.mrb[0].mxu0
        %v1735 = vadd.f32 0.0, %v1734
        %v1736 = vpop.f32.mrb[0].mxu0
        %v1737 = vadd.f32 0.0, %v1736
        %1738 = vmatprep.mubr.bf16.mxu0 0
        %1739 = vmatmul.mubr.bf16.gmra.mrb[0].mxu0 %v1604
        %v1740 = vpop.f32.mrb[0].mxu0
        %v1741 = vadd.f32 0.0, %v1740
        %v1742 = vpop.f32.mrb[0].mxu0
        %v1743 = vadd.f32 0.0, %v1742
        %v1744 = vpop.f32.mrb[0].mxu0
        %v1745 = vadd.f32 0.0, %v1744
        %v1746 = vpop.f32.mrb[0].mxu0
        %v1747 = vadd.f32 0.0, %v1746
        %1748 = vmatprep.mubr.bf16.mxu0 0
        %1749 = vmatmul.mubr.bf16.gmra.mrb[0].mxu0 %v1607
        %v1750 = vpop.f32.mrb[0].mxu0
        %v1751 = vadd.f32 0.0, %v1750
        %v1752 = vpop.f32.mrb[0].mxu0
        %v1753 = vadd.f32 0.0, %v1752
        %v1754 = vpop.f32.mrb[0].mxu0
        %v1755 = vpop.f32.mrb[0].mxu0
        %1756 = vdwg.mxu0
        %vm1757 = vcmask 7168
        %v1758 = vsel %vm1757, %v1148, -inf
        %v1759 = vmax.f32 %v1146, %v1758
        %1760 = vmax.xlane.f32.xlu0 %v1759
        %v1761 = vpop.xlane.xlu0 %1760
        %v1762 = vsel %vm1757, %v1152, -inf
        %v1763 = vmax.f32 %v1150, %v1762
        %1764 = vmax.xlane.f32.xlu0 %v1763
        %v1765 = vpop.xlane.xlu0 %1764
        %v1766 = vsel %vm1757, %v1158, -inf
        %v1767 = vmax.f32 %v1156, %v1766
        %1768 = vmax.xlane.f32.xlu0 %v1767
        %v1769 = vpop.xlane.xlu0 %1768
        %v1770 = vsel %vm1757, %v1162, -inf
        %v1771 = vmax.f32 %v1160, %v1770
        %1772 = vmax.xlane.f32.xlu0 %v1771
        %v1773 = vpop.xlane.xlu0 %1772
        %v1774 = vsel %vm1757, %v1168, -inf
        %v1775 = vmax.f32 %v1166, %v1774
        %1776 = vmax.xlane.f32.xlu0 %v1775
        %v1777 = vpop.xlane.xlu0 %1776
        %v1778 = vsel %vm1757, %v1172, -inf
        %v1779 = vmax.f32 %v1170, %v1778
        %1780 = vmax.xlane.f32.xlu0 %v1779
        %v1781 = vpop.xlane.xlu0 %1780
        %v1782 = vsel %vm1757, %v1178, -inf
        %v1783 = vmax.f32 %v1176, %v1782
        %1784 = vmax.xlane.f32.xlu0 %v1783
        %v1785 = vpop.xlane.xlu0 %1784
        %v1786 = vsel %vm1757, %v1182, -inf
        %v1787 = vmax.f32 %v1180, %v1786
        %1788 = vmax.xlane.f32.xlu0 %v1787
        %v1789 = vpop.xlane.xlu0 %1788
        %v1790 = vsel %vm1757, %v1188, -inf
        %v1791 = vmax.f32 %v1186, %v1790
        %1792 = vmax.xlane.f32.xlu0 %v1791
        %v1793 = vpop.xlane.xlu0 %1792
        %v1794 = vsel %vm1757, %v1192, -inf
        %v1795 = vmax.f32 %v1190, %v1794
        %1796 = vmax.xlane.f32.xlu0 %v1795
        %v1797 = vpop.xlane.xlu0 %1796
        %v1798 = vsel %vm1757, %v1198, -inf
        %v1799 = vmax.f32 %v1196, %v1798
        %1800 = vmax.xlane.f32.xlu0 %v1799
        %v1801 = vpop.xlane.xlu0 %1800
        %v1802 = vsel %vm1757, %v1202, -inf
        %v1803 = vmax.f32 %v1200, %v1802
        %1804 = vmax.xlane.f32.xlu0 %v1803
        %v1805 = vpop.xlane.xlu0 %1804
        %v1806 = vsel %vm1757, %v1208, -inf
        %v1807 = vmax.f32 %v1206, %v1806
        %1808 = vmax.xlane.f32.xlu0 %v1807
        %v1809 = vpop.xlane.xlu0 %1808
        %v1810 = vsel %vm1757, %v1212, -inf
        %v1811 = vmax.f32 %v1210, %v1810
        %1812 = vmax.xlane.f32.xlu0 %v1811
        %v1813 = vpop.xlane.xlu0 %1812
        %v1814 = vsel %vm1757, %v1218, -inf
        %v1815 = vmax.f32 %v1216, %v1814
        %1816 = vmax.xlane.f32.xlu0 %v1815
        %v1817 = vpop.xlane.xlu0 %1816
        %v1818 = vsel %vm1757, %v1222, -inf
        %v1819 = vmax.f32 %v1220, %v1818
        %1820 = vmax.xlane.f32.xlu0 %v1819
        %v1821 = vpop.xlane.xlu0 %1820
        %vm1822 = vcmask 1040384
        %v1823 = vsel %vm1822, %v1226, -inf
        %vm1824 = vcmask 0
        %v1825 = vsel %vm1824, %v1228, -inf
        %v1826 = vmax.f32 %v1823, %v1825
        %1827 = vmax.xlane.f32.xlu0 %v1826
        %v1828 = vpop.xlane.xlu0 %1827
        %v1829 = vsel %vm1757, %v1323, -inf
        %v1830 = vmax.f32 %v1321, %v1829
        %1831 = vmax.xlane.f32.xlu0 %v1830
        %v1832 = vpop.xlane.xlu0 %1831
        %v1833 = vsel %vm1757, %v1327, -inf
        %v1834 = vmax.f32 %v1325, %v1833
        %1835 = vmax.xlane.f32.xlu0 %v1834
        %v1836 = vpop.xlane.xlu0 %1835
        %v1837 = vsel %vm1757, %v1333, -inf
        %v1838 = vmax.f32 %v1331, %v1837
        %1839 = vmax.xlane.f32.xlu0 %v1838
        %v1840 = vpop.xlane.xlu0 %1839
        %v1841 = vsel %vm1757, %v1337, -inf
        %v1842 = vmax.f32 %v1335, %v1841
        %1843 = vmax.xlane.f32.xlu0 %v1842
        %v1844 = vpop.xlane.xlu0 %1843
        %v1845 = vsel %vm1757, %v1343, -inf
        %v1846 = vmax.f32 %v1341, %v1845
        %1847 = vmax.xlane.f32.xlu0 %v1846
        %v1848 = vpop.xlane.xlu0 %1847
        %v1849 = vsel %vm1757, %v1347, -inf
        %v1850 = vmax.f32 %v1345, %v1849
        %1851 = vmax.xlane.f32.xlu0 %v1850
        %v1852 = vpop.xlane.xlu0 %1851
        %v1853 = vsel %vm1757, %v1353, -inf
        %v1854 = vmax.f32 %v1351, %v1853
        %1855 = vmax.xlane.f32.xlu0 %v1854
        %v1856 = vpop.xlane.xlu0 %1855
        %v1857 = vsel %vm1757, %v1357, -inf
        %v1858 = vmax.f32 %v1355, %v1857
        %1859 = vmax.xlane.f32.xlu0 %v1858
        %v1860 = vpop.xlane.xlu0 %1859
        %v1861 = vsel %vm1757, %v1363, -inf
        %v1862 = vmax.f32 %v1361, %v1861
        %1863 = vmax.xlane.f32.xlu0 %v1862
        %v1864 = vpop.xlane.xlu0 %1863
        %v1865 = vsel %vm1757, %v1367, -inf
        %v1866 = vmax.f32 %v1365, %v1865
        %1867 = vmax.xlane.f32.xlu0 %v1866
        %v1868 = vpop.xlane.xlu0 %1867
        %v1869 = vsel %vm1757, %v1373, -inf
        %v1870 = vmax.f32 %v1371, %v1869
        %1871 = vmax.xlane.f32.xlu0 %v1870
        %v1872 = vpop.xlane.xlu0 %1871
        %v1873 = vsel %vm1757, %v1377, -inf
        %v1874 = vmax.f32 %v1375, %v1873
        %1875 = vmax.xlane.f32.xlu0 %v1874
        %v1876 = vpop.xlane.xlu0 %1875
        %v1877 = vsel %vm1757, %v1383, -inf
        %v1878 = vmax.f32 %v1381, %v1877
        %1879 = vmax.xlane.f32.xlu0 %v1878
        %v1880 = vpop.xlane.xlu0 %1879
        %v1881 = vsel %vm1757, %v1387, -inf
        %v1882 = vmax.f32 %v1385, %v1881
        %1883 = vmax.xlane.f32.xlu0 %v1882
        %v1884 = vpop.xlane.xlu0 %1883
        %v1885 = vsel %vm1757, %v1393, -inf
        %v1886 = vmax.f32 %v1391, %v1885
        %1887 = vmax.xlane.f32.xlu0 %v1886
        %v1888 = vpop.xlane.xlu0 %1887
        %v1889 = vsel %vm1757, %v1397, -inf
        %v1890 = vmax.f32 %v1395, %v1889
        %1891 = vmax.xlane.f32.xlu0 %v1890
        %v1892 = vpop.xlane.xlu0 %1891
        %v1893 = vsel %vm1822, %v1401, -inf
        %v1894 = vsel %vm1824, %v1403, -inf
        %v1895 = vmax.f32 %v1893, %v1894
        %1896 = vmax.xlane.f32.xlu0 %v1895
        %v1897 = vpop.xlane.xlu0 %1896
        %v1898 = vsel %vm1757, %v1498, -inf
        %v1899 = vmax.f32 %v1496, %v1898
        %1900 = vmax.xlane.f32.xlu0 %v1899
        %v1901 = vpop.xlane.xlu0 %1900
        %v1902 = vsel %vm1757, %v1502, -inf
        %v1903 = vmax.f32 %v1500, %v1902
        %1904 = vmax.xlane.f32.xlu0 %v1903
        %v1905 = vpop.xlane.xlu0 %1904
        %v1906 = vsel %vm1757, %v1508, -inf
        %v1907 = vmax.f32 %v1506, %v1906
        %1908 = vmax.xlane.f32.xlu0 %v1907
        %v1909 = vpop.xlane.xlu0 %1908
        %v1910 = vsel %vm1757, %v1512, -inf
        %v1911 = vmax.f32 %v1510, %v1910
        %1912 = vmax.xlane.f32.xlu0 %v1911
        %v1913 = vpop.xlane.xlu0 %1912
        %v1914 = vsel %vm1757, %v1518, -inf
        %v1915 = vmax.f32 %v1516, %v1914
        %1916 = vmax.xlane.f32.xlu0 %v1915
        %v1917 = vpop.xlane.xlu0 %1916
        %v1918 = vsel %vm1757, %v1522, -inf
        %v1919 = vmax.f32 %v1520, %v1918
        %1920 = vmax.xlane.f32.xlu0 %v1919
        %v1921 = vpop.xlane.xlu0 %1920
        %v1922 = vsel %vm1757, %v1528, -inf
        %v1923 = vmax.f32 %v1526, %v1922
        %1924 = vmax.xlane.f32.xlu0 %v1923
        %v1925 = vpop.xlane.xlu0 %1924
        %v1926 = vsel %vm1757, %v1532, -inf
        %v1927 = vmax.f32 %v1530, %v1926
        %1928 = vmax.xlane.f32.xlu0 %v1927
        %v1929 = vpop.xlane.xlu0 %1928
        %v1930 = vsel %vm1757, %v1538, -inf
        %v1931 = vmax.f32 %v1536, %v1930
        %1932 = vmax.xlane.f32.xlu0 %v1931
        %v1933 = vpop.xlane.xlu0 %1932
        %v1934 = vsel %vm1757, %v1542, -inf
        %v1935 = vmax.f32 %v1540, %v1934
        %1936 = vmax.xlane.f32.xlu0 %v1935
        %v1937 = vpop.xlane.xlu0 %1936
        %v1938 = vsel %vm1757, %v1548, -inf
        %v1939 = vmax.f32 %v1546, %v1938
        %1940 = vmax.xlane.f32.xlu0 %v1939
        %v1941 = vpop.xlane.xlu0 %1940
        %v1942 = vsel %vm1757, %v1552, -inf
        %v1943 = vmax.f32 %v1550, %v1942
        %1944 = vmax.xlane.f32.xlu0 %v1943
        %v1945 = vpop.xlane.xlu0 %1944
        %v1946 = vsel %vm1757, %v1558, -inf
        %v1947 = vmax.f32 %v1556, %v1946
        %1948 = vmax.xlane.f32.xlu0 %v1947
        %v1949 = vpop.xlane.xlu0 %1948
        %v1950 = vsel %vm1757, %v1562, -inf
        %v1951 = vmax.f32 %v1560, %v1950
        %1952 = vmax.xlane.f32.xlu0 %v1951
        %v1953 = vpop.xlane.xlu0 %1952
        %v1954 = vsel %vm1757, %v1568, -inf
        %v1955 = vmax.f32 %v1566, %v1954
        %1956 = vmax.xlane.f32.xlu0 %v1955
        %v1957 = vpop.xlane.xlu0 %1956
        %v1958 = vsel %vm1757, %v1572, -inf
        %v1959 = vmax.f32 %v1570, %v1958
        %1960 = vmax.xlane.f32.xlu0 %v1959
        %v1961 = vpop.xlane.xlu0 %1960
        %v1962 = vsel %vm1822, %v1576, -inf
        %v1963 = vsel %vm1824, %v1578, -inf
        %v1964 = vmax.f32 %v1962, %v1963
        %1965 = vmax.xlane.f32.xlu0 %v1964
        %v1966 = vpop.xlane.xlu0 %1965
        %v1967 = vsel %vm1757, %v1673, -inf
        %v1968 = vmax.f32 %v1671, %v1967
        %1969 = vmax.xlane.f32.xlu0 %v1968
        %v1970 = vpop.xlane.xlu0 %1969
        %v1971 = vsel %vm1757, %v1677, -inf
        %v1972 = vmax.f32 %v1675, %v1971
        %1973 = vmax.xlane.f32.xlu0 %v1972
        %v1974 = vpop.xlane.xlu0 %1973
        %v1975 = vsel %vm1757, %v1683, -inf
        %v1976 = vmax.f32 %v1681, %v1975
        %1977 = vmax.xlane.f32.xlu0 %v1976
        %v1978 = vpop.xlane.xlu0 %1977
        %v1979 = vsel %vm1757, %v1687, -inf
        %v1980 = vmax.f32 %v1685, %v1979
        %1981 = vmax.xlane.f32.xlu0 %v1980
        %v1982 = vpop.xlane.xlu0 %1981
        %v1983 = vsel %vm1757, %v1693, -inf
        %v1984 = vmax.f32 %v1691, %v1983
        %1985 = vmax.xlane.f32.xlu0 %v1984
        %v1986 = vpop.xlane.xlu0 %1985
        %v1987 = vsel %vm1757, %v1697, -inf
        %v1988 = vmax.f32 %v1695, %v1987
        %1989 = vmax.xlane.f32.xlu0 %v1988
        %v1990 = vpop.xlane.xlu0 %1989
        %v1991 = vsel %vm1757, %v1703, -inf
        %v1992 = vmax.f32 %v1701, %v1991
        %1993 = vmax.xlane.f32.xlu0 %v1992
        %v1994 = vpop.xlane.xlu0 %1993
        %v1995 = vsel %vm1757, %v1707, -inf
        %v1996 = vmax.f32 %v1705, %v1995
        %1997 = vmax.xlane.f32.xlu0 %v1996
        %v1998 = vpop.xlane.xlu0 %1997
        %v1999 = vsel %vm1757, %v1713, -inf
        %v2000 = vmax.f32 %v1711, %v1999
        %2001 = vmax.xlane.f32.xlu0 %v2000
        %v2002 = vpop.xlane.xlu0 %2001
        %v2003 = vsel %vm1757, %v1717, -inf
        %v2004 = vmax.f32 %v1715, %v2003
        %2005 = vmax.xlane.f32.xlu0 %v2004
        %v2006 = vpop.xlane.xlu0 %2005
        %v2007 = vsel %vm1757, %v1723, -inf
        %v2008 = vmax.f32 %v1721, %v2007
        %2009 = vmax.xlane.f32.xlu0 %v2008
        %v2010 = vpop.xlane.xlu0 %2009
        %v2011 = vsel %vm1757, %v1727, -inf
        %v2012 = vmax.f32 %v1725, %v2011
        %2013 = vmax.xlane.f32.xlu0 %v2012
        %v2014 = vpop.xlane.xlu0 %2013
        %v2015 = vsel %vm1757, %v1733, -inf
        %v2016 = vmax.f32 %v1731, %v2015
        %2017 = vmax.xlane.f32.xlu0 %v2016
        %v2018 = vpop.xlane.xlu0 %2017
        %v2019 = vsel %vm1757, %v1737, -inf
        %v2020 = vmax.f32 %v1735, %v2019
        %2021 = vmax.xlane.f32.xlu0 %v2020
        %v2022 = vpop.xlane.xlu0 %2021
        %v2023 = vsel %vm1757, %v1743, -inf
        %v2024 = vmax.f32 %v1741, %v2023
        %2025 = vmax.xlane.f32.xlu0 %v2024
        %v2026 = vpop.xlane.xlu0 %2025
        %v2027 = vsel %vm1757, %v1747, -inf
        %v2028 = vmax.f32 %v1745, %v2027
        %2029 = vmax.xlane.f32.xlu0 %v2028
        %v2030 = vpop.xlane.xlu0 %2029
        %v2031 = vsel %vm1822, %v1751, -inf
        %v2032 = vsel %vm1824, %v1753, -inf
        %v2033 = vmax.f32 %v2031, %v2032
        %2034 = vmax.xlane.f32.xlu0 %v2033
        %v2035 = vpop.xlane.xlu0 %2034
        %v2036 = vsub.f32 %v1146, %v1761
        %v2037 = vsub.f32 %v1148, %v1761
        %v2038 = vsub.f32 %v1150, %v1765
        %v2039 = vsub.f32 %v1152, %v1765
        %v2040 = vsub.f32 %v1156, %v1769
        %v2041 = vsub.f32 %v1158, %v1769
        %v2042 = vsub.f32 %v1160, %v1773
        %v2043 = vsub.f32 %v1162, %v1773
        %v2044 = vsub.f32 %v1166, %v1777
        %v2045 = vsub.f32 %v1168, %v1777
        %v2046 = vsub.f32 %v1170, %v1781
        %v2047 = vsub.f32 %v1172, %v1781
        %v2048 = vsub.f32 %v1176, %v1785
        %v2049 = vsub.f32 %v1178, %v1785
        %v2050 = vsub.f32 %v1180, %v1789
        %v2051 = vsub.f32 %v1182, %v1789
        %v2052 = vsub.f32 %v1186, %v1793
        %v2053 = vsub.f32 %v1188, %v1793
        %v2054 = vsub.f32 %v1190, %v1797
        %v2055 = vsub.f32 %v1192, %v1797
        %v2056 = vsub.f32 %v1196, %v1801
        %v2057 = vsub.f32 %v1198, %v1801
        %v2058 = vsub.f32 %v1200, %v1805
        %v2059 = vsub.f32 %v1202, %v1805
        %v2060 = vsub.f32 %v1206, %v1809
        %v2061 = vsub.f32 %v1208, %v1809
        %v2062 = vsub.f32 %v1210, %v1813
        %v2063 = vsub.f32 %v1212, %v1813
        %v2064 = vsub.f32 %v1216, %v1817
        %v2065 = vsub.f32 %v1218, %v1817
        %v2066 = vsub.f32 %v1220, %v1821
        %v2067 = vsub.f32 %v1222, %v1821
        %v2068 = vsub.f32 %v1226, %v1828
        %v2069 = vsub.f32 %v1228, %v1828
        %v2070 = vsub.f32 %v1321, %v1832
        %v2071 = vsub.f32 %v1323, %v1832
        %v2072 = vsub.f32 %v1325, %v1836
        %v2073 = vsub.f32 %v1327, %v1836
        %v2074 = vsub.f32 %v1331, %v1840
        %v2075 = vsub.f32 %v1333, %v1840
        %v2076 = vsub.f32 %v1335, %v1844
        %v2077 = vsub.f32 %v1337, %v1844
        %v2078 = vsub.f32 %v1341, %v1848
        %v2079 = vsub.f32 %v1343, %v1848
        %v2080 = vsub.f32 %v1345, %v1852
        %v2081 = vsub.f32 %v1347, %v1852
        %v2082 = vsub.f32 %v1351, %v1856
        %v2083 = vsub.f32 %v1353, %v1856
        %v2084 = vsub.f32 %v1355, %v1860
        %v2085 = vsub.f32 %v1357, %v1860
        %v2086 = vsub.f32 %v1361, %v1864
        %v2087 = vsub.f32 %v1363, %v1864
        %v2088 = vsub.f32 %v1365, %v1868
        %v2089 = vsub.f32 %v1367, %v1868
        %v2090 = vsub.f32 %v1371, %v1872
        %v2091 = vsub.f32 %v1373, %v1872
        %v2092 = vsub.f32 %v1375, %v1876
        %v2093 = vsub.f32 %v1377, %v1876
        %v2094 = vsub.f32 %v1381, %v1880
        %v2095 = vsub.f32 %v1383, %v1880
        %v2096 = vsub.f32 %v1385, %v1884
        %v2097 = vsub.f32 %v1387, %v1884
        %v2098 = vsub.f32 %v1391, %v1888
        %v2099 = vsub.f32 %v1393, %v1888
        %v2100 = vsub.f32 %v1395, %v1892
        %v2101 = vsub.f32 %v1397, %v1892
        %v2102 = vsub.f32 %v1401, %v1897
        %v2103 = vsub.f32 %v1403, %v1897
        %v2104 = vsub.f32 %v1496, %v1901
        %v2105 = vsub.f32 %v1498, %v1901
        %v2106 = vsub.f32 %v1500, %v1905
        %v2107 = vsub.f32 %v1502, %v1905
        %v2108 = vsub.f32 %v1506, %v1909
        %v2109 = vsub.f32 %v1508, %v1909
        %v2110 = vsub.f32 %v1510, %v1913
        %v2111 = vsub.f32 %v1512, %v1913
        %v2112 = vsub.f32 %v1516, %v1917
        %v2113 = vsub.f32 %v1518, %v1917
        %v2114 = vsub.f32 %v1520, %v1921
        %v2115 = vsub.f32 %v1522, %v1921
        %v2116 = vsub.f32 %v1526, %v1925
        %v2117 = vsub.f32 %v1528, %v1925
        %v2118 = vsub.f32 %v1530, %v1929
        %v2119 = vsub.f32 %v1532, %v1929
        %v2120 = vsub.f32 %v1536, %v1933
        %v2121 = vsub.f32 %v1538, %v1933
        %v2122 = vsub.f32 %v1540, %v1937
        %v2123 = vsub.f32 %v1542, %v1937
        %v2124 = vsub.f32 %v1546, %v1941
        %v2125 = vsub.f32 %v1548, %v1941
        %v2126 = vsub.f32 %v1550, %v1945
        %v2127 = vsub.f32 %v1552, %v1945
        %v2128 = vsub.f32 %v1556, %v1949
        %v2129 = vsub.f32 %v1558, %v1949
        %v2130 = vsub.f32 %v1560, %v1953
        %v2131 = vsub.f32 %v1562, %v1953
        %v2132 = vsub.f32 %v1566, %v1957
        %v2133 = vsub.f32 %v1568, %v1957
        %v2134 = vsub.f32 %v1570, %v1961
        %v2135 = vsub.f32 %v1572, %v1961
        %v2136 = vsub.f32 %v1576, %v1966
        %v2137 = vsub.f32 %v1578, %v1966
        %v2138 = vsub.f32 %v1671, %v1970
        %v2139 = vsub.f32 %v1673, %v1970
        %v2140 = vsub.f32 %v1675, %v1974
        %v2141 = vsub.f32 %v1677, %v1974
        %v2142 = vsub.f32 %v1681, %v1978
        %v2143 = vsub.f32 %v1683, %v1978
        %v2144 = vsub.f32 %v1685, %v1982
        %v2145 = vsub.f32 %v1687, %v1982
        %v2146 = vsub.f32 %v1691, %v1986
        %v2147 = vsub.f32 %v1693, %v1986
        %v2148 = vsub.f32 %v1695, %v1990
        %v2149 = vsub.f32 %v1697, %v1990
        %v2150 = vsub.f32 %v1701, %v1994
        %v2151 = vsub.f32 %v1703, %v1994
        %v2152 = vsub.f32 %v1705, %v1998
        %v2153 = vsub.f32 %v1707, %v1998
        %v2154 = vsub.f32 %v1711, %v2002
        %v2155 = vsub.f32 %v1713, %v2002
        %v2156 = vsub.f32 %v1715, %v2006
        %v2157 = vsub.f32 %v1717, %v2006
        %v2158 = vsub.f32 %v1721, %v2010
        %v2159 = vsub.f32 %v1723, %v2010
        %v2160 = vsub.f32 %v1725, %v2014
        %v2161 = vsub.f32 %v1727, %v2014
        %v2162 = vsub.f32 %v1731, %v2018
        %v2163 = vsub.f32 %v1733, %v2018
        %v2164 = vsub.f32 %v1735, %v2022
        %v2165 = vsub.f32 %v1737, %v2022
        %v2166 = vsub.f32 %v1741, %v2026
        %v2167 = vsub.f32 %v1743, %v2026
        %v2168 = vsub.f32 %v1745, %v2030
        %v2169 = vsub.f32 %v1747, %v2030
        %v2170 = vsub.f32 %v1751, %v2035
        %v2171 = vsub.f32 %v1753, %v2035
        %v2172 = vmul.f32 %v2036, 1.442695
        %v2173 = vpow.pop %v2172
        %v2174 = vmul.f32 %v2037, 1.442695
        %v2175 = vpow.pop %v2174
        %v2176 = vmul.f32 %v2038, 1.442695
        %v2177 = vpow.pop %v2176
        %v2178 = vmul.f32 %v2039, 1.442695
        %v2179 = vpow.pop %v2178
        %v2180 = vmul.f32 %v2040, 1.442695
        %v2181 = vpow.pop %v2180
        %v2182 = vmul.f32 %v2041, 1.442695
        %v2183 = vpow.pop %v2182
        %v2184 = vmul.f32 %v2042, 1.442695
        %v2185 = vpow.pop %v2184
        %v2186 = vmul.f32 %v2043, 1.442695
        %v2187 = vpow.pop %v2186
        %v2188 = vmul.f32 %v2044, 1.442695
        %v2189 = vpow.pop %v2188
        %v2190 = vmul.f32 %v2045, 1.442695
        %v2191 = vpow.pop %v2190
        %v2192 = vmul.f32 %v2046, 1.442695
        %v2193 = vpow.pop %v2192
        %v2194 = vmul.f32 %v2047, 1.442695
        %v2195 = vpow.pop %v2194
        %v2196 = vmul.f32 %v2048, 1.442695
        %v2197 = vpow.pop %v2196
        %v2198 = vmul.f32 %v2049, 1.442695
        %v2199 = vpow.pop %v2198
        %v2200 = vmul.f32 %v2050, 1.442695
        %v2201 = vpow.pop %v2200
        %v2202 = vmul.f32 %v2051, 1.442695
        %v2203 = vpow.pop %v2202
        %v2204 = vmul.f32 %v2052, 1.442695
        %v2205 = vpow.pop %v2204
        %v2206 = vmul.f32 %v2053, 1.442695
        %v2207 = vpow.pop %v2206
        %v2208 = vmul.f32 %v2054, 1.442695
        %v2209 = vpow.pop %v2208
        %v2210 = vmul.f32 %v2055, 1.442695
        %v2211 = vpow.pop %v2210
        %v2212 = vmul.f32 %v2056, 1.442695
        %v2213 = vpow.pop %v2212
        %v2214 = vmul.f32 %v2057, 1.442695
        %v2215 = vpow.pop %v2214
        %v2216 = vmul.f32 %v2058, 1.442695
        %v2217 = vpow.pop %v2216
        %v2218 = vmul.f32 %v2059, 1.442695
        %v2219 = vpow.pop %v2218
        %v2220 = vmul.f32 %v2060, 1.442695
        %v2221 = vpow.pop %v2220
        %v2222 = vmul.f32 %v2061, 1.442695
        %v2223 = vpow.pop %v2222
        %v2224 = vmul.f32 %v2062, 1.442695
        %v2225 = vpow.pop %v2224
        %v2226 = vmul.f32 %v2063, 1.442695
        %v2227 = vpow.pop %v2226
        %v2228 = vmul.f32 %v2064, 1.442695
        %v2229 = vpow.pop %v2228
        %v2230 = vmul.f32 %v2065, 1.442695
        %v2231 = vpow.pop %v2230
        %v2232 = vmul.f32 %v2066, 1.442695
        %v2233 = vpow.pop %v2232
        %v2234 = vmul.f32 %v2067, 1.442695
        %v2235 = vpow.pop %v2234
        %v2236 = vmul.f32 %v2068, 1.442695
        %v2237 = vpow.pop %v2236
        %v2238 = vmul.f32 %v2069, 1.442695
        %v2239 = vpow.pop %v2238
        %v2240 = vmul.f32 %v2070, 1.442695
        %v2241 = vpow.pop %v2240
        %v2242 = vmul.f32 %v2071, 1.442695
        %v2243 = vpow.pop %v2242
        %v2244 = vmul.f32 %v2072, 1.442695
        %v2245 = vpow.pop %v2244
        %v2246 = vmul.f32 %v2073, 1.442695
        %v2247 = vpow.pop %v2246
        %v2248 = vmul.f32 %v2074, 1.442695
        %v2249 = vpow.pop %v2248
        %v2250 = vmul.f32 %v2075, 1.442695
        %v2251 = vpow.pop %v2250
        %v2252 = vmul.f32 %v2076, 1.442695
        %v2253 = vpow.pop %v2252
        %v2254 = vmul.f32 %v2077, 1.442695
        %v2255 = vpow.pop %v2254
        %v2256 = vmul.f32 %v2078, 1.442695
        %v2257 = vpow.pop %v2256
        %v2258 = vmul.f32 %v2079, 1.442695
        %v2259 = vpow.pop %v2258
        %v2260 = vmul.f32 %v2080, 1.442695
        %v2261 = vpow.pop %v2260
        %v2262 = vmul.f32 %v2081, 1.442695
        %v2263 = vpow.pop %v2262
        %v2264 = vmul.f32 %v2082, 1.442695
        %v2265 = vpow.pop %v2264
        %v2266 = vmul.f32 %v2083, 1.442695
        %v2267 = vpow.pop %v2266
        %v2268 = vmul.f32 %v2084, 1.442695
        %v2269 = vpow.pop %v2268
        %v2270 = vmul.f32 %v2085, 1.442695
        %v2271 = vpow.pop %v2270
        %v2272 = vmul.f32 %v2086, 1.442695
        %v2273 = vpow.pop %v2272
        %v2274 = vmul.f32 %v2087, 1.442695
        %v2275 = vpow.pop %v2274
        %v2276 = vmul.f32 %v2088, 1.442695
        %v2277 = vpow.pop %v2276
        %v2278 = vmul.f32 %v2089, 1.442695
        %v2279 = vpow.pop %v2278
        %v2280 = vmul.f32 %v2090, 1.442695
        %v2281 = vpow.pop %v2280
        %v2282 = vmul.f32 %v2091, 1.442695
        %v2283 = vpow.pop %v2282
        %v2284 = vmul.f32 %v2092, 1.442695
        %v2285 = vpow.pop %v2284
        %v2286 = vmul.f32 %v2093, 1.442695
        %v2287 = vpow.pop %v2286
        %v2288 = vmul.f32 %v2094, 1.442695
        %v2289 = vpow.pop %v2288
        %v2290 = vmul.f32 %v2095, 1.442695
        %v2291 = vpow.pop %v2290
        %v2292 = vmul.f32 %v2096, 1.442695
        %v2293 = vpow.pop %v2292
        %v2294 = vmul.f32 %v2097, 1.442695
        %v2295 = vpow.pop %v2294
        %v2296 = vmul.f32 %v2098, 1.442695
        %v2297 = vpow.pop %v2296
        %v2298 = vmul.f32 %v2099, 1.442695
        %v2299 = vpow.pop %v2298
        %v2300 = vmul.f32 %v2100, 1.442695
        %v2301 = vpow.pop %v2300
        %v2302 = vmul.f32 %v2101, 1.442695
        %v2303 = vpow.pop %v2302
        %v2304 = vmul.f32 %v2102, 1.442695
        %v2305 = vpow.pop %v2304
        %v2306 = vmul.f32 %v2103, 1.442695
        %v2307 = vpow.pop %v2306
        %v2308 = vmul.f32 %v2104, 1.442695
        %v2309 = vpow.pop %v2308
        %v2310 = vmul.f32 %v2105, 1.442695
        %v2311 = vpow.pop %v2310
        %v2312 = vmul.f32 %v2106, 1.442695
        %v2313 = vpow.pop %v2312
        %v2314 = vmul.f32 %v2107, 1.442695
        %v2315 = vpow.pop %v2314
        %v2316 = vmul.f32 %v2108, 1.442695
        %v2317 = vpow.pop %v2316
        %v2318 = vmul.f32 %v2109, 1.442695
        %v2319 = vpow.pop %v2318
        %v2320 = vmul.f32 %v2110, 1.442695
        %v2321 = vpow.pop %v2320
        %v2322 = vmul.f32 %v2111, 1.442695
        %v2323 = vpow.pop %v2322
        %v2324 = vmul.f32 %v2112, 1.442695
        %v2325 = vpow.pop %v2324
        %v2326 = vmul.f32 %v2113, 1.442695
        %v2327 = vpow.pop %v2326
        %v2328 = vmul.f32 %v2114, 1.442695
        %v2329 = vpow.pop %v2328
        %v2330 = vmul.f32 %v2115, 1.442695
        %v2331 = vpow.pop %v2330
        %v2332 = vmul.f32 %v2116, 1.442695
        %v2333 = vpow.pop %v2332
        %v2334 = vmul.f32 %v2117, 1.442695
        %v2335 = vpow.pop %v2334
        %v2336 = vmul.f32 %v2118, 1.442695
        %v2337 = vpow.pop %v2336
        %v2338 = vmul.f32 %v2119, 1.442695
        %v2339 = vpow.pop %v2338
        %v2340 = vmul.f32 %v2120, 1.442695
        %v2341 = vpow.pop %v2340
        %v2342 = vmul.f32 %v2121, 1.442695
        %v2343 = vpow.pop %v2342
        %v2344 = vmul.f32 %v2122, 1.442695
        %v2345 = vpow.pop %v2344
        %v2346 = vmul.f32 %v2123, 1.442695
        %v2347 = vpow.pop %v2346
        %v2348 = vmul.f32 %v2124, 1.442695
        %v2349 = vpow.pop %v2348
        %v2350 = vmul.f32 %v2125, 1.442695
        %v2351 = vpow.pop %v2350
        %v2352 = vmul.f32 %v2126, 1.442695
        %v2353 = vpow.pop %v2352
        %v2354 = vmul.f32 %v2127, 1.442695
        %v2355 = vpow.pop %v2354
        %v2356 = vmul.f32 %v2128, 1.442695
        %v2357 = vpow.pop %v2356
        %v2358 = vmul.f32 %v2129, 1.442695
        %v2359 = vpow.pop %v2358
        %v2360 = vmul.f32 %v2130, 1.442695
        %v2361 = vpow.pop %v2360
        %v2362 = vmul.f32 %v2131, 1.442695
        %v2363 = vpow.pop %v2362
        %v2364 = vmul.f32 %v2132, 1.442695
        %v2365 = vpow.pop %v2364
        %v2366 = vmul.f32 %v2133, 1.442695
        %v2367 = vpow.pop %v2366
        %v2368 = vmul.f32 %v2134, 1.442695
        %v2369 = vpow.pop %v2368
        %v2370 = vmul.f32 %v2135, 1.442695
        %v2371 = vpow.pop %v2370
        %v2372 = vmul.f32 %v2136, 1.442695
        %v2373 = vpow.pop %v2372
        %v2374 = vmul.f32 %v2137, 1.442695
        %v2375 = vpow.pop %v2374
        %v2376 = vmul.f32 %v2138, 1.442695
        %v2377 = vpow.pop %v2376
        %v2378 = vmul.f32 %v2139, 1.442695
        %v2379 = vpow.pop %v2378
        %v2380 = vmul.f32 %v2140, 1.442695
        %v2381 = vpow.pop %v2380
        %v2382 = vmul.f32 %v2141, 1.442695
        %v2383 = vpow.pop %v2382
        %v2384 = vmul.f32 %v2142, 1.442695
        %v2385 = vpow.pop %v2384
        %v2386 = vmul.f32 %v2143, 1.442695
        %v2387 = vpow.pop %v2386
        %v2388 = vmul.f32 %v2144, 1.442695
        %v2389 = vpow.pop %v2388
        %v2390 = vmul.f32 %v2145, 1.442695
        %v2391 = vpow.pop %v2390
        %v2392 = vmul.f32 %v2146, 1.442695
        %v2393 = vpow.pop %v2392
        %v2394 = vmul.f32 %v2147, 1.442695
        %v2395 = vpow.pop %v2394
        %v2396 = vmul.f32 %v2148, 1.442695
        %v2397 = vpow.pop %v2396
        %v2398 = vmul.f32 %v2149, 1.442695
        %v2399 = vpow.pop %v2398
        %v2400 = vmul.f32 %v2150, 1.442695
        %v2401 = vpow.pop %v2400
        %v2402 = vmul.f32 %v2151, 1.442695
        %v2403 = vpow.pop %v2402
        %v2404 = vmul.f32 %v2152, 1.442695
        %v2405 = vpow.pop %v2404
        %v2406 = vmul.f32 %v2153, 1.442695
        %v2407 = vpow.pop %v2406
        %v2408 = vmul.f32 %v2154, 1.442695
        %v2409 = vpow.pop %v2408
        %v2410 = vmul.f32 %v2155, 1.442695
        %v2411 = vpow.pop %v2410
        %v2412 = vmul.f32 %v2156, 1.442695
        %v2413 = vpow.pop %v2412
        %v2414 = vmul.f32 %v2157, 1.442695
        %v2415 = vpow.pop %v2414
        %v2416 = vmul.f32 %v2158, 1.442695
        %v2417 = vpow.pop %v2416
        %v2418 = vmul.f32 %v2159, 1.442695
        %v2419 = vpow.pop %v2418
        %v2420 = vmul.f32 %v2160, 1.442695
        %v2421 = vpow.pop %v2420
        %v2422 = vmul.f32 %v2161, 1.442695
        %v2423 = vpow.pop %v2422
        %v2424 = vmul.f32 %v2162, 1.442695
        %v2425 = vpow.pop %v2424
        %v2426 = vmul.f32 %v2163, 1.442695
        %v2427 = vpow.pop %v2426
        %v2428 = vmul.f32 %v2164, 1.442695
        %v2429 = vpow.pop %v2428
        %v2430 = vmul.f32 %v2165, 1.442695
        %v2431 = vpow.pop %v2430
        %v2432 = vmul.f32 %v2166, 1.442695
        %v2433 = vpow.pop %v2432
        %v2434 = vmul.f32 %v2167, 1.442695
        %v2435 = vpow.pop %v2434
        %v2436 = vmul.f32 %v2168, 1.442695
        %v2437 = vpow.pop %v2436
        %v2438 = vmul.f32 %v2169, 1.442695
        %v2439 = vpow.pop %v2438
        %v2440 = vmul.f32 %v2170, 1.442695
        %v2441 = vpow.pop %v2440
        %v2442 = vmul.f32 %v2171, 1.442695
        %v2443 = vpow.pop %v2442
        %v2444 = vsel %vm1757, %v2175, 0.0
        %v2445 = vadd.f32 %v2173, %v2444
        %2446 = vadd.xlane.f32.xlu0 %v2445
        %v2447 = vpop.xlane.xlu0 %2446
        %v2448 = vsel %vm1757, %v2179, 0.0
        %v2449 = vadd.f32 %v2177, %v2448
        %2450 = vadd.xlane.f32.xlu0 %v2449
        %v2451 = vpop.xlane.xlu0 %2450
        %v2452 = vsel %vm1757, %v2183, 0.0
        %v2453 = vadd.f32 %v2181, %v2452
        %2454 = vadd.xlane.f32.xlu0 %v2453
        %v2455 = vpop.xlane.xlu0 %2454
        %v2456 = vsel %vm1757, %v2187, 0.0
        %v2457 = vadd.f32 %v2185, %v2456
        %2458 = vadd.xlane.f32.xlu0 %v2457
        %v2459 = vpop.xlane.xlu0 %2458
        %v2460 = vsel %vm1757, %v2191, 0.0
        %v2461 = vadd.f32 %v2189, %v2460
        %2462 = vadd.xlane.f32.xlu0 %v2461
        %v2463 = vpop.xlane.xlu0 %2462
        %v2464 = vsel %vm1757, %v2195, 0.0
        %v2465 = vadd.f32 %v2193, %v2464
        %2466 = vadd.xlane.f32.xlu0 %v2465
        %v2467 = vpop.xlane.xlu0 %2466
        %v2468 = vsel %vm1757, %v2199, 0.0
        %v2469 = vadd.f32 %v2197, %v2468
        %2470 = vadd.xlane.f32.xlu0 %v2469
        %v2471 = vpop.xlane.xlu0 %2470
        %v2472 = vsel %vm1757, %v2203, 0.0
        %v2473 = vadd.f32 %v2201, %v2472
        %2474 = vadd.xlane.f32.xlu0 %v2473
        %v2475 = vpop.xlane.xlu0 %2474
        %v2476 = vsel %vm1757, %v2207, 0.0
        %v2477 = vadd.f32 %v2205, %v2476
        %2478 = vadd.xlane.f32.xlu0 %v2477
        %v2479 = vpop.xlane.xlu0 %2478
        %v2480 = vsel %vm1757, %v2211, 0.0
        %v2481 = vadd.f32 %v2209, %v2480
        %2482 = vadd.xlane.f32.xlu0 %v2481
        %v2483 = vpop.xlane.xlu0 %2482
        %v2484 = vsel %vm1757, %v2215, 0.0
        %v2485 = vadd.f32 %v2213, %v2484
        %2486 = vadd.xlane.f32.xlu0 %v2485
        %v2487 = vpop.xlane.xlu0 %2486
        %v2488 = vsel %vm1757, %v2219, 0.0
        %v2489 = vadd.f32 %v2217, %v2488
        %2490 = vadd.xlane.f32.xlu0 %v2489
        %v2491 = vpop.xlane.xlu0 %2490
        %v2492 = vsel %vm1757, %v2223, 0.0
        %v2493 = vadd.f32 %v2221, %v2492
        %2494 = vadd.xlane.f32.xlu0 %v2493
        %v2495 = vpop.xlane.xlu0 %2494
        %v2496 = vsel %vm1757, %v2227, 0.0
        %v2497 = vadd.f32 %v2225, %v2496
        %2498 = vadd.xlane.f32.xlu0 %v2497
        %v2499 = vpop.xlane.xlu0 %2498
        %v2500 = vsel %vm1757, %v2231, 0.0
        %v2501 = vadd.f32 %v2229, %v2500
        %2502 = vadd.xlane.f32.xlu0 %v2501
        %v2503 = vpop.xlane.xlu0 %2502
        %v2504 = vsel %vm1757, %v2235, 0.0
        %v2505 = vadd.f32 %v2233, %v2504
        %2506 = vadd.xlane.f32.xlu0 %v2505
        %v2507 = vpop.xlane.xlu0 %2506
        %v2508 = vsel %vm1822, %v2237, 0.0
        %v2509 = vsel %vm1824, %v2239, 0.0
        %v2510 = vadd.f32 %v2508, %v2509
        %2511 = vadd.xlane.f32.xlu0 %v2510
        %v2512 = vpop.xlane.xlu0 %2511
        %v2513 = vsel %vm1757, %v2243, 0.0
        %v2514 = vadd.f32 %v2241, %v2513
        %2515 = vadd.xlane.f32.xlu0 %v2514
        %v2516 = vpop.xlane.xlu0 %2515
        %v2517 = vsel %vm1757, %v2247, 0.0
        %v2518 = vadd.f32 %v2245, %v2517
        %2519 = vadd.xlane.f32.xlu0 %v2518
        %v2520 = vpop.xlane.xlu0 %2519
        %v2521 = vsel %vm1757, %v2251, 0.0
        %v2522 = vadd.f32 %v2249, %v2521
        %2523 = vadd.xlane.f32.xlu0 %v2522
        %v2524 = vpop.xlane.xlu0 %2523
        %v2525 = vsel %vm1757, %v2255, 0.0
        %v2526 = vadd.f32 %v2253, %v2525
        %2527 = vadd.xlane.f32.xlu0 %v2526
        %v2528 = vpop.xlane.xlu0 %2527
        %v2529 = vsel %vm1757, %v2259, 0.0
        %v2530 = vadd.f32 %v2257, %v2529
        %2531 = vadd.xlane.f32.xlu0 %v2530
        %v2532 = vpop.xlane.xlu0 %2531
        %v2533 = vsel %vm1757, %v2263, 0.0
        %v2534 = vadd.f32 %v2261, %v2533
        %2535 = vadd.xlane.f32.xlu0 %v2534
        %v2536 = vpop.xlane.xlu0 %2535
        %v2537 = vsel %vm1757, %v2267, 0.0
        %v2538 = vadd.f32 %v2265, %v2537
        %2539 = vadd.xlane.f32.xlu0 %v2538
        %v2540 = vpop.xlane.xlu0 %2539
        %v2541 = vsel %vm1757, %v2271, 0.0
        %v2542 = vadd.f32 %v2269, %v2541
        %2543 = vadd.xlane.f32.xlu0 %v2542
        %v2544 = vpop.xlane.xlu0 %2543
        %v2545 = vsel %vm1757, %v2275, 0.0
        %v2546 = vadd.f32 %v2273, %v2545
        %2547 = vadd.xlane.f32.xlu0 %v2546
        %v2548 = vpop.xlane.xlu0 %2547
        %v2549 = vsel %vm1757, %v2279, 0.0
        %v2550 = vadd.f32 %v2277, %v2549
        %2551 = vadd.xlane.f32.xlu0 %v2550
        %v2552 = vpop.xlane.xlu0 %2551
        %v2553 = vsel %vm1757, %v2283, 0.0
        %v2554 = vadd.f32 %v2281, %v2553
        %2555 = vadd.xlane.f32.xlu0 %v2554
        %v2556 = vpop.xlane.xlu0 %2555
        %v2557 = vsel %vm1757, %v2287, 0.0
        %v2558 = vadd.f32 %v2285, %v2557
        %2559 = vadd.xlane.f32.xlu0 %v2558
        %v2560 = vpop.xlane.xlu0 %2559
        %v2561 = vsel %vm1757, %v2291, 0.0
        %v2562 = vadd.f32 %v2289, %v2561
        %2563 = vadd.xlane.f32.xlu0 %v2562
        %v2564 = vpop.xlane.xlu0 %2563
        %v2565 = vsel %vm1757, %v2295, 0.0
        %v2566 = vadd.f32 %v2293, %v2565
        %2567 = vadd.xlane.f32.xlu0 %v2566
        %v2568 = vpop.xlane.xlu0 %2567
        %v2569 = vsel %vm1757, %v2299, 0.0
        %v2570 = vadd.f32 %v2297, %v2569
        %2571 = vadd.xlane.f32.xlu0 %v2570
        %v2572 = vpop.xlane.xlu0 %2571
        %v2573 = vsel %vm1757, %v2303, 0.0
        %v2574 = vadd.f32 %v2301, %v2573
        %2575 = vadd.xlane.f32.xlu0 %v2574
        %v2576 = vpop.xlane.xlu0 %2575
        %v2577 = vsel %vm1822, %v2305, 0.0
        %v2578 = vsel %vm1824, %v2307, 0.0
        %v2579 = vadd.f32 %v2577, %v2578
        %2580 = vadd.xlane.f32.xlu0 %v2579
        %v2581 = vpop.xlane.xlu0 %2580
        %v2582 = vsel %vm1757, %v2311, 0.0
        %v2583 = vadd.f32 %v2309, %v2582
        %2584 = vadd.xlane.f32.xlu0 %v2583
        %v2585 = vpop.xlane.xlu0 %2584
        %v2586 = vsel %vm1757, %v2315, 0.0
        %v2587 = vadd.f32 %v2313, %v2586
        %2588 = vadd.xlane.f32.xlu0 %v2587
        %v2589 = vpop.xlane.xlu0 %2588
        %v2590 = vsel %vm1757, %v2319, 0.0
        %v2591 = vadd.f32 %v2317, %v2590
        %2592 = vadd.xlane.f32.xlu0 %v2591
        %v2593 = vpop.xlane.xlu0 %2592
        %v2594 = vsel %vm1757, %v2323, 0.0
        %v2595 = vadd.f32 %v2321, %v2594
        %2596 = vadd.xlane.f32.xlu0 %v2595
        %v2597 = vpop.xlane.xlu0 %2596
        %v2598 = vsel %vm1757, %v2327, 0.0
        %v2599 = vadd.f32 %v2325, %v2598
        %2600 = vadd.xlane.f32.xlu0 %v2599
        %v2601 = vpop.xlane.xlu0 %2600
        %v2602 = vsel %vm1757, %v2331, 0.0
        %v2603 = vadd.f32 %v2329, %v2602
        %2604 = vadd.xlane.f32.xlu0 %v2603
        %v2605 = vpop.xlane.xlu0 %2604
        %v2606 = vsel %vm1757, %v2335, 0.0
        %v2607 = vadd.f32 %v2333, %v2606
        %2608 = vadd.xlane.f32.xlu0 %v2607
        %v2609 = vpop.xlane.xlu0 %2608
        %v2610 = vsel %vm1757, %v2339, 0.0
        %v2611 = vadd.f32 %v2337, %v2610
        %2612 = vadd.xlane.f32.xlu0 %v2611
        %v2613 = vpop.xlane.xlu0 %2612
        %v2614 = vsel %vm1757, %v2343, 0.0
        %v2615 = vadd.f32 %v2341, %v2614
        %2616 = vadd.xlane.f32.xlu0 %v2615
        %v2617 = vpop.xlane.xlu0 %2616
        %v2618 = vsel %vm1757, %v2347, 0.0
        %v2619 = vadd.f32 %v2345, %v2618
        %2620 = vadd.xlane.f32.xlu0 %v2619
        %v2621 = vpop.xlane.xlu0 %2620
        %v2622 = vsel %vm1757, %v2351, 0.0
        %v2623 = vadd.f32 %v2349, %v2622
        %2624 = vadd.xlane.f32.xlu0 %v2623
        %v2625 = vpop.xlane.xlu0 %2624
        %v2626 = vsel %vm1757, %v2355, 0.0
        %v2627 = vadd.f32 %v2353, %v2626
        %2628 = vadd.xlane.f32.xlu0 %v2627
        %v2629 = vpop.xlane.xlu0 %2628
        %v2630 = vsel %vm1757, %v2359, 0.0
        %v2631 = vadd.f32 %v2357, %v2630
        %2632 = vadd.xlane.f32.xlu0 %v2631
        %v2633 = vpop.xlane.xlu0 %2632
        %v2634 = vsel %vm1757, %v2363, 0.0
        %v2635 = vadd.f32 %v2361, %v2634
        %2636 = vadd.xlane.f32.xlu0 %v2635
        %v2637 = vpop.xlane.xlu0 %2636
        %v2638 = vsel %vm1757, %v2367, 0.0
        %v2639 = vadd.f32 %v2365, %v2638
        %2640 = vadd.xlane.f32.xlu0 %v2639
        %v2641 = vpop.xlane.xlu0 %2640
        %v2642 = vsel %vm1757, %v2371, 0.0
        %v2643 = vadd.f32 %v2369, %v2642
        %2644 = vadd.xlane.f32.xlu0 %v2643
        %v2645 = vpop.xlane.xlu0 %2644
        %v2646 = vsel %vm1822, %v2373, 0.0
        %v2647 = vsel %vm1824, %v2375, 0.0
        %v2648 = vadd.f32 %v2646, %v2647
        %2649 = vadd.xlane.f32.xlu0 %v2648
        %v2650 = vpop.xlane.xlu0 %2649
        %v2651 = vsel %vm1757, %v2379, 0.0
        %v2652 = vadd.f32 %v2377, %v2651
        %2653 = vadd.xlane.f32.xlu0 %v2652
        %v2654 = vpop.xlane.xlu0 %2653
        %v2655 = vsel %vm1757, %v2383, 0.0
        %v2656 = vadd.f32 %v2381, %v2655
        %2657 = vadd.xlane.f32.xlu0 %v2656
        %v2658 = vpop.xlane.xlu0 %2657
        %v2659 = vsel %vm1757, %v2387, 0.0
        %v2660 = vadd.f32 %v2385, %v2659
        %2661 = vadd.xlane.f32.xlu0 %v2660
        %v2662 = vpop.xlane.xlu0 %2661
        %v2663 = vsel %vm1757, %v2391, 0.0
        %v2664 = vadd.f32 %v2389, %v2663
        %2665 = vadd.xlane.f32.xlu0 %v2664
        %v2666 = vpop.xlane.xlu0 %2665
        %v2667 = vsel %vm1757, %v2395, 0.0
        %v2668 = vadd.f32 %v2393, %v2667
        %2669 = vadd.xlane.f32.xlu0 %v2668
        %v2670 = vpop.xlane.xlu0 %2669
        %v2671 = vsel %vm1757, %v2399, 0.0
        %v2672 = vadd.f32 %v2397, %v2671
        %2673 = vadd.xlane.f32.xlu0 %v2672
        %v2674 = vpop.xlane.xlu0 %2673
        %v2675 = vsel %vm1757, %v2403, 0.0
        %v2676 = vadd.f32 %v2401, %v2675
        %2677 = vadd.xlane.f32.xlu0 %v2676
        %v2678 = vpop.xlane.xlu0 %2677
        %v2679 = vsel %vm1757, %v2407, 0.0
        %v2680 = vadd.f32 %v2405, %v2679
        %2681 = vadd.xlane.f32.xlu0 %v2680
        %v2682 = vpop.xlane.xlu0 %2681
        %v2683 = vsel %vm1757, %v2411, 0.0
        %v2684 = vadd.f32 %v2409, %v2683
        %2685 = vadd.xlane.f32.xlu0 %v2684
        %v2686 = vpop.xlane.xlu0 %2685
        %v2687 = vsel %vm1757, %v2415, 0.0
        %v2688 = vadd.f32 %v2413, %v2687
        %2689 = vadd.xlane.f32.xlu0 %v2688
        %v2690 = vpop.xlane.xlu0 %2689
        %v2691 = vsel %vm1757, %v2419, 0.0
        %v2692 = vadd.f32 %v2417, %v2691
        %2693 = vadd.xlane.f32.xlu0 %v2692
        %v2694 = vpop.xlane.xlu0 %2693
        %v2695 = vsel %vm1757, %v2423, 0.0
        %v2696 = vadd.f32 %v2421, %v2695
        %2697 = vadd.xlane.f32.xlu0 %v2696
        %v2698 = vpop.xlane.xlu0 %2697
        %v2699 = vsel %vm1757, %v2427, 0.0
        %v2700 = vadd.f32 %v2425, %v2699
        %2701 = vadd.xlane.f32.xlu0 %v2700
        %v2702 = vpop.xlane.xlu0 %2701
        %v2703 = vsel %vm1757, %v2431, 0.0
        %v2704 = vadd.f32 %v2429, %v2703
        %2705 = vadd.xlane.f32.xlu0 %v2704
        %v2706 = vpop.xlane.xlu0 %2705
        %v2707 = vsel %vm1757, %v2435, 0.0
        %v2708 = vadd.f32 %v2433, %v2707
        %2709 = vadd.xlane.f32.xlu0 %v2708
        %v2710 = vpop.xlane.xlu0 %2709
        %v2711 = vsel %vm1757, %v2439, 0.0
        %v2712 = vadd.f32 %v2437, %v2711
        %2713 = vadd.xlane.f32.xlu0 %v2712
        %v2714 = vpop.xlane.xlu0 %2713
        %v2715 = vsel %vm1822, %v2441, 0.0
        %v2716 = vsel %vm1824, %v2443, 0.0
        %v2717 = vadd.f32 %v2715, %v2716
        %2718 = vadd.xlane.f32.xlu0 %v2717
        %v2719 = vpop.xlane.xlu0 %2718
        %v2720 = vrcp.pop %v2447
        %v2721 = vrcp.pop %v2451
        %v2722 = vrcp.pop %v2455
        %v2723 = vrcp.pop %v2459
        %v2724 = vrcp.pop %v2463
        %v2725 = vrcp.pop %v2467
        %v2726 = vrcp.pop %v2471
        %v2727 = vrcp.pop %v2475
        %v2728 = vrcp.pop %v2479
        %v2729 = vrcp.pop %v2483
        %v2730 = vrcp.pop %v2487
        %v2731 = vrcp.pop %v2491
        %v2732 = vrcp.pop %v2495
        %v2733 = vrcp.pop %v2499
        %v2734 = vrcp.pop %v2503
        %v2735 = vrcp.pop %v2507
        %v2736 = vrcp.pop %v2512
        %v2737 = vrcp.pop %v2516
        %v2738 = vrcp.pop %v2520
        %v2739 = vrcp.pop %v2524
        %v2740 = vrcp.pop %v2528
        %v2741 = vrcp.pop %v2532
        %v2742 = vrcp.pop %v2536
        %v2743 = vrcp.pop %v2540
        %v2744 = vrcp.pop %v2544
        %v2745 = vrcp.pop %v2548
        %v2746 = vrcp.pop %v2552
        %v2747 = vrcp.pop %v2556
        %v2748 = vrcp.pop %v2560
        %v2749 = vrcp.pop %v2564
        %v2750 = vrcp.pop %v2568
        %v2751 = vrcp.pop %v2572
        %v2752 = vrcp.pop %v2576
        %v2753 = vrcp.pop %v2581
        %v2754 = vrcp.pop %v2585
        %v2755 = vrcp.pop %v2589
        %v2756 = vrcp.pop %v2593
        %v2757 = vrcp.pop %v2597
        %v2758 = vrcp.pop %v2601
        %v2759 = vrcp.pop %v2605
        %v2760 = vrcp.pop %v2609
        %v2761 = vrcp.pop %v2613
        %v2762 = vrcp.pop %v2617
        %v2763 = vrcp.pop %v2621
        %v2764 = vrcp.pop %v2625
        %v2765 = vrcp.pop %v2629
        %v2766 = vrcp.pop %v2633
        %v2767 = vrcp.pop %v2637
        %v2768 = vrcp.pop %v2641
        %v2769 = vrcp.pop %v2645
        %v2770 = vrcp.pop %v2650
        %v2771 = vrcp.pop %v2654
        %v2772 = vrcp.pop %v2658
        %v2773 = vrcp.pop %v2662
        %v2774 = vrcp.pop %v2666
        %v2775 = vrcp.pop %v2670
        %v2776 = vrcp.pop %v2674
        %v2777 = vrcp.pop %v2678
        %v2778 = vrcp.pop %v2682
        %v2779 = vrcp.pop %v2686
        %v2780 = vrcp.pop %v2690
        %v2781 = vrcp.pop %v2694
        %v2782 = vrcp.pop %v2698
        %v2783 = vrcp.pop %v2702
        %v2784 = vrcp.pop %v2706
        %v2785 = vrcp.pop %v2710
        %v2786 = vrcp.pop %v2714
        %v2787 = vrcp.pop %v2719
        %v2788 = vmul.f32 %v2173, %v2720
        %v2789 = vmul.f32 %v2175, %v2720
        %v2790 = vmul.f32 %v2177, %v2721
        %v2791 = vmul.f32 %v2179, %v2721
        %v2792 = vmul.f32 %v2181, %v2722
        %v2793 = vmul.f32 %v2183, %v2722
        %v2794 = vmul.f32 %v2185, %v2723
        %v2795 = vmul.f32 %v2187, %v2723
        %v2796 = vmul.f32 %v2189, %v2724
        %v2797 = vmul.f32 %v2191, %v2724
        %v2798 = vmul.f32 %v2193, %v2725
        %v2799 = vmul.f32 %v2195, %v2725
        %v2800 = vmul.f32 %v2197, %v2726
        %v2801 = vmul.f32 %v2199, %v2726
        %v2802 = vmul.f32 %v2201, %v2727
        %v2803 = vmul.f32 %v2203, %v2727
        %v2804 = vmul.f32 %v2205, %v2728
        %v2805 = vmul.f32 %v2207, %v2728
        %v2806 = vmul.f32 %v2209, %v2729
        %v2807 = vmul.f32 %v2211, %v2729
        %v2808 = vmul.f32 %v2213, %v2730
        %v2809 = vmul.f32 %v2215, %v2730
        %v2810 = vmul.f32 %v2217, %v2731
        %v2811 = vmul.f32 %v2219, %v2731
        %v2812 = vmul.f32 %v2221, %v2732
        %v2813 = vmul.f32 %v2223, %v2732
        %v2814 = vmul.f32 %v2225, %v2733
        %v2815 = vmul.f32 %v2227, %v2733
        %v2816 = vmul.f32 %v2229, %v2734
        %v2817 = vmul.f32 %v2231, %v2734
        %v2818 = vmul.f32 %v2233, %v2735
        %v2819 = vmul.f32 %v2235, %v2735
        %v2820 = vmul.f32 %v2237, %v2736
        %v2821 = vmul.f32 %v2239, %v2736
        %v2822 = vmul.f32 %v2241, %v2737
        %v2823 = vmul.f32 %v2243, %v2737
        %v2824 = vmul.f32 %v2245, %v2738
        %v2825 = vmul.f32 %v2247, %v2738
        %v2826 = vmul.f32 %v2249, %v2739
        %v2827 = vmul.f32 %v2251, %v2739
        %v2828 = vmul.f32 %v2253, %v2740
        %v2829 = vmul.f32 %v2255, %v2740
        %v2830 = vmul.f32 %v2257, %v2741
        %v2831 = vmul.f32 %v2259, %v2741
        %v2832 = vmul.f32 %v2261, %v2742
        %v2833 = vmul.f32 %v2263, %v2742
        %v2834 = vmul.f32 %v2265, %v2743
        %v2835 = vmul.f32 %v2267, %v2743
        %v2836 = vmul.f32 %v2269, %v2744
        %v2837 = vmul.f32 %v2271, %v2744
        %v2838 = vmul.f32 %v2273, %v2745
        %v2839 = vmul.f32 %v2275, %v2745
        %v2840 = vmul.f32 %v2277, %v2746
        %v2841 = vmul.f32 %v2279, %v2746
        %v2842 = vmul.f32 %v2281, %v2747
        %v2843 = vmul.f32 %v2283, %v2747
        %v2844 = vmul.f32 %v2285, %v2748
        %v2845 = vmul.f32 %v2287, %v2748
        %v2846 = vmul.f32 %v2289, %v2749
        %v2847 = vmul.f32 %v2291, %v2749
        %v2848 = vmul.f32 %v2293, %v2750
        %v2849 = vmul.f32 %v2295, %v2750
        %v2850 = vmul.f32 %v2297, %v2751
        %v2851 = vmul.f32 %v2299, %v2751
        %v2852 = vmul.f32 %v2301, %v2752
        %v2853 = vmul.f32 %v2303, %v2752
        %v2854 = vmul.f32 %v2305, %v2753
        %v2855 = vmul.f32 %v2307, %v2753
        %v2856 = vmul.f32 %v2309, %v2754
        %v2857 = vmul.f32 %v2311, %v2754
        %v2858 = vmul.f32 %v2313, %v2755
        %v2859 = vmul.f32 %v2315, %v2755
        %v2860 = vmul.f32 %v2317, %v2756
        %v2861 = vmul.f32 %v2319, %v2756
        %v2862 = vmul.f32 %v2321, %v2757
        %v2863 = vmul.f32 %v2323, %v2757
        %v2864 = vmul.f32 %v2325, %v2758
        %v2865 = vmul.f32 %v2327, %v2758
        %v2866 = vmul.f32 %v2329, %v2759
        %v2867 = vmul.f32 %v2331, %v2759
        %v2868 = vmul.f32 %v2333, %v2760
        %v2869 = vmul.f32 %v2335, %v2760
        %v2870 = vmul.f32 %v2337, %v2761
        %v2871 = vmul.f32 %v2339, %v2761
        %v2872 = vmul.f32 %v2341, %v2762
        %v2873 = vmul.f32 %v2343, %v2762
        %v2874 = vmul.f32 %v2345, %v2763
        %v2875 = vmul.f32 %v2347, %v2763
        %v2876 = vmul.f32 %v2349, %v2764
        %v2877 = vmul.f32 %v2351, %v2764
        %v2878 = vmul.f32 %v2353, %v2765
        %v2879 = vmul.f32 %v2355, %v2765
        %v2880 = vmul.f32 %v2357, %v2766
        %v2881 = vmul.f32 %v2359, %v2766
        %v2882 = vmul.f32 %v2361, %v2767
        %v2883 = vmul.f32 %v2363, %v2767
        %v2884 = vmul.f32 %v2365, %v2768
        %v2885 = vmul.f32 %v2367, %v2768
        %v2886 = vmul.f32 %v2369, %v2769
        %v2887 = vmul.f32 %v2371, %v2769
        %v2888 = vmul.f32 %v2373, %v2770
        %v2889 = vmul.f32 %v2375, %v2770
        %v2890 = vmul.f32 %v2377, %v2771
        %v2891 = vmul.f32 %v2379, %v2771
        %v2892 = vmul.f32 %v2381, %v2772
        %v2893 = vmul.f32 %v2383, %v2772
        %v2894 = vmul.f32 %v2385, %v2773
        %v2895 = vmul.f32 %v2387, %v2773
        %v2896 = vmul.f32 %v2389, %v2774
        %v2897 = vmul.f32 %v2391, %v2774
        %v2898 = vmul.f32 %v2393, %v2775
        %v2899 = vmul.f32 %v2395, %v2775
        %v2900 = vmul.f32 %v2397, %v2776
        %v2901 = vmul.f32 %v2399, %v2776
        %v2902 = vmul.f32 %v2401, %v2777
        %v2903 = vmul.f32 %v2403, %v2777
        %v2904 = vmul.f32 %v2405, %v2778
        %v2905 = vmul.f32 %v2407, %v2778
        %v2906 = vmul.f32 %v2409, %v2779
        %v2907 = vmul.f32 %v2411, %v2779
        %v2908 = vmul.f32 %v2413, %v2780
        %v2909 = vmul.f32 %v2415, %v2780
        %v2910 = vmul.f32 %v2417, %v2781
        %v2911 = vmul.f32 %v2419, %v2781
        %v2912 = vmul.f32 %v2421, %v2782
        %v2913 = vmul.f32 %v2423, %v2782
        %v2914 = vmul.f32 %v2425, %v2783
        %v2915 = vmul.f32 %v2427, %v2783
        %v2916 = vmul.f32 %v2429, %v2784
        %v2917 = vmul.f32 %v2431, %v2784
        %v2918 = vmul.f32 %v2433, %v2785
        %v2919 = vmul.f32 %v2435, %v2785
        %v2920 = vmul.f32 %v2437, %v2786
        %v2921 = vmul.f32 %v2439, %v2786
        %v2922 = vmul.f32 %v2441, %v2787
        %v2923 = vmul.f32 %v2443, %v2787
        %v2924 = vpack.c.bf16 %v2790, %v2788
        %v2925 = vpack.c.bf16 %v2791, %v2789
        %v2926 = vpack.c.bf16 %v2794, %v2792
        %v2927 = vpack.c.bf16 %v2795, %v2793
        %v2928 = vpack.c.bf16 %v2798, %v2796
        %v2929 = vpack.c.bf16 %v2799, %v2797
        %v2930 = vpack.c.bf16 %v2802, %v2800
        %v2931 = vpack.c.bf16 %v2803, %v2801
        %v2932 = vpack.c.bf16 %v2806, %v2804
        %v2933 = vpack.c.bf16 %v2807, %v2805
        %v2934 = vpack.c.bf16 %v2810, %v2808
        %v2935 = vpack.c.bf16 %v2811, %v2809
        %v2936 = vpack.c.bf16 %v2814, %v2812
        %v2937 = vpack.c.bf16 %v2815, %v2813
        %v2938 = vpack.c.bf16 %v2818, %v2816
        %v2939 = vpack.c.bf16 %v2819, %v2817
        %v2940 = vpack.c.bf16 %v2820, %v2820
        %v2941 = vpack.c.bf16 %v2821, %v2821
        %v2942 = vpack.c.bf16 %v2824, %v2822
        %v2943 = vpack.c.bf16 %v2825, %v2823
        %v2944 = vpack.c.bf16 %v2828, %v2826
        %v2945 = vpack.c.bf16 %v2829, %v2827
        %v2946 = vpack.c.bf16 %v2832, %v2830
        %v2947 = vpack.c.bf16 %v2833, %v2831
        %v2948 = vpack.c.bf16 %v2836, %v2834
        %v2949 = vpack.c.bf16 %v2837, %v2835
        %v2950 = vpack.c.bf16 %v2840, %v2838
        %v2951 = vpack.c.bf16 %v2841, %v2839
        %v2952 = vpack.c.bf16 %v2844, %v2842
        %v2953 = vpack.c.bf16 %v2845, %v2843
        %v2954 = vpack.c.bf16 %v2848, %v2846
        %v2955 = vpack.c.bf16 %v2849, %v2847
        %v2956 = vpack.c.bf16 %v2852, %v2850
        %v2957 = vpack.c.bf16 %v2853, %v2851
        %v2958 = vpack.c.bf16 %v2854, %v2854
        %v2959 = vpack.c.bf16 %v2855, %v2855
        %v2960 = vpack.c.bf16 %v2858, %v2856
        %v2961 = vpack.c.bf16 %v2859, %v2857
        %v2962 = vpack.c.bf16 %v2862, %v2860
        %v2963 = vpack.c.bf16 %v2863, %v2861
        %v2964 = vpack.c.bf16 %v2866, %v2864
        %v2965 = vpack.c.bf16 %v2867, %v2865
        %v2966 = vpack.c.bf16 %v2870, %v2868
        %v2967 = vpack.c.bf16 %v2871, %v2869
        %v2968 = vpack.c.bf16 %v2874, %v2872
        %v2969 = vpack.c.bf16 %v2875, %v2873
        %v2970 = vpack.c.bf16 %v2878, %v2876
        %v2971 = vpack.c.bf16 %v2879, %v2877
        %v2972 = vpack.c.bf16 %v2882, %v2880
        %v2973 = vpack.c.bf16 %v2883, %v2881
        %v2974 = vpack.c.bf16 %v2886, %v2884
        %v2975 = vpack.c.bf16 %v2887, %v2885
        %v2976 = vpack.c.bf16 %v2888, %v2888
        %v2977 = vpack.c.bf16 %v2889, %v2889
        %v2978 = vpack.c.bf16 %v2892, %v2890
        %v2979 = vpack.c.bf16 %v2893, %v2891
        %v2980 = vpack.c.bf16 %v2896, %v2894
        %v2981 = vpack.c.bf16 %v2897, %v2895
        %v2982 = vpack.c.bf16 %v2900, %v2898
        %v2983 = vpack.c.bf16 %v2901, %v2899
        %v2984 = vpack.c.bf16 %v2904, %v2902
        %v2985 = vpack.c.bf16 %v2905, %v2903
        %v2986 = vpack.c.bf16 %v2908, %v2906
        %v2987 = vpack.c.bf16 %v2909, %v2907
        %v2988 = vpack.c.bf16 %v2912, %v2910
        %v2989 = vpack.c.bf16 %v2913, %v2911
        %v2990 = vpack.c.bf16 %v2916, %v2914
        %v2991 = vpack.c.bf16 %v2917, %v2915
        %v2992 = vpack.c.bf16 %v2920, %v2918
        %v2993 = vpack.c.bf16 %v2921, %v2919
        %v2994 = vpack.c.bf16 %v2922, %v2922
        %v2995 = vpack.c.bf16 %v2923, %v2923
        %v2997 = vsel %vm1757, %v2925, 0
        %v3000 = vsel %vm1757, %v2927, 0
        %v3003 = vsel %vm1757, %v2929, 0
        %v3006 = vsel %vm1757, %v2931, 0
        %v3009 = vsel %vm1757, %v2933, 0
        %v3012 = vsel %vm1757, %v2935, 0
        %v3015 = vsel %vm1757, %v2937, 0
        %v3018 = vsel %vm1757, %v2939, 0
        %v3021 = vsel %vm1757, %v2941, 0
        %v3023 = vsel 0, 4294967295, 65535
        %v3024 = vsel %vm1822, %v3023, 0
        %v3026 = vand.u32 %v842, %v3024
        %3028 = vmatprep.subr.bf16.mxu0 0
        %3029 = vmatpush1.bf16.msra.mxu0 %v834
        %3030 = vmatprep.subr.bf16.mxu0 0
        %3031 = vmatpush1.bf16.msra.mxu0 %v835
        %3032 = vmatprep.subr.bf16.mxu0 0
        %3033 = vmatpush1.bf16.msra.mxu0 %v836
        %3034 = vmatprep.subr.bf16.mxu0 0
        %3035 = vmatpush1.bf16.msra.mxu0 %v837
        %3036 = vmatprep.subr.bf16.mxu0 0
        %3037 = vmatpush1.bf16.msra.mxu0 %v838
        %3038 = vmatprep.subr.bf16.mxu0 0
        %3039 = vmatpush1.bf16.msra.mxu0 %v839
        %3040 = vmatprep.subr.bf16.mxu0 0
        %3041 = vmatpush1.bf16.msra.mxu0 %v840
        %3042 = vmatprep.subr.bf16.mxu0 0
        %3043 = vmatpush1.bf16.msra.mxu0 %v841
        %3044 = vmatprep.subr.bf16.mxu0 0
        %3045 = vmatpush1.bf16.msra.mxu0 %v3026
        %3046 = vmatprep.subr.bf16.mxu0 0
        %3047 = vmatpush1.bf16.msra.mxu0 0
        %3048 = vmatprep.subr.bf16.mxu0 0
        %3049 = vmatpush1.bf16.msra.mxu0 0
        %3050 = vmatprep.subr.bf16.mxu0 0
        %3051 = vmatpush1.bf16.msra.mxu0 0
        %3052 = vmatprep.subr.bf16.mxu0 0
        %3053 = vmatpush1.bf16.msra.mxu0 0
        %3054 = vmatprep.subr.bf16.mxu0 0
        %3055 = vmatpush1.bf16.msra.mxu0 0
        %3056 = vmatprep.subr.bf16.mxu0 0
        %3057 = vmatpush1.bf16.msra.mxu0 0
        %3058 = vmatprep.subr.bf16.mxu0 0
        %3059 = vmatpush1.bf16.msra.mxu0 0
        %3060 = vmatprep.mubr.bf16.mxu0 %v2997
        %3061 = vmatmul.mubr.bf16.gmra.mrb[0].mxu0 %v2924
        %v3062 = vpop.f32.mrb[0].mxu0
        %v3063 = vadd.f32 0.0, %v3062
        %v3064 = vpop.f32.mrb[0].mxu0
        %v3065 = vpop.f32.mrb[0].mxu0
        %v3066 = vadd.f32 0.0, %v3065
        %v3067 = vpop.f32.mrb[0].mxu0
        %3068 = vmatprep.mubr.bf16.mxu0 %v3000
        %3069 = vmatmul.mubr.bf16.gmra.mrb[0].mxu0 %v2926
        %v3070 = vpop.f32.mrb[0].mxu0
        %v3071 = vadd.f32 0.0, %v3070
        %v3072 = vpop.f32.mrb[0].mxu0
        %v3073 = vpop.f32.mrb[0].mxu0
        %v3074 = vadd.f32 0.0, %v3073
        %v3075 = vpop.f32.mrb[0].mxu0
        %3076 = vmatprep.mubr.bf16.mxu0 %v3003
        %3077 = vmatmul.mubr.bf16.gmra.mrb[0].mxu0 %v2928
        %v3078 = vpop.f32.mrb[0].mxu0
        %v3079 = vadd.f32 0.0, %v3078
        %v3080 = vpop.f32.mrb[0].mxu0
        %v3081 = vpop.f32.mrb[0].mxu0
        %v3082 = vadd.f32 0.0, %v3081
        %v3083 = vpop.f32.mrb[0].mxu0
        %3084 = vmatprep.mubr.bf16.mxu0 %v3006
        %3085 = vmatmul.mubr.bf16.gmra.mrb[0].mxu0 %v2930
        %v3086 = vpop.f32.mrb[0].mxu0
        %v3087 = vadd.f32 0.0, %v3086
        %v3088 = vpop.f32.mrb[0].mxu0
        %v3089 = vpop.f32.mrb[0].mxu0
        %v3090 = vadd.f32 0.0, %v3089
        %v3091 = vpop.f32.mrb[0].mxu0
        %3092 = vmatprep.mubr.bf16.mxu0 %v3009
        %3093 = vmatmul.mubr.bf16.gmra.mrb[0].mxu0 %v2932
        %v3094 = vpop.f32.mrb[0].mxu0
        %v3095 = vadd.f32 0.0, %v3094
        %v3096 = vpop.f32.mrb[0].mxu0
        %v3097 = vpop.f32.mrb[0].mxu0
        %v3098 = vadd.f32 0.0, %v3097
        %v3099 = vpop.f32.mrb[0].mxu0
        %3100 = vmatprep.mubr.bf16.mxu0 %v3012
        %3101 = vmatmul.mubr.bf16.gmra.mrb[0].mxu0 %v2934
        %v3102 = vpop.f32.mrb[0].mxu0
        %v3103 = vadd.f32 0.0, %v3102
        %v3104 = vpop.f32.mrb[0].mxu0
        %v3105 = vpop.f32.mrb[0].mxu0
        %v3106 = vadd.f32 0.0, %v3105
        %v3107 = vpop.f32.mrb[0].mxu0
        %3108 = vmatprep.mubr.bf16.mxu0 %v3015
        %3109 = vmatmul.mubr.bf16.gmra.mrb[0].mxu0 %v2936
        %v3110 = vpop.f32.mrb[0].mxu0
        %v3111 = vadd.f32 0.0, %v3110
        %v3112 = vpop.f32.mrb[0].mxu0
        %v3113 = vpop.f32.mrb[0].mxu0
        %v3114 = vadd.f32 0.0, %v3113
        %v3115 = vpop.f32.mrb[0].mxu0
        %3116 = vmatprep.mubr.bf16.mxu0 %v3018
        %3117 = vmatmul.mubr.bf16.gmra.mrb[0].mxu0 %v2938
        %v3118 = vpop.f32.mrb[0].mxu0
        %v3119 = vadd.f32 0.0, %v3118
        %v3120 = vpop.f32.mrb[0].mxu0
        %v3121 = vpop.f32.mrb[0].mxu0
        %v3122 = vadd.f32 0.0, %v3121
        %v3123 = vpop.f32.mrb[0].mxu0
        %3124 = vmatprep.mubr.bf16.mxu0 %v3021
        %3125 = vmatmul.mubr.bf16.gmra.mrb[0].mxu0 %v2940
        %v3126 = vpop.f32.mrb[0].mxu0
        %v3127 = vadd.f32 0.0, %v3126
        %v3128 = vpop.f32.mrb[0].mxu0
        %v3129 = vpop.f32.mrb[0].mxu0
        %v3130 = vpop.f32.mrb[0].mxu0
        %3131 = vdwg.mxu0
        %v3133 = vsel %vm1757, %v2943, 0
        %v3136 = vsel %vm1757, %v2945, 0
        %v3139 = vsel %vm1757, %v2947, 0
        %v3142 = vsel %vm1757, %v2949, 0
        %v3145 = vsel %vm1757, %v2951, 0
        %v3148 = vsel %vm1757, %v2953, 0
        %v3151 = vsel %vm1757, %v2955, 0
        %v3154 = vsel %vm1757, %v2957, 0
        %v3157 = vsel %vm1757, %v2959, 0
        %v3160 = vand.u32 %v995, %v3024
        %3162 = vmatprep.subr.bf16.mxu0 0
        %3163 = vmatpush1.bf16.msra.mxu0 %v979
        %3164 = vmatprep.subr.bf16.mxu0 0
        %3165 = vmatpush1.bf16.msra.mxu0 %v981
        %3166 = vmatprep.subr.bf16.mxu0 0
        %3167 = vmatpush1.bf16.msra.mxu0 %v983
        %3168 = vmatprep.subr.bf16.mxu0 0
        %3169 = vmatpush1.bf16.msra.mxu0 %v985
        %3170 = vmatprep.subr.bf16.mxu0 0
        %3171 = vmatpush1.bf16.msra.mxu0 %v987
        %3172 = vmatprep.subr.bf16.mxu0 0
        %3173 = vmatpush1.bf16.msra.mxu0 %v989
        %3174 = vmatprep.subr.bf16.mxu0 0
        %3175 = vmatpush1.bf16.msra.mxu0 %v991
        %3176 = vmatprep.subr.bf16.mxu0 0
        %3177 = vmatpush1.bf16.msra.mxu0 %v993
        %3178 = vmatprep.subr.bf16.mxu0 0
        %3179 = vmatpush1.bf16.msra.mxu0 %v3160
        %3180 = vmatprep.subr.bf16.mxu0 0
        %3181 = vmatpush1.bf16.msra.mxu0 0
        %3182 = vmatprep.subr.bf16.mxu0 0
        %3183 = vmatpush1.bf16.msra.mxu0 0
        %3184 = vmatprep.subr.bf16.mxu0 0
        %3185 = vmatpush1.bf16.msra.mxu0 0
        %3186 = vmatprep.subr.bf16.mxu0 0
        %3187 = vmatpush1.bf16.msra.mxu0 0
        %3188 = vmatprep.subr.bf16.mxu0 0
        %3189 = vmatpush1.bf16.msra.mxu0 0
        %3190 = vmatprep.subr.bf16.mxu0 0
        %3191 = vmatpush1.bf16.msra.mxu0 0
        %3192 = vmatprep.subr.bf16.mxu0 0
        %3193 = vmatpush1.bf16.msra.mxu0 0
        %3194 = vmatprep.mubr.bf16.mxu0 %v3133
        %3195 = vmatmul.mubr.bf16.gmra.mrb[0].mxu0 %v2942
        %v3196 = vpop.f32.mrb[0].mxu0
        %v3197 = vadd.f32 0.0, %v3196
        %v3198 = vpop.f32.mrb[0].mxu0
        %v3199 = vpop.f32.mrb[0].mxu0
        %v3200 = vadd.f32 0.0, %v3199
        %v3201 = vpop.f32.mrb[0].mxu0
        %3202 = vmatprep.mubr.bf16.mxu0 %v3136
        %3203 = vmatmul.mubr.bf16.gmra.mrb[0].mxu0 %v2944
        %v3204 = vpop.f32.mrb[0].mxu0
        %v3205 = vadd.f32 0.0, %v3204
        %v3206 = vpop.f32.mrb[0].mxu0
        %v3207 = vpop.f32.mrb[0].mxu0
        %v3208 = vadd.f32 0.0, %v3207
        %v3209 = vpop.f32.mrb[0].mxu0
        %3210 = vmatprep.mubr.bf16.mxu0 %v3139
        %3211 = vmatmul.mubr.bf16.gmra.mrb[0].mxu0 %v2946
        %v3212 = vpop.f32.mrb[0].mxu0
        %v3213 = vadd.f32 0.0, %v3212
        %v3214 = vpop.f32.mrb[0].mxu0
        %v3215 = vpop.f32.mrb[0].mxu0
        %v3216 = vadd.f32 0.0, %v3215
        %v3217 = vpop.f32.mrb[0].mxu0
        %3218 = vmatprep.mubr.bf16.mxu0 %v3142
        %3219 = vmatmul.mubr.bf16.gmra.mrb[0].mxu0 %v2948
        %v3220 = vpop.f32.mrb[0].mxu0
        %v3221 = vadd.f32 0.0, %v3220
        %v3222 = vpop.f32.mrb[0].mxu0
        %v3223 = vpop.f32.mrb[0].mxu0
        %v3224 = vadd.f32 0.0, %v3223
        %v3225 = vpop.f32.mrb[0].mxu0
        %3226 = vmatprep.mubr.bf16.mxu0 %v3145
        %3227 = vmatmul.mubr.bf16.gmra.mrb[0].mxu0 %v2950
        %v3228 = vpop.f32.mrb[0].mxu0
        %v3229 = vadd.f32 0.0, %v3228
        %v3230 = vpop.f32.mrb[0].mxu0
        %v3231 = vpop.f32.mrb[0].mxu0
        %v3232 = vadd.f32 0.0, %v3231
        %v3233 = vpop.f32.mrb[0].mxu0
        %3234 = vmatprep.mubr.bf16.mxu0 %v3148
        %3235 = vmatmul.mubr.bf16.gmra.mrb[0].mxu0 %v2952
        %v3236 = vpop.f32.mrb[0].mxu0
        %v3237 = vadd.f32 0.0, %v3236
        %v3238 = vpop.f32.mrb[0].mxu0
        %v3239 = vpop.f32.mrb[0].mxu0
        %v3240 = vadd.f32 0.0, %v3239
        %v3241 = vpop.f32.mrb[0].mxu0
        %3242 = vmatprep.mubr.bf16.mxu0 %v3151
        %3243 = vmatmul.mubr.bf16.gmra.mrb[0].mxu0 %v2954
        %v3244 = vpop.f32.mrb[0].mxu0
        %v3245 = vadd.f32 0.0, %v3244
        %v3246 = vpop.f32.mrb[0].mxu0
        %v3247 = vpop.f32.mrb[0].mxu0
        %v3248 = vadd.f32 0.0, %v3247
        %v3249 = vpop.f32.mrb[0].mxu0
        %3250 = vmatprep.mubr.bf16.mxu0 %v3154
        %3251 = vmatmul.mubr.bf16.gmra.mrb[0].mxu0 %v2956
        %v3252 = vpop.f32.mrb[0].mxu0
        %v3253 = vadd.f32 0.0, %v3252
        %v3254 = vpop.f32.mrb[0].mxu0
        %v3255 = vpop.f32.mrb[0].mxu0
        %v3256 = vadd.f32 0.0, %v3255
        %v3257 = vpop.f32.mrb[0].mxu0
        %3258 = vmatprep.mubr.bf16.mxu0 %v3157
        %3259 = vmatmul.mubr.bf16.gmra.mrb[0].mxu0 %v2958
        %v3260 = vpop.f32.mrb[0].mxu0
        %v3261 = vadd.f32 0.0, %v3260
        %v3262 = vpop.f32.mrb[0].mxu0
        %v3263 = vpop.f32.mrb[0].mxu0
        %v3264 = vpop.f32.mrb[0].mxu0
        %3265 = vdwg.mxu0
        %v3267 = vsel %vm1757, %v2961, 0
        %v3270 = vsel %vm1757, %v2963, 0
        %v3273 = vsel %vm1757, %v2965, 0
        %v3276 = vsel %vm1757, %v2967, 0
        %v3279 = vsel %vm1757, %v2969, 0
        %v3282 = vsel %vm1757, %v2971, 0
        %v3285 = vsel %vm1757, %v2973, 0
        %v3288 = vsel %vm1757, %v2975, 0
        %v3291 = vsel %vm1757, %v2977, 0
        %v3294 = vand.u32 %v1021, %v3024
        %3296 = vmatprep.subr.bf16.mxu0 0
        %3297 = vmatpush1.bf16.msra.mxu0 %v1005
        %3298 = vmatprep.subr.bf16.mxu0 0
        %3299 = vmatpush1.bf16.msra.mxu0 %v1007
        %3300 = vmatprep.subr.bf16.mxu0 0
        %3301 = vmatpush1.bf16.msra.mxu0 %v1009
        %3302 = vmatprep.subr.bf16.mxu0 0
        %3303 = vmatpush1.bf16.msra.mxu0 %v1011
        %3304 = vmatprep.subr.bf16.mxu0 0
        %3305 = vmatpush1.bf16.msra.mxu0 %v1013
        %3306 = vmatprep.subr.bf16.mxu0 0
        %3307 = vmatpush1.bf16.msra.mxu0 %v1015
        %3308 = vmatprep.subr.bf16.mxu0 0
        %3309 = vmatpush1.bf16.msra.mxu0 %v1017
        %3310 = vmatprep.subr.bf16.mxu0 0
        %3311 = vmatpush1.bf16.msra.mxu0 %v1019
        %3312 = vmatprep.subr.bf16.mxu0 0
        %3313 = vmatpush1.bf16.msra.mxu0 %v3294
        %3314 = vmatprep.subr.bf16.mxu0 0
        %3315 = vmatpush1.bf16.msra.mxu0 0
        %3316 = vmatprep.subr.bf16.mxu0 0
        %3317 = vmatpush1.bf16.msra.mxu0 0
        %3318 = vmatprep.subr.bf16.mxu0 0
        %3319 = vmatpush1.bf16.msra.mxu0 0
        %3320 = vmatprep.subr.bf16.mxu0 0
        %3321 = vmatpush1.bf16.msra.mxu0 0
        %3322 = vmatprep.subr.bf16.mxu0 0
        %3323 = vmatpush1.bf16.msra.mxu0 0
        %3324 = vmatprep.subr.bf16.mxu0 0
        %3325 = vmatpush1.bf16.msra.mxu0 0
        %3326 = vmatprep.subr.bf16.mxu0 0
        %3327 = vmatpush1.bf16.msra.mxu0 0
        %3328 = vmatprep.mubr.bf16.mxu0 %v3267
        %3329 = vmatmul.mubr.bf16.gmra.mrb[0].mxu0 %v2960
        %v3330 = vpop.f32.mrb[0].mxu0
        %v3331 = vadd.f32 0.0, %v3330
        %v3332 = vpop.f32.mrb[0].mxu0
        %v3333 = vpop.f32.mrb[0].mxu0
        %v3334 = vadd.f32 0.0, %v3333
        %v3335 = vpop.f32.mrb[0].mxu0
        %3336 = vmatprep.mubr.bf16.mxu0 %v3270
        %3337 = vmatmul.mubr.bf16.gmra.mrb[0].mxu0 %v2962
        %v3338 = vpop.f32.mrb[0].mxu0
        %v3339 = vadd.f32 0.0, %v3338
        %v3340 = vpop.f32.mrb[0].mxu0
        %v3341 = vpop.f32.mrb[0].mxu0
        %v3342 = vadd.f32 0.0, %v3341
        %v3343 = vpop.f32.mrb[0].mxu0
        %3344 = vmatprep.mubr.bf16.mxu0 %v3273
        %3345 = vmatmul.mubr.bf16.gmra.mrb[0].mxu0 %v2964
        %v3346 = vpop.f32.mrb[0].mxu0
        %v3347 = vadd.f32 0.0, %v3346
        %v3348 = vpop.f32.mrb[0].mxu0
        %v3349 = vpop.f32.mrb[0].mxu0
        %v3350 = vadd.f32 0.0, %v3349
        %v3351 = vpop.f32.mrb[0].mxu0
        %3352 = vmatprep.mubr.bf16.mxu0 %v3276
        %3353 = vmatmul.mubr.bf16.gmra.mrb[0].mxu0 %v2966
        %v3354 = vpop.f32.mrb[0].mxu0
        %v3355 = vadd.f32 0.0, %v3354
        %v3356 = vpop.f32.mrb[0].mxu0
        %v3357 = vpop.f32.mrb[0].mxu0
        %v3358 = vadd.f32 0.0, %v3357
        %v3359 = vpop.f32.mrb[0].mxu0
        %3360 = vmatprep.mubr.bf16.mxu0 %v3279
        %3361 = vmatmul.mubr.bf16.gmra.mrb[0].mxu0 %v2968
        %v3362 = vpop.f32.mrb[0].mxu0
        %v3363 = vadd.f32 0.0, %v3362
        %v3364 = vpop.f32.mrb[0].mxu0
        %v3365 = vpop.f32.mrb[0].mxu0
        %v3366 = vadd.f32 0.0, %v3365
        %v3367 = vpop.f32.mrb[0].mxu0
        %3368 = vmatprep.mubr.bf16.mxu0 %v3282
        %3369 = vmatmul.mubr.bf16.gmra.mrb[0].mxu0 %v2970
        %v3370 = vpop.f32.mrb[0].mxu0
        %v3371 = vadd.f32 0.0, %v3370
        %v3372 = vpop.f32.mrb[0].mxu0
        %v3373 = vpop.f32.mrb[0].mxu0
        %v3374 = vadd.f32 0.0, %v3373
        %v3375 = vpop.f32.mrb[0].mxu0
        %3376 = vmatprep.mubr.bf16.mxu0 %v3285
        %3377 = vmatmul.mubr.bf16.gmra.mrb[0].mxu0 %v2972
        %v3378 = vpop.f32.mrb[0].mxu0
        %v3379 = vadd.f32 0.0, %v3378
        %v3380 = vpop.f32.mrb[0].mxu0
        %v3381 = vpop.f32.mrb[0].mxu0
        %v3382 = vadd.f32 0.0, %v3381
        %v3383 = vpop.f32.mrb[0].mxu0
        %3384 = vmatprep.mubr.bf16.mxu0 %v3288
        %3385 = vmatmul.mubr.bf16.gmra.mrb[0].mxu0 %v2974
        %v3386 = vpop.f32.mrb[0].mxu0
        %v3387 = vadd.f32 0.0, %v3386
        %v3388 = vpop.f32.mrb[0].mxu0
        %v3389 = vpop.f32.mrb[0].mxu0
        %v3390 = vadd.f32 0.0, %v3389
        %v3391 = vpop.f32.mrb[0].mxu0
        %3392 = vmatprep.mubr.bf16.mxu0 %v3291
        %3393 = vmatmul.mubr.bf16.gmra.mrb[0].mxu0 %v2976
        %v3394 = vpop.f32.mrb[0].mxu0
        %v3395 = vadd.f32 0.0, %v3394
        %v3396 = vpop.f32.mrb[0].mxu0
        %v3397 = vpop.f32.mrb[0].mxu0
        %v3398 = vpop.f32.mrb[0].mxu0
        %3399 = vdwg.mxu0
        %v3401 = vsel %vm1757, %v2979, 0
        %v3404 = vsel %vm1757, %v2981, 0
        %v3407 = vsel %vm1757, %v2983, 0
        %v3410 = vsel %vm1757, %v2985, 0
        %v3413 = vsel %vm1757, %v2987, 0
        %v3416 = vsel %vm1757, %v2989, 0
        %v3419 = vsel %vm1757, %v2991, 0
        %v3422 = vsel %vm1757, %v2993, 0
        %v3425 = vsel %vm1757, %v2995, 0
        %v3428 = vand.u32 %v1047, %v3024
        %3430 = vmatprep.subr.bf16.mxu0 0
        %3431 = vmatpush1.bf16.msra.mxu0 %v1031
        %3432 = vmatprep.subr.bf16.mxu0 0
        %3433 = vmatpush1.bf16.msra.mxu0 %v1033
        %3434 = vmatprep.subr.bf16.mxu0 0
        %3435 = vmatpush1.bf16.msra.mxu0 %v1035
        %3436 = vmatprep.subr.bf16.mxu0 0
        %3437 = vmatpush1.bf16.msra.mxu0 %v1037
        %3438 = vmatprep.subr.bf16.mxu0 0
        %3439 = vmatpush1.bf16.msra.mxu0 %v1039
        %3440 = vmatprep.subr.bf16.mxu0 0
        %3441 = vmatpush1.bf16.msra.mxu0 %v1041
        %3442 = vmatprep.subr.bf16.mxu0 0
        %3443 = vmatpush1.bf16.msra.mxu0 %v1043
        %3444 = vmatprep.subr.bf16.mxu0 0
        %3445 = vmatpush1.bf16.msra.mxu0 %v1045
        %3446 = vmatprep.subr.bf16.mxu0 0
        %3447 = vmatpush1.bf16.msra.mxu0 %v3428
        %3448 = vmatprep.subr.bf16.mxu0 0
        %3449 = vmatpush1.bf16.msra.mxu0 0
        %3450 = vmatprep.subr.bf16.mxu0 0
        %3451 = vmatpush1.bf16.msra.mxu0 0
        %3452 = vmatprep.subr.bf16.mxu0 0
        %3453 = vmatpush1.bf16.msra.mxu0 0
        %3454 = vmatprep.subr.bf16.mxu0 0
        %3455 = vmatpush1.bf16.msra.mxu0 0
        %3456 = vmatprep.subr.bf16.mxu0 0
        %3457 = vmatpush1.bf16.msra.mxu0 0
        %3458 = vmatprep.subr.bf16.mxu0 0
        %3459 = vmatpush1.bf16.msra.mxu0 0
        %3460 = vmatprep.subr.bf16.mxu0 0
        %3461 = vmatpush1.bf16.msra.mxu0 0
        %3462 = vmatprep.mubr.bf16.mxu0 %v3401
        %3463 = vmatmul.mubr.bf16.gmra.mrb[0].mxu0 %v2978
        %v3464 = vpop.f32.mrb[0].mxu0
        %v3465 = vadd.f32 0.0, %v3464
        %v3466 = vpop.f32.mrb[0].mxu0
        %v3467 = vpop.f32.mrb[0].mxu0
        %v3468 = vadd.f32 0.0, %v3467
        %v3469 = vpop.f32.mrb[0].mxu0
        %3470 = vmatprep.mubr.bf16.mxu0 %v3404
        %3471 = vmatmul.mubr.bf16.gmra.mrb[0].mxu0 %v2980
        %v3472 = vpop.f32.mrb[0].mxu0
        %v3473 = vadd.f32 0.0, %v3472
        %v3474 = vpop.f32.mrb[0].mxu0
        %v3475 = vpop.f32.mrb[0].mxu0
        %v3476 = vadd.f32 0.0, %v3475
        %v3477 = vpop.f32.mrb[0].mxu0
        %3478 = vmatprep.mubr.bf16.mxu0 %v3407
        %3479 = vmatmul.mubr.bf16.gmra.mrb[0].mxu0 %v2982
        %v3480 = vpop.f32.mrb[0].mxu0
        %v3481 = vadd.f32 0.0, %v3480
        %v3482 = vpop.f32.mrb[0].mxu0
        %v3483 = vpop.f32.mrb[0].mxu0
        %v3484 = vadd.f32 0.0, %v3483
        %v3485 = vpop.f32.mrb[0].mxu0
        %3486 = vmatprep.mubr.bf16.mxu0 %v3410
        %3487 = vmatmul.mubr.bf16.gmra.mrb[0].mxu0 %v2984
        %v3488 = vpop.f32.mrb[0].mxu0
        %v3489 = vadd.f32 0.0, %v3488
        %v3490 = vpop.f32.mrb[0].mxu0
        %v3491 = vpop.f32.mrb[0].mxu0
        %v3492 = vadd.f32 0.0, %v3491
        %v3493 = vpop.f32.mrb[0].mxu0
        %3494 = vmatprep.mubr.bf16.mxu0 %v3413
        %3495 = vmatmul.mubr.bf16.gmra.mrb[0].mxu0 %v2986
        %v3496 = vpop.f32.mrb[0].mxu0
        %v3497 = vadd.f32 0.0, %v3496
        %v3498 = vpop.f32.mrb[0].mxu0
        %v3499 = vpop.f32.mrb[0].mxu0
        %v3500 = vadd.f32 0.0, %v3499
        %v3501 = vpop.f32.mrb[0].mxu0
        %3502 = vmatprep.mubr.bf16.mxu0 %v3416
        %3503 = vmatmul.mubr.bf16.gmra.mrb[0].mxu0 %v2988
        %v3504 = vpop.f32.mrb[0].mxu0
        %v3505 = vadd.f32 0.0, %v3504
        %v3506 = vpop.f32.mrb[0].mxu0
        %v3507 = vpop.f32.mrb[0].mxu0
        %v3508 = vadd.f32 0.0, %v3507
        %v3509 = vpop.f32.mrb[0].mxu0
        %3510 = vmatprep.mubr.bf16.mxu0 %v3419
        %3511 = vmatmul.mubr.bf16.gmra.mrb[0].mxu0 %v2990
        %v3512 = vpop.f32.mrb[0].mxu0
        %v3513 = vadd.f32 0.0, %v3512
        %v3514 = vpop.f32.mrb[0].mxu0
        %v3515 = vpop.f32.mrb[0].mxu0
        %v3516 = vadd.f32 0.0, %v3515
        %v3517 = vpop.f32.mrb[0].mxu0
        %3518 = vmatprep.mubr.bf16.mxu0 %v3422
        %3519 = vmatmul.mubr.bf16.gmra.mrb[0].mxu0 %v2992
        %v3520 = vpop.f32.mrb[0].mxu0
        %v3521 = vadd.f32 0.0, %v3520
        %v3522 = vpop.f32.mrb[0].mxu0
        %v3523 = vpop.f32.mrb[0].mxu0
        %v3524 = vadd.f32 0.0, %v3523
        %v3525 = vpop.f32.mrb[0].mxu0
        %3526 = vmatprep.mubr.bf16.mxu0 %v3425
        %3527 = vmatmul.mubr.bf16.gmra.mrb[0].mxu0 %v2994
        %v3528 = vpop.f32.mrb[0].mxu0
        %v3529 = vadd.f32 0.0, %v3528
        %v3530 = vpop.f32.mrb[0].mxu0
        %v3531 = vpop.f32.mrb[0].mxu0
        %v3532 = vpop.f32.mrb[0].mxu0
        %3533 = vdwg.mxu0
        %v3534 = vrot.slane %v323, 4
        %v3535 = vrot.slane %v326, 4
        %v3536 = vrot.slane %v329, 4
        %v3537 = vrot.slane %v332, 4
        %v3538 = vrot.slane %v335, 4
        %v3539 = vrot.slane %v338, 4
        %v3540 = vrot.slane %v341, 4
        %v3541 = vrot.slane %v344, 4
        %v3542 = vrot.slane %v347, 4
        %v3543 = vrot.slane %v350, 4
        %v3544 = vrot.slane %v353, 4
        %v3545 = vrot.slane %v356, 4
        %v3546 = vrot.slane %v359, 4
        %v3547 = vrot.slane %v362, 4
        %v3548 = vrot.slane %v365, 4
        %v3549 = vrot.slane %v368, 4
        %v3550 = vpack.c.bf16 %v3066, %v3063
        %v3551 = vpack.c.bf16 %v3074, %v3071
        %v3552 = vpack.c.bf16 %v3082, %v3079
        %v3553 = vpack.c.bf16 %v3090, %v3087
        %v3554 = vpack.c.bf16 %v3098, %v3095
        %v3555 = vpack.c.bf16 %v3106, %v3103
        %v3556 = vpack.c.bf16 %v3114, %v3111
        %v3557 = vpack.c.bf16 %v3122, %v3119
        %v3558 = vpack.c.bf16 %v3127, %v3127
        %v3559 = vpack.c.bf16 %v3200, %v3197
        %v3560 = vpack.c.bf16 %v3208, %v3205
        %v3561 = vpack.c.bf16 %v3216, %v3213
        %v3562 = vpack.c.bf16 %v3224, %v3221
        %v3563 = vpack.c.bf16 %v3232, %v3229
        %v3564 = vpack.c.bf16 %v3240, %v3237
        %v3565 = vpack.c.bf16 %v3248, %v3245
        %v3566 = vpack.c.bf16 %v3256, %v3253
        %v3567 = vpack.c.bf16 %v3261, %v3261
        %v3568 = vpack.c.bf16 %v3334, %v3331
        %v3569 = vpack.c.bf16 %v3342, %v3339
        %v3570 = vpack.c.bf16 %v3350, %v3347
        %v3571 = vpack.c.bf16 %v3358, %v3355
        %v3572 = vpack.c.bf16 %v3366, %v3363
        %v3573 = vpack.c.bf16 %v3374, %v3371
        %v3574 = vpack.c.bf16 %v3382, %v3379
        %v3575 = vpack.c.bf16 %v3390, %v3387
        %v3576 = vpack.c.bf16 %v3395, %v3395
        %v3577 = vpack.c.bf16 %v3468, %v3465
        %v3578 = vpack.c.bf16 %v3476, %v3473
        %v3579 = vpack.c.bf16 %v3484, %v3481
        %v3580 = vpack.c.bf16 %v3492, %v3489
        %v3581 = vpack.c.bf16 %v3500, %v3497
        %v3582 = vpack.c.bf16 %v3508, %v3505
        %v3583 = vpack.c.bf16 %v3516, %v3513
        %v3584 = vpack.c.bf16 %v3524, %v3521
        %v3585 = vpack.c.bf16 %v3529, %v3529
        %v3586 = vunpack.c.l.b16 %v3534
        %v3587 = vunpack.c.l.b16 %v3535
        %v3588 = vunpack.c.l.b16 %v3536
        %v3589 = vunpack.c.l.b16 %v3537
        %v3590 = vpack.c.b16 %v3587, %v3586
        %v3591 = vpack.c.b16 %v3589, %v3588
        %v3595 = vsel %vm1056, %v3550, 0
        %v3598 = vsel %vm1056, %v3551, 0
        %v3601 = vsel %vm1056, %v3552, 0
        %v3604 = vsel %vm1056, %v3553, 0
        %v3607 = vsel %vm1056, %v3554, 0
        %v3610 = vsel %vm1056, %v3555, 0
        %v3613 = vsel %vm1056, %v3556, 0
        %v3616 = vsel %vm1056, %v3557, 0
        %v3619 = vsel %vm1056, %v3558, 0
        %3621 = vmatprep.subr.bf16.mxu0 0
        %3622 = vmatpush1.bf16.msra.mxu0 %v3590
        %3623 = vmatprep.subr.bf16.mxu0 0
        %3624 = vmatpush1.bf16.msra.mxu0 %v3591
        %3625 = vmatprep.subr.bf16.mxu0 0
        %3626 = vmatpush1.bf16.msra.mxu0 0
        %3627 = vmatprep.subr.bf16.mxu0 0
        %3628 = vmatpush1.bf16.msra.mxu0 0
        %3629 = vmatprep.subr.bf16.mxu0 0
        %3630 = vmatpush1.bf16.msra.mxu0 0
        %3631 = vmatprep.subr.bf16.mxu0 0
        %3632 = vmatpush1.bf16.msra.mxu0 0
        %3633 = vmatprep.subr.bf16.mxu0 0
        %3634 = vmatpush1.bf16.msra.mxu0 0
        %3635 = vmatprep.subr.bf16.mxu0 0
        %3636 = vmatpush1.bf16.msra.mxu0 0
        %3637 = vmatprep.subr.bf16.mxu0 0
        %3638 = vmatpush1.bf16.msra.mxu0 0
        %3639 = vmatprep.subr.bf16.mxu0 0
        %3640 = vmatpush1.bf16.msra.mxu0 0
        %3641 = vmatprep.subr.bf16.mxu0 0
        %3642 = vmatpush1.bf16.msra.mxu0 0
        %3643 = vmatprep.subr.bf16.mxu0 0
        %3644 = vmatpush1.bf16.msra.mxu0 0
        %3645 = vmatprep.subr.bf16.mxu0 0
        %3646 = vmatpush1.bf16.msra.mxu0 0
        %3647 = vmatprep.subr.bf16.mxu0 0
        %3648 = vmatpush1.bf16.msra.mxu0 0
        %3649 = vmatprep.subr.bf16.mxu0 0
        %3650 = vmatpush1.bf16.msra.mxu0 0
        %3651 = vmatprep.subr.bf16.mxu0 0
        %3652 = vmatpush1.bf16.msra.mxu0 0
        %3653 = vmatprep.mubr.bf16.mxu0 0
        %3654 = vmatmul.mubr.bf16.gmra.mrb[0].mxu0 %v3595
        %v3655 = vpop.f32.mrb[0].mxu0
        %v3656 = vadd.f32 0.0, %v3655
        %v3657 = vpop.f32.mrb[0].mxu0
        %v3658 = vpop.f32.mrb[0].mxu0
        %v3659 = vadd.f32 0.0, %v3658
        %v3660 = vpop.f32.mrb[0].mxu0
        %3661 = vmatprep.mubr.bf16.mxu0 0
        %3662 = vmatmul.mubr.bf16.gmra.mrb[0].mxu0 %v3598
        %v3663 = vpop.f32.mrb[0].mxu0
        %v3664 = vadd.f32 0.0, %v3663
        %v3665 = vpop.f32.mrb[0].mxu0
        %v3666 = vpop.f32.mrb[0].mxu0
        %v3667 = vadd.f32 0.0, %v3666
        %v3668 = vpop.f32.mrb[0].mxu0
        %3669 = vmatprep.mubr.bf16.mxu0 0
        %3670 = vmatmul.mubr.bf16.gmra.mrb[0].mxu0 %v3601
        %v3671 = vpop.f32.mrb[0].mxu0
        %v3672 = vadd.f32 0.0, %v3671
        %v3673 = vpop.f32.mrb[0].mxu0
        %v3674 = vpop.f32.mrb[0].mxu0
        %v3675 = vadd.f32 0.0, %v3674
        %v3676 = vpop.f32.mrb[0].mxu0
        %3677 = vmatprep.mubr.bf16.mxu0 0
        %3678 = vmatmul.mubr.bf16.gmra.mrb[0].mxu0 %v3604
        %v3679 = vpop.f32.mrb[0].mxu0
        %v3680 = vadd.f32 0.0, %v3679
        %v3681 = vpop.f32.mrb[0].mxu0
        %v3682 = vpop.f32.mrb[0].mxu0
        %v3683 = vadd.f32 0.0, %v3682
        %v3684 = vpop.f32.mrb[0].mxu0
        %3685 = vmatprep.mubr.bf16.mxu0 0
        %3686 = vmatmul.mubr.bf16.gmra.mrb[0].mxu0 %v3607
        %v3687 = vpop.f32.mrb[0].mxu0
        %v3688 = vadd.f32 0.0, %v3687
        %v3689 = vpop.f32.mrb[0].mxu0
        %v3690 = vpop.f32.mrb[0].mxu0
        %v3691 = vadd.f32 0.0, %v3690
        %v3692 = vpop.f32.mrb[0].mxu0
        %3693 = vmatprep.mubr.bf16.mxu0 0
        %3694 = vmatmul.mubr.bf16.gmra.mrb[0].mxu0 %v3610
        %v3695 = vpop.f32.mrb[0].mxu0
        %v3696 = vadd.f32 0.0, %v3695
        %v3697 = vpop.f32.mrb[0].mxu0
        %v3698 = vpop.f32.mrb[0].mxu0
        %v3699 = vadd.f32 0.0, %v3698
        %v3700 = vpop.f32.mrb[0].mxu0
        %3701 = vmatprep.mubr.bf16.mxu0 0
        %3702 = vmatmul.mubr.bf16.gmra.mrb[0].mxu0 %v3613
        %v3703 = vpop.f32.mrb[0].mxu0
        %v3704 = vadd.f32 0.0, %v3703
        %v3705 = vpop.f32.mrb[0].mxu0
        %v3706 = vpop.f32.mrb[0].mxu0
        %v3707 = vadd.f32 0.0, %v3706
        %v3708 = vpop.f32.mrb[0].mxu0
        %3709 = vmatprep.mubr.bf16.mxu0 0
        %3710 = vmatmul.mubr.bf16.gmra.mrb[0].mxu0 %v3616
        %v3711 = vpop.f32.mrb[0].mxu0
        %v3712 = vadd.f32 0.0, %v3711
        %v3713 = vpop.f32.mrb[0].mxu0
        %v3714 = vpop.f32.mrb[0].mxu0
        %v3715 = vadd.f32 0.0, %v3714
        %v3716 = vpop.f32.mrb[0].mxu0
        %3717 = vmatprep.mubr.bf16.mxu0 0
        %3718 = vmatmul.mubr.bf16.gmra.mrb[0].mxu0 %v3619
        %v3719 = vpop.f32.mrb[0].mxu0
        %v3720 = vadd.f32 0.0, %v3719
        %v3721 = vpop.f32.mrb[0].mxu0
        %v3722 = vpop.f32.mrb[0].mxu0
        %v3723 = vpop.f32.mrb[0].mxu0
        %3724 = vdwg.mxu0
        %v3725 = vunpack.c.l.b16 %v3538
        %v3726 = vunpack.c.l.b16 %v3539
        %v3727 = vunpack.c.l.b16 %v3540
        %v3728 = vunpack.c.l.b16 %v3541
        %v3729 = vpack.c.b16 %v3726, %v3725
        %v3730 = vpack.c.b16 %v3728, %v3727
        %v3734 = vsel %vm1056, %v3559, 0
        %v3737 = vsel %vm1056, %v3560, 0
        %v3740 = vsel %vm1056, %v3561, 0
        %v3743 = vsel %vm1056, %v3562, 0
        %v3746 = vsel %vm1056, %v3563, 0
        %v3749 = vsel %vm1056, %v3564, 0
        %v3752 = vsel %vm1056, %v3565, 0
        %v3755 = vsel %vm1056, %v3566, 0
        %v3758 = vsel %vm1056, %v3567, 0
        %3760 = vmatprep.subr.bf16.mxu0 0
        %3761 = vmatpush1.bf16.msra.mxu0 %v3729
        %3762 = vmatprep.subr.bf16.mxu0 0
        %3763 = vmatpush1.bf16.msra.mxu0 %v3730
        %3764 = vmatprep.subr.bf16.mxu0 0
        %3765 = vmatpush1.bf16.msra.mxu0 0
        %3766 = vmatprep.subr.bf16.mxu0 0
        %3767 = vmatpush1.bf16.msra.mxu0 0
        %3768 = vmatprep.subr.bf16.mxu0 0
        %3769 = vmatpush1.bf16.msra.mxu0 0
        %3770 = vmatprep.subr.bf16.mxu0 0
        %3771 = vmatpush1.bf16.msra.mxu0 0
        %3772 = vmatprep.subr.bf16.mxu0 0
        %3773 = vmatpush1.bf16.msra.mxu0 0
        %3774 = vmatprep.subr.bf16.mxu0 0
        %3775 = vmatpush1.bf16.msra.mxu0 0
        %3776 = vmatprep.subr.bf16.mxu0 0
        %3777 = vmatpush1.bf16.msra.mxu0 0
        %3778 = vmatprep.subr.bf16.mxu0 0
        %3779 = vmatpush1.bf16.msra.mxu0 0
        %3780 = vmatprep.subr.bf16.mxu0 0
        %3781 = vmatpush1.bf16.msra.mxu0 0
        %3782 = vmatprep.subr.bf16.mxu0 0
        %3783 = vmatpush1.bf16.msra.mxu0 0
        %3784 = vmatprep.subr.bf16.mxu0 0
        %3785 = vmatpush1.bf16.msra.mxu0 0
        %3786 = vmatprep.subr.bf16.mxu0 0
        %3787 = vmatpush1.bf16.msra.mxu0 0
        %3788 = vmatprep.subr.bf16.mxu0 0
        %3789 = vmatpush1.bf16.msra.mxu0 0
        %3790 = vmatprep.subr.bf16.mxu0 0
        %3791 = vmatpush1.bf16.msra.mxu0 0
        %3792 = vmatprep.mubr.bf16.mxu0 0
        %3793 = vmatmul.mubr.bf16.gmra.mrb[0].mxu0 %v3734
        %v3794 = vpop.f32.mrb[0].mxu0
        %v3795 = vadd.f32 0.0, %v3794
        %v3796 = vpop.f32.mrb[0].mxu0
        %v3797 = vpop.f32.mrb[0].mxu0
        %v3798 = vadd.f32 0.0, %v3797
        %v3799 = vpop.f32.mrb[0].mxu0
        %3800 = vmatprep.mubr.bf16.mxu0 0
        %3801 = vmatmul.mubr.bf16.gmra.mrb[0].mxu0 %v3737
        %v3802 = vpop.f32.mrb[0].mxu0
        %v3803 = vadd.f32 0.0, %v3802
        %v3804 = vpop.f32.mrb[0].mxu0
        %v3805 = vpop.f32.mrb[0].mxu0
        %v3806 = vadd.f32 0.0, %v3805
        %v3807 = vpop.f32.mrb[0].mxu0
        %3808 = vmatprep.mubr.bf16.mxu0 0
        %3809 = vmatmul.mubr.bf16.gmra.mrb[0].mxu0 %v3740
        %v3810 = vpop.f32.mrb[0].mxu0
        %v3811 = vadd.f32 0.0, %v3810
        %v3812 = vpop.f32.mrb[0].mxu0
        %v3813 = vpop.f32.mrb[0].mxu0
        %v3814 = vadd.f32 0.0, %v3813
        %v3815 = vpop.f32.mrb[0].mxu0
        %3816 = vmatprep.mubr.bf16.mxu0 0
        %3817 = vmatmul.mubr.bf16.gmra.mrb[0].mxu0 %v3743
        %v3818 = vpop.f32.mrb[0].mxu0
        %v3819 = vadd.f32 0.0, %v3818
        %v3820 = vpop.f32.mrb[0].mxu0
        %v3821 = vpop.f32.mrb[0].mxu0
        %v3822 = vadd.f32 0.0, %v3821
        %v3823 = vpop.f32.mrb[0].mxu0
        %3824 = vmatprep.mubr.bf16.mxu0 0
        %3825 = vmatmul.mubr.bf16.gmra.mrb[0].mxu0 %v3746
        %v3826 = vpop.f32.mrb[0].mxu0
        %v3827 = vadd.f32 0.0, %v3826
        %v3828 = vpop.f32.mrb[0].mxu0
        %v3829 = vpop.f32.mrb[0].mxu0
        %v3830 = vadd.f32 0.0, %v3829
        %v3831 = vpop.f32.mrb[0].mxu0
        %3832 = vmatprep.mubr.bf16.mxu0 0
        %3833 = vmatmul.mubr.bf16.gmra.mrb[0].mxu0 %v3749
        %v3834 = vpop.f32.mrb[0].mxu0
        %v3835 = vadd.f32 0.0, %v3834
        %v3836 = vpop.f32.mrb[0].mxu0
        %v3837 = vpop.f32.mrb[0].mxu0
        %v3838 = vadd.f32 0.0, %v3837
        %v3839 = vpop.f32.mrb[0].mxu0
        %3840 = vmatprep.mubr.bf16.mxu0 0
        %3841 = vmatmul.mubr.bf16.gmra.mrb[0].mxu0 %v3752
        %v3842 = vpop.f32.mrb[0].mxu0
        %v3843 = vadd.f32 0.0, %v3842
        %v3844 = vpop.f32.mrb[0].mxu0
        %v3845 = vpop.f32.mrb[0].mxu0
        %v3846 = vadd.f32 0.0, %v3845
        %v3847 = vpop.f32.mrb[0].mxu0
        %3848 = vmatprep.mubr.bf16.mxu0 0
        %3849 = vmatmul.mubr.bf16.gmra.mrb[0].mxu0 %v3755
        %v3850 = vpop.f32.mrb[0].mxu0
        %v3851 = vadd.f32 0.0, %v3850
        %v3852 = vpop.f32.mrb[0].mxu0
        %v3853 = vpop.f32.mrb[0].mxu0
        %v3854 = vadd.f32 0.0, %v3853
        %v3855 = vpop.f32.mrb[0].mxu0
        %3856 = vmatprep.mubr.bf16.mxu0 0
        %3857 = vmatmul.mubr.bf16.gmra.mrb[0].mxu0 %v3758
        %v3858 = vpop.f32.mrb[0].mxu0
        %v3859 = vadd.f32 0.0, %v3858
        %v3860 = vpop.f32.mrb[0].mxu0
        %v3861 = vpop.f32.mrb[0].mxu0
        %v3862 = vpop.f32.mrb[0].mxu0
        %3863 = vdwg.mxu0
        %v3864 = vunpack.c.l.b16 %v3542
        %v3865 = vunpack.c.l.b16 %v3543
        %v3866 = vunpack.c.l.b16 %v3544
        %v3867 = vunpack.c.l.b16 %v3545
        %v3868 = vpack.c.b16 %v3865, %v3864
        %v3869 = vpack.c.b16 %v3867, %v3866
        %v3873 = vsel %vm1056, %v3568, 0
        %v3876 = vsel %vm1056, %v3569, 0
        %v3879 = vsel %vm1056, %v3570, 0
        %v3882 = vsel %vm1056, %v3571, 0
        %v3885 = vsel %vm1056, %v3572, 0
        %v3888 = vsel %vm1056, %v3573, 0
        %v3891 = vsel %vm1056, %v3574, 0
        %v3894 = vsel %vm1056, %v3575, 0
        %v3897 = vsel %vm1056, %v3576, 0
        %3899 = vmatprep.subr.bf16.mxu0 0
        %3900 = vmatpush1.bf16.msra.mxu0 %v3868
        %3901 = vmatprep.subr.bf16.mxu0 0
        %3902 = vmatpush1.bf16.msra.mxu0 %v3869
        %3903 = vmatprep.subr.bf16.mxu0 0
        %3904 = vmatpush1.bf16.msra.mxu0 0
        %3905 = vmatprep.subr.bf16.mxu0 0
        %3906 = vmatpush1.bf16.msra.mxu0 0
        %3907 = vmatprep.subr.bf16.mxu0 0
        %3908 = vmatpush1.bf16.msra.mxu0 0
        %3909 = vmatprep.subr.bf16.mxu0 0
        %3910 = vmatpush1.bf16.msra.mxu0 0
        %3911 = vmatprep.subr.bf16.mxu0 0
        %3912 = vmatpush1.bf16.msra.mxu0 0
        %3913 = vmatprep.subr.bf16.mxu0 0
        %3914 = vmatpush1.bf16.msra.mxu0 0
        %3915 = vmatprep.subr.bf16.mxu0 0
        %3916 = vmatpush1.bf16.msra.mxu0 0
        %3917 = vmatprep.subr.bf16.mxu0 0
        %3918 = vmatpush1.bf16.msra.mxu0 0
        %3919 = vmatprep.subr.bf16.mxu0 0
        %3920 = vmatpush1.bf16.msra.mxu0 0
        %3921 = vmatprep.subr.bf16.mxu0 0
        %3922 = vmatpush1.bf16.msra.mxu0 0
        %3923 = vmatprep.subr.bf16.mxu0 0
        %3924 = vmatpush1.bf16.msra.mxu0 0
        %3925 = vmatprep.subr.bf16.mxu0 0
        %3926 = vmatpush1.bf16.msra.mxu0 0
        %3927 = vmatprep.subr.bf16.mxu0 0
        %3928 = vmatpush1.bf16.msra.mxu0 0
        %3929 = vmatprep.subr.bf16.mxu0 0
        %3930 = vmatpush1.bf16.msra.mxu0 0
        %3931 = vmatprep.mubr.bf16.mxu0 0
        %3932 = vmatmul.mubr.bf16.gmra.mrb[0].mxu0 %v3873
        %v3933 = vpop.f32.mrb[0].mxu0
        %v3934 = vadd.f32 0.0, %v3933
        %v3935 = vpop.f32.mrb[0].mxu0
        %v3936 = vpop.f32.mrb[0].mxu0
        %v3937 = vadd.f32 0.0, %v3936
        %v3938 = vpop.f32.mrb[0].mxu0
        %3939 = vmatprep.mubr.bf16.mxu0 0
        %3940 = vmatmul.mubr.bf16.gmra.mrb[0].mxu0 %v3876
        %v3941 = vpop.f32.mrb[0].mxu0
        %v3942 = vadd.f32 0.0, %v3941
        %v3943 = vpop.f32.mrb[0].mxu0
        %v3944 = vpop.f32.mrb[0].mxu0
        %v3945 = vadd.f32 0.0, %v3944
        %v3946 = vpop.f32.mrb[0].mxu0
        %3947 = vmatprep.mubr.bf16.mxu0 0
        %3948 = vmatmul.mubr.bf16.gmra.mrb[0].mxu0 %v3879
        %v3949 = vpop.f32.mrb[0].mxu0
        %v3950 = vadd.f32 0.0, %v3949
        %v3951 = vpop.f32.mrb[0].mxu0
        %v3952 = vpop.f32.mrb[0].mxu0
        %v3953 = vadd.f32 0.0, %v3952
        %v3954 = vpop.f32.mrb[0].mxu0
        %3955 = vmatprep.mubr.bf16.mxu0 0
        %3956 = vmatmul.mubr.bf16.gmra.mrb[0].mxu0 %v3882
        %v3957 = vpop.f32.mrb[0].mxu0
        %v3958 = vadd.f32 0.0, %v3957
        %v3959 = vpop.f32.mrb[0].mxu0
        %v3960 = vpop.f32.mrb[0].mxu0
        %v3961 = vadd.f32 0.0, %v3960
        %v3962 = vpop.f32.mrb[0].mxu0
        %3963 = vmatprep.mubr.bf16.mxu0 0
        %3964 = vmatmul.mubr.bf16.gmra.mrb[0].mxu0 %v3885
        %v3965 = vpop.f32.mrb[0].mxu0
        %v3966 = vadd.f32 0.0, %v3965
        %v3967 = vpop.f32.mrb[0].mxu0
        %v3968 = vpop.f32.mrb[0].mxu0
        %v3969 = vadd.f32 0.0, %v3968
        %v3970 = vpop.f32.mrb[0].mxu0
        %3971 = vmatprep.mubr.bf16.mxu0 0
        %3972 = vmatmul.mubr.bf16.gmra.mrb[0].mxu0 %v3888
        %v3973 = vpop.f32.mrb[0].mxu0
        %v3974 = vadd.f32 0.0, %v3973
        %v3975 = vpop.f32.mrb[0].mxu0
        %v3976 = vpop.f32.mrb[0].mxu0
        %v3977 = vadd.f32 0.0, %v3976
        %v3978 = vpop.f32.mrb[0].mxu0
        %3979 = vmatprep.mubr.bf16.mxu0 0
        %3980 = vmatmul.mubr.bf16.gmra.mrb[0].mxu0 %v3891
        %v3981 = vpop.f32.mrb[0].mxu0
        %v3982 = vadd.f32 0.0, %v3981
        %v3983 = vpop.f32.mrb[0].mxu0
        %v3984 = vpop.f32.mrb[0].mxu0
        %v3985 = vadd.f32 0.0, %v3984
        %v3986 = vpop.f32.mrb[0].mxu0
        %3987 = vmatprep.mubr.bf16.mxu0 0
        %3988 = vmatmul.mubr.bf16.gmra.mrb[0].mxu0 %v3894
        %v3989 = vpop.f32.mrb[0].mxu0
        %v3990 = vadd.f32 0.0, %v3989
        %v3991 = vpop.f32.mrb[0].mxu0
        %v3992 = vpop.f32.mrb[0].mxu0
        %v3993 = vadd.f32 0.0, %v3992
        %v3994 = vpop.f32.mrb[0].mxu0
        %3995 = vmatprep.mubr.bf16.mxu0 0
        %3996 = vmatmul.mubr.bf16.gmra.mrb[0].mxu0 %v3897
        %v3997 = vpop.f32.mrb[0].mxu0
        %v3998 = vadd.f32 0.0, %v3997
        %v3999 = vpop.f32.mrb[0].mxu0
        %v4000 = vpop.f32.mrb[0].mxu0
        %v4001 = vpop.f32.mrb[0].mxu0
        %4002 = vdwg.mxu0
        %v4003 = vunpack.c.l.b16 %v3546
        %v4004 = vunpack.c.l.b16 %v3547
        %v4005 = vunpack.c.l.b16 %v3548
        %v4006 = vunpack.c.l.b16 %v3549
        %v4007 = vpack.c.b16 %v4004, %v4003
        %v4008 = vpack.c.b16 %v4006, %v4005
        %v4012 = vsel %vm1056, %v3577, 0
        %v4015 = vsel %vm1056, %v3578, 0
        %v4018 = vsel %vm1056, %v3579, 0
        %v4021 = vsel %vm1056, %v3580, 0
        %v4024 = vsel %vm1056, %v3581, 0
        %v4027 = vsel %vm1056, %v3582, 0
        %v4030 = vsel %vm1056, %v3583, 0
        %v4033 = vsel %vm1056, %v3584, 0
        %v4036 = vsel %vm1056, %v3585, 0
        %4038 = vmatprep.subr.bf16.mxu0 0
        %4039 = vmatpush1.bf16.msra.mxu0 %v4007
        %4040 = vmatprep.subr.bf16.mxu0 0
        %4041 = vmatpush1.bf16.msra.mxu0 %v4008
        %4042 = vmatprep.subr.bf16.mxu0 0
        %4043 = vmatpush1.bf16.msra.mxu0 0
        %4044 = vmatprep.subr.bf16.mxu0 0
        %4045 = vmatpush1.bf16.msra.mxu0 0
        %4046 = vmatprep.subr.bf16.mxu0 0
        %4047 = vmatpush1.bf16.msra.mxu0 0
        %4048 = vmatprep.subr.bf16.mxu0 0
        %4049 = vmatpush1.bf16.msra.mxu0 0
        %4050 = vmatprep.subr.bf16.mxu0 0
        %4051 = vmatpush1.bf16.msra.mxu0 0
        %4052 = vmatprep.subr.bf16.mxu0 0
        %4053 = vmatpush1.bf16.msra.mxu0 0
        %4054 = vmatprep.subr.bf16.mxu0 0
        %4055 = vmatpush1.bf16.msra.mxu0 0
        %4056 = vmatprep.subr.bf16.mxu0 0
        %4057 = vmatpush1.bf16.msra.mxu0 0
        %4058 = vmatprep.subr.bf16.mxu0 0
        %4059 = vmatpush1.bf16.msra.mxu0 0
        %4060 = vmatprep.subr.bf16.mxu0 0
        %4061 = vmatpush1.bf16.msra.mxu0 0
        %4062 = vmatprep.subr.bf16.mxu0 0
        %4063 = vmatpush1.bf16.msra.mxu0 0
        %4064 = vmatprep.subr.bf16.mxu0 0
        %4065 = vmatpush1.bf16.msra.mxu0 0
        %4066 = vmatprep.subr.bf16.mxu0 0
        %4067 = vmatpush1.bf16.msra.mxu0 0
        %4068 = vmatprep.subr.bf16.mxu0 0
        %4069 = vmatpush1.bf16.msra.mxu0 0
        %4070 = vmatprep.mubr.bf16.mxu0 0
        %4071 = vmatmul.mubr.bf16.gmra.mrb[0].mxu0 %v4012
        %v4072 = vpop.f32.mrb[0].mxu0
        %v4073 = vadd.f32 0.0, %v4072
        %v4074 = vpop.f32.mrb[0].mxu0
        %v4075 = vpop.f32.mrb[0].mxu0
        %v4076 = vadd.f32 0.0, %v4075
        %v4077 = vpop.f32.mrb[0].mxu0
        %4078 = vmatprep.mubr.bf16.mxu0 0
        %4079 = vmatmul.mubr.bf16.gmra.mrb[0].mxu0 %v4015
        %v4080 = vpop.f32.mrb[0].mxu0
        %v4081 = vadd.f32 0.0, %v4080
        %v4082 = vpop.f32.mrb[0].mxu0
        %v4083 = vpop.f32.mrb[0].mxu0
        %v4084 = vadd.f32 0.0, %v4083
        %v4085 = vpop.f32.mrb[0].mxu0
        %4086 = vmatprep.mubr.bf16.mxu0 0
        %4087 = vmatmul.mubr.bf16.gmra.mrb[0].mxu0 %v4018
        %v4088 = vpop.f32.mrb[0].mxu0
        %v4089 = vadd.f32 0.0, %v4088
        %v4090 = vpop.f32.mrb[0].mxu0
        %v4091 = vpop.f32.mrb[0].mxu0
        %v4092 = vadd.f32 0.0, %v4091
        %v4093 = vpop.f32.mrb[0].mxu0
        %4094 = vmatprep.mubr.bf16.mxu0 0
        %4095 = vmatmul.mubr.bf16.gmra.mrb[0].mxu0 %v4021
        %v4096 = vpop.f32.mrb[0].mxu0
        %v4097 = vadd.f32 0.0, %v4096
        %v4098 = vpop.f32.mrb[0].mxu0
        %v4099 = vpop.f32.mrb[0].mxu0
        %v4100 = vadd.f32 0.0, %v4099
        %v4101 = vpop.f32.mrb[0].mxu0
        %4102 = vmatprep.mubr.bf16.mxu0 0
        %4103 = vmatmul.mubr.bf16.gmra.mrb[0].mxu0 %v4024
        %v4104 = vpop.f32.mrb[0].mxu0
        %v4105 = vadd.f32 0.0, %v4104
        %v4106 = vpop.f32.mrb[0].mxu0
        %v4107 = vpop.f32.mrb[0].mxu0
        %v4108 = vadd.f32 0.0, %v4107
        %v4109 = vpop.f32.mrb[0].mxu0
        %4110 = vmatprep.mubr.bf16.mxu0 0
        %4111 = vmatmul.mubr.bf16.gmra.mrb[0].mxu0 %v4027
        %v4112 = vpop.f32.mrb[0].mxu0
        %v4113 = vadd.f32 0.0, %v4112
        %v4114 = vpop.f32.mrb[0].mxu0
        %v4115 = vpop.f32.mrb[0].mxu0
        %v4116 = vadd.f32 0.0, %v4115
        %v4117 = vpop.f32.mrb[0].mxu0
        %4118 = vmatprep.mubr.bf16.mxu0 0
        %4119 = vmatmul.mubr.bf16.gmra.mrb[0].mxu0 %v4030
        %v4120 = vpop.f32.mrb[0].mxu0
        %v4121 = vadd.f32 0.0, %v4120
        %v4122 = vpop.f32.mrb[0].mxu0
        %v4123 = vpop.f32.mrb[0].mxu0
        %v4124 = vadd.f32 0.0, %v4123
        %v4125 = vpop.f32.mrb[0].mxu0
        %4126 = vmatprep.mubr.bf16.mxu0 0
        %4127 = vmatmul.mubr.bf16.gmra.mrb[0].mxu0 %v4033
        %v4128 = vpop.f32.mrb[0].mxu0
        %v4129 = vadd.f32 0.0, %v4128
        %v4130 = vpop.f32.mrb[0].mxu0
        %v4131 = vpop.f32.mrb[0].mxu0
        %v4132 = vadd.f32 0.0, %v4131
        %v4133 = vpop.f32.mrb[0].mxu0
        %4134 = vmatprep.mubr.bf16.mxu0 0
        %4135 = vmatmul.mubr.bf16.gmra.mrb[0].mxu0 %v4036
        %v4136 = vpop.f32.mrb[0].mxu0
        %v4137 = vadd.f32 0.0, %v4136
        %v4138 = vpop.f32.mrb[0].mxu0
        %v4139 = vpop.f32.mrb[0].mxu0
        %v4140 = vpop.f32.mrb[0].mxu0
        %4141 = vdwg.mxu0
        %v4142 = vadd.f32 %v3656, %v3795
        %v4143 = vadd.f32 %v4142, %v3934
        %v4144 = vadd.f32 %v4143, %v4073
        %v4145 = vadd.f32 %v3659, %v3798
        %v4146 = vadd.f32 %v4145, %v3937
        %v4147 = vadd.f32 %v4146, %v4076
        %v4148 = vadd.f32 %v3664, %v3803
        %v4149 = vadd.f32 %v4148, %v3942
        %v4150 = vadd.f32 %v4149, %v4081
        %v4151 = vadd.f32 %v3667, %v3806
        %v4152 = vadd.f32 %v4151, %v3945
        %v4153 = vadd.f32 %v4152, %v4084
        %v4154 = vadd.f32 %v3672, %v3811
        %v4155 = vadd.f32 %v4154, %v3950
        %v4156 = vadd.f32 %v4155, %v4089
        %v4157 = vadd.f32 %v3675, %v3814
        %v4158 = vadd.f32 %v4157, %v3953
        %v4159 = vadd.f32 %v4158, %v4092
        %v4160 = vadd.f32 %v3680, %v3819
        %v4161 = vadd.f32 %v4160, %v3958
        %v4162 = vadd.f32 %v4161, %v4097
        %v4163 = vadd.f32 %v3683, %v3822
        %v4164 = vadd.f32 %v4163, %v3961
        %v4165 = vadd.f32 %v4164, %v4100
        %v4166 = vadd.f32 %v3688, %v3827
        %v4167 = vadd.f32 %v4166, %v3966
        %v4168 = vadd.f32 %v4167, %v4105
        %v4169 = vadd.f32 %v3691, %v3830
        %v4170 = vadd.f32 %v4169, %v3969
        %v4171 = vadd.f32 %v4170, %v4108
        %v4172 = vadd.f32 %v3696, %v3835
        %v4173 = vadd.f32 %v4172, %v3974
        %v4174 = vadd.f32 %v4173, %v4113
        %v4175 = vadd.f32 %v3699, %v3838
        %v4176 = vadd.f32 %v4175, %v3977
        %v4177 = vadd.f32 %v4176, %v4116
        %v4178 = vadd.f32 %v3704, %v3843
        %v4179 = vadd.f32 %v4178, %v3982
        %v4180 = vadd.f32 %v4179, %v4121
        %v4181 = vadd.f32 %v3707, %v3846
        %v4182 = vadd.f32 %v4181, %v3985
        %v4183 = vadd.f32 %v4182, %v4124
        %v4184 = vadd.f32 %v3712, %v3851
        %v4185 = vadd.f32 %v4184, %v3990
        %v4186 = vadd.f32 %v4185, %v4129
        %v4187 = vadd.f32 %v3715, %v3854
        %v4188 = vadd.f32 %v4187, %v3993
        %v4189 = vadd.f32 %v4188, %v4132
        %v4190 = vsel %vm1822, %v3720, 0.0
        %v4191 = vsel %vm1822, %v3859, 0.0
        %v4192 = vadd.f32 %v4190, %v4191
        %v4193 = vsel %vm1822, %v3998, 0.0
        %v4194 = vadd.f32 %v4192, %v4193
        %v4195 = vsel %vm1822, %v4137, 0.0
        %v4196 = vadd.f32 %v4194, %v4195
        %v4197 = vlaneseq
        %v4198 = vshrl.u32 %v4197, 7
        %v4199 = vsub.s32 3, %v4198
        %v4200 = vrot.slane %v372, %v4199
        %v4201 = vadd.f32 %v4144, %v4200
        %v4202 = vadd.f32 %v4147, %v4200
        %v4203 = vadd.f32 %v4150, %v4200
        %v4204 = vadd.f32 %v4153, %v4200
        %v4205 = vadd.f32 %v4156, %v4200
        %v4206 = vadd.f32 %v4159, %v4200
        %v4207 = vadd.f32 %v4162, %v4200
        %v4208 = vadd.f32 %v4165, %v4200
        %v4209 = vadd.f32 %v4168, %v4200
        %v4210 = vadd.f32 %v4171, %v4200
        %v4211 = vadd.f32 %v4174, %v4200
        %v4212 = vadd.f32 %v4177, %v4200
        %v4213 = vadd.f32 %v4180, %v4200
        %v4214 = vadd.f32 %v4183, %v4200
        %v4215 = vadd.f32 %v4186, %v4200
        %v4216 = vadd.f32 %v4189, %v4200
        %v4217 = vadd.f32 %v4196, %v4200
        %v4218 = vadd.f32 %v302, %v4201
        %v4219 = vadd.f32 %v303, %v4202
        %v4220 = vadd.f32 %v304, %v4203
        %v4221 = vadd.f32 %v305, %v4204
        %v4222 = vadd.f32 %v306, %v4205
        %v4223 = vadd.f32 %v307, %v4206
        %v4224 = vadd.f32 %v308, %v4207
        %v4225 = vadd.f32 %v309, %v4208
        %v4226 = vadd.f32 %v310, %v4209
        %v4227 = vadd.f32 %v311, %v4210
        %v4228 = vadd.f32 %v312, %v4211
        %v4229 = vadd.f32 %v313, %v4212
        %v4230 = vadd.f32 %v314, %v4213
        %v4231 = vadd.f32 %v315, %v4214
        %v4232 = vadd.f32 %v316, %v4215
        %v4233 = vadd.f32 %v317, %v4216
        %v4234 = vadd.f32 %v318, %v4217
        %4235 = vadd.xlane.f32.xlu0 %v4218
        %v4236 = vpop.xlane.xlu0 %4235
        %4237 = vadd.xlane.f32.xlu0 %v4219
        %v4238 = vpop.xlane.xlu0 %4237
        %4239 = vadd.xlane.f32.xlu0 %v4220
        %v4240 = vpop.xlane.xlu0 %4239
        %4241 = vadd.xlane.f32.xlu0 %v4221
        %v4242 = vpop.xlane.xlu0 %4241
        %4243 = vadd.xlane.f32.xlu0 %v4222
        %v4244 = vpop.xlane.xlu0 %4243
        %4245 = vadd.xlane.f32.xlu0 %v4223
        %v4246 = vpop.xlane.xlu0 %4245
        %4247 = vadd.xlane.f32.xlu0 %v4224
        %v4248 = vpop.xlane.xlu0 %4247
        %4249 = vadd.xlane.f32.xlu0 %v4225
        %v4250 = vpop.xlane.xlu0 %4249
        %4251 = vadd.xlane.f32.xlu0 %v4226
        %v4252 = vpop.xlane.xlu0 %4251
        %4253 = vadd.xlane.f32.xlu0 %v4227
        %v4254 = vpop.xlane.xlu0 %4253
        %4255 = vadd.xlane.f32.xlu0 %v4228
        %v4256 = vpop.xlane.xlu0 %4255
        %4257 = vadd.xlane.f32.xlu0 %v4229
        %v4258 = vpop.xlane.xlu0 %4257
        %4259 = vadd.xlane.f32.xlu0 %v4230
        %v4260 = vpop.xlane.xlu0 %4259
        %4261 = vadd.xlane.f32.xlu0 %v4231
        %v4262 = vpop.xlane.xlu0 %4261
        %4263 = vadd.xlane.f32.xlu0 %v4232
        %v4264 = vpop.xlane.xlu0 %4263
        %4265 = vadd.xlane.f32.xlu0 %v4233
        %v4266 = vpop.xlane.xlu0 %4265
        %v4267 = vsel %vm1822, %v4234, 0.0
        %4268 = vadd.xlane.f32.xlu0 %v4267
        %v4269 = vpop.xlane.xlu0 %4268
        %v4270 = vrcp.pop 128.0
        %v4271 = vmul.f32 %v4236, %v4270
        %v4272 = vmul.f32 %v4238, %v4270
        %v4273 = vmul.f32 %v4240, %v4270
        %v4274 = vmul.f32 %v4242, %v4270
        %v4275 = vmul.f32 %v4244, %v4270
        %v4276 = vmul.f32 %v4246, %v4270
        %v4277 = vmul.f32 %v4248, %v4270
        %v4278 = vmul.f32 %v4250, %v4270
        %v4279 = vmul.f32 %v4252, %v4270
        %v4280 = vmul.f32 %v4254, %v4270
        %v4281 = vmul.f32 %v4256, %v4270
        %v4282 = vmul.f32 %v4258, %v4270
        %v4283 = vmul.f32 %v4260, %v4270
        %v4284 = vmul.f32 %v4262, %v4270
        %v4285 = vmul.f32 %v4264, %v4270
        %v4286 = vmul.f32 %v4266, %v4270
        %v4287 = vmul.f32 %v4269, %v4270
        %v4288 = vsub.f32 %v4218, %v4271
        %v4289 = vsub.f32 %v4219, %v4272
        %v4290 = vsub.f32 %v4220, %v4273
        %v4291 = vsub.f32 %v4221, %v4274
        %v4292 = vsub.f32 %v4222, %v4275
        %v4293 = vsub.f32 %v4223, %v4276
        %v4294 = vsub.f32 %v4224, %v4277
        %v4295 = vsub.f32 %v4225, %v4278
        %v4296 = vsub.f32 %v4226, %v4279
        %v4297 = vsub.f32 %v4227, %v4280
        %v4298 = vsub.f32 %v4228, %v4281
        %v4299 = vsub.f32 %v4229, %v4282
        %v4300 = vsub.f32 %v4230, %v4283
        %v4301 = vsub.f32 %v4231, %v4284
        %v4302 = vsub.f32 %v4232, %v4285
        %v4303 = vsub.f32 %v4233, %v4286
        %v4304 = vsub.f32 %v4234, %v4287
        %v4305 = vmul.f32 %v4288, %v4288
        %v4306 = vmul.f32 %v4289, %v4289
        %v4307 = vmul.f32 %v4290, %v4290
        %v4308 = vmul.f32 %v4291, %v4291
        %v4309 = vmul.f32 %v4292, %v4292
        %v4310 = vmul.f32 %v4293, %v4293
        %v4311 = vmul.f32 %v4294, %v4294
        %v4312 = vmul.f32 %v4295, %v4295
        %v4313 = vmul.f32 %v4296, %v4296
        %v4314 = vmul.f32 %v4297, %v4297
        %v4315 = vmul.f32 %v4298, %v4298
        %v4316 = vmul.f32 %v4299, %v4299
        %v4317 = vmul.f32 %v4300, %v4300
        %v4318 = vmul.f32 %v4301, %v4301
        %v4319 = vmul.f32 %v4302, %v4302
        %v4320 = vmul.f32 %v4303, %v4303
        %v4321 = vmul.f32 %v4304, %v4304
        %4322 = vadd.xlane.f32.xlu0 %v4305
        %v4323 = vpop.xlane.xlu0 %4322
        %4324 = vadd.xlane.f32.xlu0 %v4306
        %v4325 = vpop.xlane.xlu0 %4324
        %4326 = vadd.xlane.f32.xlu0 %v4307
        %v4327 = vpop.xlane.xlu0 %4326
        %4328 = vadd.xlane.f32.xlu0 %v4308
        %v4329 = vpop.xlane.xlu0 %4328
        %4330 = vadd.xlane.f32.xlu0 %v4309
        %v4331 = vpop.xlane.xlu0 %4330
        %4332 = vadd.xlane.f32.xlu0 %v4310
        %v4333 = vpop.xlane.xlu0 %4332
        %4334 = vadd.xlane.f32.xlu0 %v4311
        %v4335 = vpop.xlane.xlu0 %4334
        %4336 = vadd.xlane.f32.xlu0 %v4312
        %v4337 = vpop.xlane.xlu0 %4336
        %4338 = vadd.xlane.f32.xlu0 %v4313
        %v4339 = vpop.xlane.xlu0 %4338
        %4340 = vadd.xlane.f32.xlu0 %v4314
        %v4341 = vpop.xlane.xlu0 %4340
        %4342 = vadd.xlane.f32.xlu0 %v4315
        %v4343 = vpop.xlane.xlu0 %4342
        %4344 = vadd.xlane.f32.xlu0 %v4316
        %v4345 = vpop.xlane.xlu0 %4344
        %4346 = vadd.xlane.f32.xlu0 %v4317
        %v4347 = vpop.xlane.xlu0 %4346
        %4348 = vadd.xlane.f32.xlu0 %v4318
        %v4349 = vpop.xlane.xlu0 %4348
        %4350 = vadd.xlane.f32.xlu0 %v4319
        %v4351 = vpop.xlane.xlu0 %4350
        %4352 = vadd.xlane.f32.xlu0 %v4320
        %v4353 = vpop.xlane.xlu0 %4352
        %v4354 = vsel %vm1822, %v4321, 0.0
        %4355 = vadd.xlane.f32.xlu0 %v4354
        %v4356 = vpop.xlane.xlu0 %4355
        %v4357 = vmul.f32 %v4323, %v4270
        %v4358 = vmul.f32 %v4325, %v4270
        %v4359 = vmul.f32 %v4327, %v4270
        %v4360 = vmul.f32 %v4329, %v4270
        %v4361 = vmul.f32 %v4331, %v4270
        %v4362 = vmul.f32 %v4333, %v4270
        %v4363 = vmul.f32 %v4335, %v4270
        %v4364 = vmul.f32 %v4337, %v4270
        %v4365 = vmul.f32 %v4339, %v4270
        %v4366 = vmul.f32 %v4341, %v4270
        %v4367 = vmul.f32 %v4343, %v4270
        %v4368 = vmul.f32 %v4345, %v4270
        %v4369 = vmul.f32 %v4347, %v4270
        %v4370 = vmul.f32 %v4349, %v4270
        %v4371 = vmul.f32 %v4351, %v4270
        %v4372 = vmul.f32 %v4353, %v4270
        %v4373 = vmul.f32 %v4356, %v4270
        %v4374 = vadd.f32 %v4357, 1e-05
        %v4375 = vadd.f32 %v4358, 1e-05
        %v4376 = vadd.f32 %v4359, 1e-05
        %v4377 = vadd.f32 %v4360, 1e-05
        %v4378 = vadd.f32 %v4361, 1e-05
        %v4379 = vadd.f32 %v4362, 1e-05
        %v4380 = vadd.f32 %v4363, 1e-05
        %v4381 = vadd.f32 %v4364, 1e-05
        %v4382 = vadd.f32 %v4365, 1e-05
        %v4383 = vadd.f32 %v4366, 1e-05
        %v4384 = vadd.f32 %v4367, 1e-05
        %v4385 = vadd.f32 %v4368, 1e-05
        %v4386 = vadd.f32 %v4369, 1e-05
        %v4387 = vadd.f32 %v4370, 1e-05
        %v4388 = vadd.f32 %v4371, 1e-05
        %v4389 = vadd.f32 %v4372, 1e-05
        %v4390 = vadd.f32 %v4373, 1e-05
        %v4391 = vrsqrt.pop %v4374
        %v4392 = vrsqrt.pop %v4375
        %v4393 = vrsqrt.pop %v4376
        %v4394 = vrsqrt.pop %v4377
        %v4395 = vrsqrt.pop %v4378
        %v4396 = vrsqrt.pop %v4379
        %v4397 = vrsqrt.pop %v4380
        %v4398 = vrsqrt.pop %v4381
        %v4399 = vrsqrt.pop %v4382
        %v4400 = vrsqrt.pop %v4383
        %v4401 = vrsqrt.pop %v4384
        %v4402 = vrsqrt.pop %v4385
        %v4403 = vrsqrt.pop %v4386
        %v4404 = vrsqrt.pop %v4387
        %v4405 = vrsqrt.pop %v4388
        %v4406 = vrsqrt.pop %v4389
        %v4407 = vrsqrt.pop %v4390
        %v4408 = vmul.f32 %v4288, %v4391
        %v4409 = vmul.f32 %v4289, %v4392
        %v4410 = vmul.f32 %v4290, %v4393
        %v4411 = vmul.f32 %v4291, %v4394
        %v4412 = vmul.f32 %v4292, %v4395
        %v4413 = vmul.f32 %v4293, %v4396
        %v4414 = vmul.f32 %v4294, %v4397
        %v4415 = vmul.f32 %v4295, %v4398
        %v4416 = vmul.f32 %v4296, %v4399
        %v4417 = vmul.f32 %v4297, %v4400
        %v4418 = vmul.f32 %v4298, %v4401
        %v4419 = vmul.f32 %v4299, %v4402
        %v4420 = vmul.f32 %v4300, %v4403
        %v4421 = vmul.f32 %v4301, %v4404
        %v4422 = vmul.f32 %v4302, %v4405
        %v4423 = vmul.f32 %v4303, %v4406
        %v4424 = vmul.f32 %v4304, %v4407
        %v4425 = vlaneseq
        %v4426 = vshrl.u32 %v4425, 7
        %v4427 = vsub.s32 4, %v4426
        %v4428 = vrot.slane %v372, %v4427
        %v4429 = vmul.f32 %v4408, %v4428
        %v4430 = vmul.f32 %v4409, %v4428
        %v4431 = vmul.f32 %v4410, %v4428
        %v4432 = vmul.f32 %v4411, %v4428
        %v4433 = vmul.f32 %v4412, %v4428
        %v4434 = vmul.f32 %v4413, %v4428
        %v4435 = vmul.f32 %v4414, %v4428
        %v4436 = vmul.f32 %v4415, %v4428
        %v4437 = vmul.f32 %v4416, %v4428
        %v4438 = vmul.f32 %v4417, %v4428
        %v4439 = vmul.f32 %v4418, %v4428
        %v4440 = vmul.f32 %v4419, %v4428
        %v4441 = vmul.f32 %v4420, %v4428
        %v4442 = vmul.f32 %v4421, %v4428
        %v4443 = vmul.f32 %v4422, %v4428
        %v4444 = vmul.f32 %v4423, %v4428
        %v4445 = vmul.f32 %v4424, %v4428
        %v4446 = vlaneseq
        %v4447 = vshrl.u32 %v4446, 7
        %v4448 = vsub.s32 5, %v4447
        %v4449 = vrot.slane %v372, %v4448
        %v4450 = vadd.f32 %v4429, %v4449
        %v4451 = vadd.f32 %v4430, %v4449
        %v4452 = vadd.f32 %v4431, %v4449
        %v4453 = vadd.f32 %v4432, %v4449
        %v4454 = vadd.f32 %v4433, %v4449
        %v4455 = vadd.f32 %v4434, %v4449
        %v4456 = vadd.f32 %v4435, %v4449
        %v4457 = vadd.f32 %v4436, %v4449
        %v4458 = vadd.f32 %v4437, %v4449
        %v4459 = vadd.f32 %v4438, %v4449
        %v4460 = vadd.f32 %v4439, %v4449
        %v4461 = vadd.f32 %v4440, %v4449
        %v4462 = vadd.f32 %v4441, %v4449
        %v4463 = vadd.f32 %v4442, %v4449
        %v4464 = vadd.f32 %v4443, %v4449
        %v4465 = vadd.f32 %v4444, %v4449
        %v4466 = vadd.f32 %v4445, %v4449
        %v4467 = vpack.c.bf16 %v4451, %v4450
        %v4468 = vpack.c.bf16 %v4453, %v4452
        %v4469 = vpack.c.bf16 %v4455, %v4454
        %v4470 = vpack.c.bf16 %v4457, %v4456
        %v4471 = vpack.c.bf16 %v4459, %v4458
        %v4472 = vpack.c.bf16 %v4461, %v4460
        %v4473 = vpack.c.bf16 %v4463, %v4462
        %v4474 = vpack.c.bf16 %v4465, %v4464
        %v4475 = vpack.c.bf16 %v4466, %v4466
        %v4476 = vlaneseq
        %v4477 = vshrl.u32 %v4476, 7
        %v4478 = vsub.s32 6, %v4477
        %v4479 = vrot.slane %v372, %v4478
        %v4496 = vunpack.c.l.b16 %v324
        %v4497 = vunpack.c.l.b16 %v327
        %v4498 = vunpack.c.l.b16 %v330
        %v4499 = vunpack.c.l.b16 %v333
        %v4500 = vunpack.c.l.b16 %v336
        %v4501 = vunpack.c.l.b16 %v339
        %v4502 = vunpack.c.l.b16 %v342
        %v4503 = vunpack.c.l.b16 %v345
        %v4504 = vunpack.c.l.b16 %v348
        %v4505 = vunpack.c.l.b16 %v351
        %v4506 = vunpack.c.l.b16 %v354
        %v4507 = vunpack.c.l.b16 %v357
        %v4508 = vunpack.c.l.b16 %v360
        %v4509 = vunpack.c.l.b16 %v363
        %v4510 = vunpack.c.l.b16 %v366
        %v4511 = vunpack.c.l.b16 %v369
        %v4512 = vpack.c.b16 %v4497, %v4496
        %v4513 = vpack.c.b16 %v4499, %v4498
        %v4514 = vpack.c.b16 %v4501, %v4500
        %v4515 = vpack.c.b16 %v4503, %v4502
        %v4516 = vpack.c.b16 %v4505, %v4504
        %v4517 = vpack.c.b16 %v4507, %v4506
        %v4518 = vpack.c.b16 %v4509, %v4508
        %v4519 = vpack.c.b16 %v4511, %v4510
        %4528 = vmatprep.subr.bf16.mxu0 0
        %4529 = vmatpush1.bf16.msra.mxu0 %v4512
        %4530 = vmatprep.subr.bf16.mxu0 0
        %4531 = vmatpush1.bf16.msra.mxu0 %v4513
        %4532 = vmatprep.subr.bf16.mxu0 0
        %4533 = vmatpush1.bf16.msra.mxu0 %v4514
        %4534 = vmatprep.subr.bf16.mxu0 0
        %4535 = vmatpush1.bf16.msra.mxu0 %v4515
        %4536 = vmatprep.subr.bf16.mxu0 0
        %4537 = vmatpush1.bf16.msra.mxu0 %v4516
        %4538 = vmatprep.subr.bf16.mxu0 0
        %4539 = vmatpush1.bf16.msra.mxu0 %v4517
        %4540 = vmatprep.subr.bf16.mxu0 0
        %4541 = vmatpush1.bf16.msra.mxu0 %v4518
        %4542 = vmatprep.subr.bf16.mxu0 0
        %4543 = vmatpush1.bf16.msra.mxu0 %v4519
        %4544 = vmatprep.subr.bf16.mxu0 0
        %4545 = vmatpush1.bf16.msra.mxu0 0
        %4546 = vmatprep.subr.bf16.mxu0 0
        %4547 = vmatpush1.bf16.msra.mxu0 0
        %4548 = vmatprep.subr.bf16.mxu0 0
        %4549 = vmatpush1.bf16.msra.mxu0 0
        %4550 = vmatprep.subr.bf16.mxu0 0
        %4551 = vmatpush1.bf16.msra.mxu0 0
        %4552 = vmatprep.subr.bf16.mxu0 0
        %4553 = vmatpush1.bf16.msra.mxu0 0
        %4554 = vmatprep.subr.bf16.mxu0 0
        %4555 = vmatpush1.bf16.msra.mxu0 0
        %4556 = vmatprep.subr.bf16.mxu0 0
        %4557 = vmatpush1.bf16.msra.mxu0 0
        %4558 = vmatprep.subr.bf16.mxu0 0
        %4559 = vmatpush1.bf16.msra.mxu0 0
        %4560 = vmatprep.mubr.bf16.mxu0 0
        %4561 = vmatmul.mubr.bf16.gmra.mrb[0].mxu0 %v4467
        %v4562 = vpop.f32.mrb[0].mxu0
        %v4563 = vadd.f32 %v4479, %v4562
        %v4564 = vpop.f32.mrb[0].mxu0
        %v4565 = vpop.f32.mrb[0].mxu0
        %v4566 = vadd.f32 %v4479, %v4565
        %v4567 = vpop.f32.mrb[0].mxu0
        %4568 = vmatprep.mubr.bf16.mxu0 0
        %4569 = vmatmul.mubr.bf16.gmra.mrb[0].mxu0 %v4468
        %v4570 = vpop.f32.mrb[0].mxu0
        %v4571 = vadd.f32 %v4479, %v4570
        %v4572 = vpop.f32.mrb[0].mxu0
        %v4573 = vpop.f32.mrb[0].mxu0
        %v4574 = vadd.f32 %v4479, %v4573
        %v4575 = vpop.f32.mrb[0].mxu0
        %4576 = vmatprep.mubr.bf16.mxu0 0
        %4577 = vmatmul.mubr.bf16.gmra.mrb[0].mxu0 %v4469
        %v4578 = vpop.f32.mrb[0].mxu0
        %v4579 = vadd.f32 %v4479, %v4578
        %v4580 = vpop.f32.mrb[0].mxu0
        %v4581 = vpop.f32.mrb[0].mxu0
        %v4582 = vadd.f32 %v4479, %v4581
        %v4583 = vpop.f32.mrb[0].mxu0
        %4584 = vmatprep.mubr.bf16.mxu0 0
        %4585 = vmatmul.mubr.bf16.gmra.mrb[0].mxu0 %v4470
        %v4586 = vpop.f32.mrb[0].mxu0
        %v4587 = vadd.f32 %v4479, %v4586
        %v4588 = vpop.f32.mrb[0].mxu0
        %v4589 = vpop.f32.mrb[0].mxu0
        %v4590 = vadd.f32 %v4479, %v4589
        %v4591 = vpop.f32.mrb[0].mxu0
        %4592 = vmatprep.mubr.bf16.mxu0 0
        %4593 = vmatmul.mubr.bf16.gmra.mrb[0].mxu0 %v4471
        %v4594 = vpop.f32.mrb[0].mxu0
        %v4595 = vadd.f32 %v4479, %v4594
        %v4596 = vpop.f32.mrb[0].mxu0
        %v4597 = vpop.f32.mrb[0].mxu0
        %v4598 = vadd.f32 %v4479, %v4597
        %v4599 = vpop.f32.mrb[0].mxu0
        %4600 = vmatprep.mubr.bf16.mxu0 0
        %4601 = vmatmul.mubr.bf16.gmra.mrb[0].mxu0 %v4472
        %v4602 = vpop.f32.mrb[0].mxu0
        %v4603 = vadd.f32 %v4479, %v4602
        %v4604 = vpop.f32.mrb[0].mxu0
        %v4605 = vpop.f32.mrb[0].mxu0
        %v4606 = vadd.f32 %v4479, %v4605
        %v4607 = vpop.f32.mrb[0].mxu0
        %4608 = vmatprep.mubr.bf16.mxu0 0
        %4609 = vmatmul.mubr.bf16.gmra.mrb[0].mxu0 %v4473
        %v4610 = vpop.f32.mrb[0].mxu0
        %v4611 = vadd.f32 %v4479, %v4610
        %v4612 = vpop.f32.mrb[0].mxu0
        %v4613 = vpop.f32.mrb[0].mxu0
        %v4614 = vadd.f32 %v4479, %v4613
        %v4615 = vpop.f32.mrb[0].mxu0
        %4616 = vmatprep.mubr.bf16.mxu0 0
        %4617 = vmatmul.mubr.bf16.gmra.mrb[0].mxu0 %v4474
        %v4618 = vpop.f32.mrb[0].mxu0
        %v4619 = vadd.f32 %v4479, %v4618
        %v4620 = vpop.f32.mrb[0].mxu0
        %v4621 = vpop.f32.mrb[0].mxu0
        %v4622 = vadd.f32 %v4479, %v4621
        %v4623 = vpop.f32.mrb[0].mxu0
        %4624 = vmatprep.mubr.bf16.mxu0 0
        %4625 = vmatmul.mubr.bf16.gmra.mrb[0].mxu0 %v4475
        %v4626 = vpop.f32.mrb[0].mxu0
        %v4627 = vadd.f32 %v4479, %v4626
        %v4628 = vpop.f32.mrb[0].mxu0
        %v4629 = vpop.f32.mrb[0].mxu0
        %v4630 = vpop.f32.mrb[0].mxu0
        %4631 = vdwg.mxu0
        %v4632 = vmax.f32 %v4563, 0.0
        %v4633 = vmax.f32 %v4566, 0.0
        %v4634 = vmax.f32 %v4571, 0.0
        %v4635 = vmax.f32 %v4574, 0.0
        %v4636 = vmax.f32 %v4579, 0.0
        %v4637 = vmax.f32 %v4582, 0.0
        %v4638 = vmax.f32 %v4587, 0.0
        %v4639 = vmax.f32 %v4590, 0.0
        %v4640 = vmax.f32 %v4595, 0.0
        %v4641 = vmax.f32 %v4598, 0.0
        %v4642 = vmax.f32 %v4603, 0.0
        %v4643 = vmax.f32 %v4606, 0.0
        %v4644 = vmax.f32 %v4611, 0.0
        %v4645 = vmax.f32 %v4614, 0.0
        %v4646 = vmax.f32 %v4619, 0.0
        %v4647 = vmax.f32 %v4622, 0.0
        %v4648 = vmax.f32 %v4627, 0.0
        %v4649 = vpack.c.bf16 %v4633, %v4632
        %v4650 = vpack.c.bf16 %v4635, %v4634
        %v4651 = vpack.c.bf16 %v4637, %v4636
        %v4652 = vpack.c.bf16 %v4639, %v4638
        %v4653 = vpack.c.bf16 %v4641, %v4640
        %v4654 = vpack.c.bf16 %v4643, %v4642
        %v4655 = vpack.c.bf16 %v4645, %v4644
        %v4656 = vpack.c.bf16 %v4647, %v4646
        %v4657 = vpack.c.bf16 %v4648, %v4648
        %v4658 = vlaneseq
        %v4659 = vshrl.u32 %v4658, 7
        %v4660 = vsub.s32 7, %v4659
        %v4661 = vrot.slane %v372, %v4660
        %v4662 = vunpack.c.h.b16 %v324
        %v4663 = vunpack.c.h.b16 %v327
        %v4664 = vunpack.c.h.b16 %v330
        %v4665 = vunpack.c.h.b16 %v333
        %v4666 = vunpack.c.h.b16 %v336
        %v4667 = vunpack.c.h.b16 %v339
        %v4668 = vunpack.c.h.b16 %v342
        %v4669 = vunpack.c.h.b16 %v345
        %v4670 = vunpack.c.h.b16 %v348
        %v4671 = vunpack.c.h.b16 %v351
        %v4672 = vunpack.c.h.b16 %v354
        %v4673 = vunpack.c.h.b16 %v357
        %v4674 = vunpack.c.h.b16 %v360
        %v4675 = vunpack.c.h.b16 %v363
        %v4676 = vunpack.c.h.b16 %v366
        %v4677 = vunpack.c.h.b16 %v369
        %v4678 = vpack.c.b16 %v4663, %v4662
        %v4679 = vpack.c.b16 %v4665, %v4664
        %v4680 = vpack.c.b16 %v4667, %v4666
        %v4681 = vpack.c.b16 %v4669, %v4668
        %v4682 = vpack.c.b16 %v4671, %v4670
        %v4683 = vpack.c.b16 %v4673, %v4672
        %v4684 = vpack.c.b16 %v4675, %v4674
        %v4685 = vpack.c.b16 %v4677, %v4676
        %4694 = vmatprep.subr.bf16.mxu0 0
        %4695 = vmatpush1.bf16.msra.mxu0 %v4678
        %4696 = vmatprep.subr.bf16.mxu0 0
        %4697 = vmatpush1.bf16.msra.mxu0 %v4679
        %4698 = vmatprep.subr.bf16.mxu0 0
        %4699 = vmatpush1.bf16.msra.mxu0 %v4680
        %4700 = vmatprep.subr.bf16.mxu0 0
        %4701 = vmatpush1.bf16.msra.mxu0 %v4681
        %4702 = vmatprep.subr.bf16.mxu0 0
        %4703 = vmatpush1.bf16.msra.mxu0 %v4682
        %4704 = vmatprep.subr.bf16.mxu0 0
        %4705 = vmatpush1.bf16.msra.mxu0 %v4683
        %4706 = vmatprep.subr.bf16.mxu0 0
        %4707 = vmatpush1.bf16.msra.mxu0 %v4684
        %4708 = vmatprep.subr.bf16.mxu0 0
        %4709 = vmatpush1.bf16.msra.mxu0 %v4685
        %4710 = vmatprep.subr.bf16.mxu0 0
        %4711 = vmatpush1.bf16.msra.mxu0 0
        %4712 = vmatprep.subr.bf16.mxu0 0
        %4713 = vmatpush1.bf16.msra.mxu0 0
        %4714 = vmatprep.subr.bf16.mxu0 0
        %4715 = vmatpush1.bf16.msra.mxu0 0
        %4716 = vmatprep.subr.bf16.mxu0 0
        %4717 = vmatpush1.bf16.msra.mxu0 0
        %4718 = vmatprep.subr.bf16.mxu0 0
        %4719 = vmatpush1.bf16.msra.mxu0 0
        %4720 = vmatprep.subr.bf16.mxu0 0
        %4721 = vmatpush1.bf16.msra.mxu0 0
        %4722 = vmatprep.subr.bf16.mxu0 0
        %4723 = vmatpush1.bf16.msra.mxu0 0
        %4724 = vmatprep.subr.bf16.mxu0 0
        %4725 = vmatpush1.bf16.msra.mxu0 0
        %4726 = vmatprep.mubr.bf16.mxu0 0
        %4727 = vmatmul.mubr.bf16.gmra.mrb[0].mxu0 %v4649
        %v4728 = vpop.f32.mrb[0].mxu0
        %v4729 = vadd.f32 %v4661, %v4728
        %v4730 = vpop.f32.mrb[0].mxu0
        %v4731 = vpop.f32.mrb[0].mxu0
        %v4732 = vadd.f32 %v4661, %v4731
        %v4733 = vpop.f32.mrb[0].mxu0
        %4734 = vmatprep.mubr.bf16.mxu0 0
        %4735 = vmatmul.mubr.bf16.gmra.mrb[0].mxu0 %v4650
        %v4736 = vpop.f32.mrb[0].mxu0
        %v4737 = vadd.f32 %v4661, %v4736
        %v4738 = vpop.f32.mrb[0].mxu0
        %v4739 = vpop.f32.mrb[0].mxu0
        %v4740 = vadd.f32 %v4661, %v4739
        %v4741 = vpop.f32.mrb[0].mxu0
        %4742 = vmatprep.mubr.bf16.mxu0 0
        %4743 = vmatmul.mubr.bf16.gmra.mrb[0].mxu0 %v4651
        %v4744 = vpop.f32.mrb[0].mxu0
        %v4745 = vadd.f32 %v4661, %v4744
        %v4746 = vpop.f32.mrb[0].mxu0
        %v4747 = vpop.f32.mrb[0].mxu0
        %v4748 = vadd.f32 %v4661, %v4747
        %v4749 = vpop.f32.mrb[0].mxu0
        %4750 = vmatprep.mubr.bf16.mxu0 0
        %4751 = vmatmul.mubr.bf16.gmra.mrb[0].mxu0 %v4652
        %v4752 = vpop.f32.mrb[0].mxu0
        %v4753 = vadd.f32 %v4661, %v4752
        %v4754 = vpop.f32.mrb[0].mxu0
        %v4755 = vpop.f32.mrb[0].mxu0
        %v4756 = vadd.f32 %v4661, %v4755
        %v4757 = vpop.f32.mrb[0].mxu0
        %4758 = vmatprep.mubr.bf16.mxu0 0
        %4759 = vmatmul.mubr.bf16.gmra.mrb[0].mxu0 %v4653
        %v4760 = vpop.f32.mrb[0].mxu0
        %v4761 = vadd.f32 %v4661, %v4760
        %v4762 = vpop.f32.mrb[0].mxu0
        %v4763 = vpop.f32.mrb[0].mxu0
        %v4764 = vadd.f32 %v4661, %v4763
        %v4765 = vpop.f32.mrb[0].mxu0
        %4766 = vmatprep.mubr.bf16.mxu0 0
        %4767 = vmatmul.mubr.bf16.gmra.mrb[0].mxu0 %v4654
        %v4768 = vpop.f32.mrb[0].mxu0
        %v4769 = vadd.f32 %v4661, %v4768
        %v4770 = vpop.f32.mrb[0].mxu0
        %v4771 = vpop.f32.mrb[0].mxu0
        %v4772 = vadd.f32 %v4661, %v4771
        %v4773 = vpop.f32.mrb[0].mxu0
        %4774 = vmatprep.mubr.bf16.mxu0 0
        %4775 = vmatmul.mubr.bf16.gmra.mrb[0].mxu0 %v4655
        %v4776 = vpop.f32.mrb[0].mxu0
        %v4777 = vadd.f32 %v4661, %v4776
        %v4778 = vpop.f32.mrb[0].mxu0
        %v4779 = vpop.f32.mrb[0].mxu0
        %v4780 = vadd.f32 %v4661, %v4779
        %v4781 = vpop.f32.mrb[0].mxu0
        %4782 = vmatprep.mubr.bf16.mxu0 0
        %4783 = vmatmul.mubr.bf16.gmra.mrb[0].mxu0 %v4656
        %v4784 = vpop.f32.mrb[0].mxu0
        %v4785 = vadd.f32 %v4661, %v4784
        %v4786 = vpop.f32.mrb[0].mxu0
        %v4787 = vpop.f32.mrb[0].mxu0
        %v4788 = vadd.f32 %v4661, %v4787
        %v4789 = vpop.f32.mrb[0].mxu0
        %4790 = vmatprep.mubr.bf16.mxu0 0
        %4791 = vmatmul.mubr.bf16.gmra.mrb[0].mxu0 %v4657
        %v4792 = vpop.f32.mrb[0].mxu0
        %v4793 = vadd.f32 %v4661, %v4792
        %v4794 = vpop.f32.mrb[0].mxu0
        %v4795 = vpop.f32.mrb[0].mxu0
        %v4796 = vpop.f32.mrb[0].mxu0
        %4797 = vdwg.mxu0
        %v4798 = vadd.f32 %v4450, %v4729
        %v4799 = vadd.f32 %v4451, %v4732
        %v4800 = vadd.f32 %v4452, %v4737
        %v4801 = vadd.f32 %v4453, %v4740
        %v4802 = vadd.f32 %v4454, %v4745
        %v4803 = vadd.f32 %v4455, %v4748
        %v4804 = vadd.f32 %v4456, %v4753
        %v4805 = vadd.f32 %v4457, %v4756
        %v4806 = vadd.f32 %v4458, %v4761
        %v4807 = vadd.f32 %v4459, %v4764
        %v4808 = vadd.f32 %v4460, %v4769
        %v4809 = vadd.f32 %v4461, %v4772
        %v4810 = vadd.f32 %v4462, %v4777
        %v4811 = vadd.f32 %v4463, %v4780
        %v4812 = vadd.f32 %v4464, %v4785
        %v4813 = vadd.f32 %v4465, %v4788
        %v4814 = vadd.f32 %v4466, %v4793
        %4815 = vadd.xlane.f32.xlu0 %v4798
        %v4816 = vpop.xlane.xlu0 %4815
        %4817 = vadd.xlane.f32.xlu0 %v4799
        %v4818 = vpop.xlane.xlu0 %4817
        %4819 = vadd.xlane.f32.xlu0 %v4800
        %v4820 = vpop.xlane.xlu0 %4819
        %4821 = vadd.xlane.f32.xlu0 %v4801
        %v4822 = vpop.xlane.xlu0 %4821
        %4823 = vadd.xlane.f32.xlu0 %v4802
        %v4824 = vpop.xlane.xlu0 %4823
        %4825 = vadd.xlane.f32.xlu0 %v4803
        %v4826 = vpop.xlane.xlu0 %4825
        %4827 = vadd.xlane.f32.xlu0 %v4804
        %v4828 = vpop.xlane.xlu0 %4827
        %4829 = vadd.xlane.f32.xlu0 %v4805
        %v4830 = vpop.xlane.xlu0 %4829
        %4831 = vadd.xlane.f32.xlu0 %v4806
        %v4832 = vpop.xlane.xlu0 %4831
        %4833 = vadd.xlane.f32.xlu0 %v4807
        %v4834 = vpop.xlane.xlu0 %4833
        %4835 = vadd.xlane.f32.xlu0 %v4808
        %v4836 = vpop.xlane.xlu0 %4835
        %4837 = vadd.xlane.f32.xlu0 %v4809
        %v4838 = vpop.xlane.xlu0 %4837
        %4839 = vadd.xlane.f32.xlu0 %v4810
        %v4840 = vpop.xlane.xlu0 %4839
        %4841 = vadd.xlane.f32.xlu0 %v4811
        %v4842 = vpop.xlane.xlu0 %4841
        %4843 = vadd.xlane.f32.xlu0 %v4812
        %v4844 = vpop.xlane.xlu0 %4843
        %4845 = vadd.xlane.f32.xlu0 %v4813
        %v4846 = vpop.xlane.xlu0 %4845
        %v4847 = vsel %vm1822, %v4814, 0.0
        %4848 = vadd.xlane.f32.xlu0 %v4847
        %v4849 = vpop.xlane.xlu0 %4848
        %v4850 = vmul.f32 %v4816, %v4270
        %v4851 = vmul.f32 %v4818, %v4270
        %v4852 = vmul.f32 %v4820, %v4270
        %v4853 = vmul.f32 %v4822, %v4270
        %v4854 = vmul.f32 %v4824, %v4270
        %v4855 = vmul.f32 %v4826, %v4270
        %v4856 = vmul.f32 %v4828, %v4270
        %v4857 = vmul.f32 %v4830, %v4270
        %v4858 = vmul.f32 %v4832, %v4270
        %v4859 = vmul.f32 %v4834, %v4270
        %v4860 = vmul.f32 %v4836, %v4270
        %v4861 = vmul.f32 %v4838, %v4270
        %v4862 = vmul.f32 %v4840, %v4270
        %v4863 = vmul.f32 %v4842, %v4270
        %v4864 = vmul.f32 %v4844, %v4270
        %v4865 = vmul.f32 %v4846, %v4270
        %v4866 = vmul.f32 %v4849, %v4270
        %v4867 = vsub.f32 %v4798, %v4850
        %v4868 = vsub.f32 %v4799, %v4851
        %v4869 = vsub.f32 %v4800, %v4852
        %v4870 = vsub.f32 %v4801, %v4853
        %v4871 = vsub.f32 %v4802, %v4854
        %v4872 = vsub.f32 %v4803, %v4855
        %v4873 = vsub.f32 %v4804, %v4856
        %v4874 = vsub.f32 %v4805, %v4857
        %v4875 = vsub.f32 %v4806, %v4858
        %v4876 = vsub.f32 %v4807, %v4859
        %v4877 = vsub.f32 %v4808, %v4860
        %v4878 = vsub.f32 %v4809, %v4861
        %v4879 = vsub.f32 %v4810, %v4862
        %v4880 = vsub.f32 %v4811, %v4863
        %v4881 = vsub.f32 %v4812, %v4864
        %v4882 = vsub.f32 %v4813, %v4865
        %v4883 = vsub.f32 %v4814, %v4866
        %v4884 = vmul.f32 %v4867, %v4867
        %v4885 = vmul.f32 %v4868, %v4868
        %v4886 = vmul.f32 %v4869, %v4869
        %v4887 = vmul.f32 %v4870, %v4870
        %v4888 = vmul.f32 %v4871, %v4871
        %v4889 = vmul.f32 %v4872, %v4872
        %v4890 = vmul.f32 %v4873, %v4873
        %v4891 = vmul.f32 %v4874, %v4874
        %v4892 = vmul.f32 %v4875, %v4875
        %v4893 = vmul.f32 %v4876, %v4876
        %v4894 = vmul.f32 %v4877, %v4877
        %v4895 = vmul.f32 %v4878, %v4878
        %v4896 = vmul.f32 %v4879, %v4879
        %v4897 = vmul.f32 %v4880, %v4880
        %v4898 = vmul.f32 %v4881, %v4881
        %v4899 = vmul.f32 %v4882, %v4882
        %v4900 = vmul.f32 %v4883, %v4883
        %4901 = vadd.xlane.f32.xlu0 %v4884
        %v4902 = vpop.xlane.xlu0 %4901
        %4903 = vadd.xlane.f32.xlu0 %v4885
        %v4904 = vpop.xlane.xlu0 %4903
        %4905 = vadd.xlane.f32.xlu0 %v4886
        %v4906 = vpop.xlane.xlu0 %4905
        %4907 = vadd.xlane.f32.xlu0 %v4887
        %v4908 = vpop.xlane.xlu0 %4907
        %4909 = vadd.xlane.f32.xlu0 %v4888
        %v4910 = vpop.xlane.xlu0 %4909
        %4911 = vadd.xlane.f32.xlu0 %v4889
        %v4912 = vpop.xlane.xlu0 %4911
        %4913 = vadd.xlane.f32.xlu0 %v4890
        %v4914 = vpop.xlane.xlu0 %4913
        %4915 = vadd.xlane.f32.xlu0 %v4891
        %v4916 = vpop.xlane.xlu0 %4915
        %4917 = vadd.xlane.f32.xlu0 %v4892
        %v4918 = vpop.xlane.xlu0 %4917
        %4919 = vadd.xlane.f32.xlu0 %v4893
        %v4920 = vpop.xlane.xlu0 %4919
        %4921 = vadd.xlane.f32.xlu0 %v4894
        %v4922 = vpop.xlane.xlu0 %4921
        %4923 = vadd.xlane.f32.xlu0 %v4895
        %v4924 = vpop.xlane.xlu0 %4923
        %4925 = vadd.xlane.f32.xlu0 %v4896
        %v4926 = vpop.xlane.xlu0 %4925
        %4927 = vadd.xlane.f32.xlu0 %v4897
        %v4928 = vpop.xlane.xlu0 %4927
        %4929 = vadd.xlane.f32.xlu0 %v4898
        %v4930 = vpop.xlane.xlu0 %4929
        %4931 = vadd.xlane.f32.xlu0 %v4899
        %v4932 = vpop.xlane.xlu0 %4931
        %v4933 = vsel %vm1822, %v4900, 0.0
        %4934 = vadd.xlane.f32.xlu0 %v4933
        %v4935 = vpop.xlane.xlu0 %4934
        %v4936 = vmul.f32 %v4902, %v4270
        %v4937 = vmul.f32 %v4904, %v4270
        %v4938 = vmul.f32 %v4906, %v4270
        %v4939 = vmul.f32 %v4908, %v4270
        %v4940 = vmul.f32 %v4910, %v4270
        %v4941 = vmul.f32 %v4912, %v4270
        %v4942 = vmul.f32 %v4914, %v4270
        %v4943 = vmul.f32 %v4916, %v4270
        %v4944 = vmul.f32 %v4918, %v4270
        %v4945 = vmul.f32 %v4920, %v4270
        %v4946 = vmul.f32 %v4922, %v4270
        %v4947 = vmul.f32 %v4924, %v4270
        %v4948 = vmul.f32 %v4926, %v4270
        %v4949 = vmul.f32 %v4928, %v4270
        %v4950 = vmul.f32 %v4930, %v4270
        %v4951 = vmul.f32 %v4932, %v4270
        %v4952 = vmul.f32 %v4935, %v4270
        %v4953 = vadd.f32 %v4936, 1e-05
        %v4954 = vadd.f32 %v4937, 1e-05
        %v4955 = vadd.f32 %v4938, 1e-05
        %v4956 = vadd.f32 %v4939, 1e-05
        %v4957 = vadd.f32 %v4940, 1e-05
        %v4958 = vadd.f32 %v4941, 1e-05
        %v4959 = vadd.f32 %v4942, 1e-05
        %v4960 = vadd.f32 %v4943, 1e-05
        %v4961 = vadd.f32 %v4944, 1e-05
        %v4962 = vadd.f32 %v4945, 1e-05
        %v4963 = vadd.f32 %v4946, 1e-05
        %v4964 = vadd.f32 %v4947, 1e-05
        %v4965 = vadd.f32 %v4948, 1e-05
        %v4966 = vadd.f32 %v4949, 1e-05
        %v4967 = vadd.f32 %v4950, 1e-05
        %v4968 = vadd.f32 %v4951, 1e-05
        %v4969 = vadd.f32 %v4952, 1e-05
        %v4970 = vrsqrt.pop %v4953
        %v4971 = vrsqrt.pop %v4954
        %v4972 = vrsqrt.pop %v4955
        %v4973 = vrsqrt.pop %v4956
        %v4974 = vrsqrt.pop %v4957
        %v4975 = vrsqrt.pop %v4958
        %v4976 = vrsqrt.pop %v4959
        %v4977 = vrsqrt.pop %v4960
        %v4978 = vrsqrt.pop %v4961
        %v4979 = vrsqrt.pop %v4962
        %v4980 = vrsqrt.pop %v4963
        %v4981 = vrsqrt.pop %v4964
        %v4982 = vrsqrt.pop %v4965
        %v4983 = vrsqrt.pop %v4966
        %v4984 = vrsqrt.pop %v4967
        %v4985 = vrsqrt.pop %v4968
        %v4986 = vrsqrt.pop %v4969
        %v4987 = vmul.f32 %v4867, %v4970
        %v4988 = vmul.f32 %v4868, %v4971
        %v4989 = vmul.f32 %v4869, %v4972
        %v4990 = vmul.f32 %v4870, %v4973
        %v4991 = vmul.f32 %v4871, %v4974
        %v4992 = vmul.f32 %v4872, %v4975
        %v4993 = vmul.f32 %v4873, %v4976
        %v4994 = vmul.f32 %v4874, %v4977
        %v4995 = vmul.f32 %v4875, %v4978
        %v4996 = vmul.f32 %v4876, %v4979
        %v4997 = vmul.f32 %v4877, %v4980
        %v4998 = vmul.f32 %v4878, %v4981
        %v4999 = vmul.f32 %v4879, %v4982
        %v5000 = vmul.f32 %v4880, %v4983
        %v5001 = vmul.f32 %v4881, %v4984
        %v5002 = vmul.f32 %v4882, %v4985
        %v5003 = vmul.f32 %v4883, %v4986
        %v5004 = vlaneseq
        %v5005 = vshrl.u32 %v5004, 7
        %v5006 = vsub.s32 0, %v5005
        %v5007 = vrot.slane %v373, %v5006
        %v5008 = vmul.f32 %v4987, %v5007
        %v5009 = vmul.f32 %v4988, %v5007
        %v5010 = vmul.f32 %v4989, %v5007
        %v5011 = vmul.f32 %v4990, %v5007
        %v5012 = vmul.f32 %v4991, %v5007
        %v5013 = vmul.f32 %v4992, %v5007
        %v5014 = vmul.f32 %v4993, %v5007
        %v5015 = vmul.f32 %v4994, %v5007
        %v5016 = vmul.f32 %v4995, %v5007
        %v5017 = vmul.f32 %v4996, %v5007
        %v5018 = vmul.f32 %v4997, %v5007
        %v5019 = vmul.f32 %v4998, %v5007
        %v5020 = vmul.f32 %v4999, %v5007
        %v5021 = vmul.f32 %v5000, %v5007
        %v5022 = vmul.f32 %v5001, %v5007
        %v5023 = vmul.f32 %v5002, %v5007
        %v5024 = vmul.f32 %v5003, %v5007
        %v5025 = vlaneseq
        %v5026 = vshrl.u32 %v5025, 7
        %v5027 = vsub.s32 1, %v5026
        %v5028 = vrot.slane %v373, %v5027
        %v5029 = vadd.f32 %v5008, %v5028
        %v5030 = vadd.f32 %v5009, %v5028
        %v5031 = vadd.f32 %v5010, %v5028
        %v5032 = vadd.f32 %v5011, %v5028
        %v5033 = vadd.f32 %v5012, %v5028
        %v5034 = vadd.f32 %v5013, %v5028
        %v5035 = vadd.f32 %v5014, %v5028
        %v5036 = vadd.f32 %v5015, %v5028
        %v5037 = vadd.f32 %v5016, %v5028
        %v5038 = vadd.f32 %v5017, %v5028
        %v5039 = vadd.f32 %v5018, %v5028
        %v5040 = vadd.f32 %v5019, %v5028
        %v5041 = vadd.f32 %v5020, %v5028
        %v5042 = vadd.f32 %v5021, %v5028
        %v5043 = vadd.f32 %v5022, %v5028
        %v5044 = vadd.f32 %v5023, %v5028
        %v5045 = vadd.f32 %v5024, %v5028
        %p5046 = scmp.lt.s32.totalorder %s26, 5
        // Predicated region
        $region53: #{tpu_custom_call.1} parent=39 // pred_check
          %p5047 = pneg %p5046
        $region54: #{tpu_custom_call.1} parent=39 // pred_check_branch
          %5049 = sbr.rel (%p5047) target = $region56
        $region55: #{tpu_custom_call.1} parent=39 // pred_region
          %5050 = vst [vmem:[#allocation2] sm:$0xff] %v5029
          %5051 = vst [vmem:[#allocation2 + $0x8] sm:$0xff] %v5030
          %5052 = vst [vmem:[#allocation2 + $0x10] sm:$0xff] %v5031
          %5053 = vst [vmem:[#allocation2 + $0x18] sm:$0xff] %v5032
          %5054 = vst [vmem:[#allocation2 + $0x20] sm:$0xff] %v5033
          %5055 = vst [vmem:[#allocation2 + $0x28] sm:$0xff] %v5034
          %5056 = vst [vmem:[#allocation2 + $0x30] sm:$0xff] %v5035
          %5057 = vst [vmem:[#allocation2 + $0x38] sm:$0xff] %v5036
          %5058 = vst [vmem:[#allocation2 + $0x40] sm:$0xff] %v5037
          %5059 = vst [vmem:[#allocation2 + $0x48] sm:$0xff] %v5038
          %5060 = vst [vmem:[#allocation2 + $0x50] sm:$0xff] %v5039
          %5061 = vst [vmem:[#allocation2 + $0x58] sm:$0xff] %v5040
          %5062 = vst [vmem:[#allocation2 + $0x60] sm:$0xff] %v5041
          %5063 = vst [vmem:[#allocation2 + $0x68] sm:$0xff] %v5042
          %5064 = vst [vmem:[#allocation2 + $0x70] sm:$0xff] %v5043
          %5065 = vst [vmem:[#allocation2 + $0x78] sm:$0xff] %v5044
          %5066 = vst [vmem:[#allocation2 + $0x80] sm:$0x1] %v5045
        $region56: #{tpu_custom_call.1} parent=39 // pred_fallthru
          _
        %p5067 = scmp.eq.s32.totalorder %s26, 5
        // Predicated region
        $region57: #{tpu_custom_call.1} parent=39 // pred_check
          %p5068 = pneg %p5067
        $region58: #{tpu_custom_call.1} parent=39 // pred_check_branch
          %5070 = sbr.rel (%p5068) target = $region60
        $region59: #{tpu_custom_call.1} parent=39 // pred_region
          %v5071 = vpack.c.bf16 %v5029, %v5029
          %v5072 = vld [vmem:[%s3] sm:$0xff]
          %v5073 = vld [vmem:[%s3 + $0x8] sm:$0xff]
          %v5074 = vld [vmem:[%s3 + $0x10] sm:$0xff]
          %v5075 = vld [vmem:[%s3 + $0x18] sm:$0xff]
          %v5076 = vld [vmem:[%s3 + $0x20] sm:$0xff]
          %v5077 = vld [vmem:[%s3 + $0x28] sm:$0xff]
          %v5078 = vld [vmem:[%s3 + $0x30] sm:$0xff]
          %v5079 = vld [vmem:[%s3 + $0x38] sm:$0xff]
          %v5080 = vld [vmem:[%s3 + $0x40] sm:$0xff]
          %v5081 = vld [vmem:[%s3 + $0x48] sm:$0xff]
          %v5082 = vld [vmem:[%s3 + $0x50] sm:$0xff]
          %v5083 = vld [vmem:[%s3 + $0x58] sm:$0xff]
          %v5084 = vld [vmem:[%s3 + $0x60] sm:$0xff]
          %v5085 = vld [vmem:[%s3 + $0x68] sm:$0xff]
          %v5086 = vld [vmem:[%s3 + $0x70] sm:$0xff]
          %v5087 = vld [vmem:[%s3 + $0x78] sm:$0xff]
          %v5088 = vld [vmem:[#allocation6] sm:$0x3]
          %v5105 = vunpack.c.l.b16 %v5072
          %v5106 = vunpack.c.h.b16 %v5072
          %v5107 = vunpack.c.l.b16 %v5073
          %v5108 = vunpack.c.h.b16 %v5073
          %v5109 = vunpack.c.l.b16 %v5074
          %v5110 = vunpack.c.h.b16 %v5074
          %v5111 = vunpack.c.l.b16 %v5075
          %v5112 = vunpack.c.h.b16 %v5075
          %v5113 = vunpack.c.l.b16 %v5076
          %v5114 = vunpack.c.h.b16 %v5076
          %v5115 = vunpack.c.l.b16 %v5077
          %v5116 = vunpack.c.h.b16 %v5077
          %v5117 = vunpack.c.l.b16 %v5078
          %v5118 = vunpack.c.h.b16 %v5078
          %v5119 = vunpack.c.l.b16 %v5079
          %v5120 = vunpack.c.h.b16 %v5079
          %v5121 = vunpack.c.l.b16 %v5080
          %v5122 = vunpack.c.h.b16 %v5080
          %v5123 = vunpack.c.l.b16 %v5081
          %v5124 = vunpack.c.h.b16 %v5081
          %v5125 = vunpack.c.l.b16 %v5082
          %v5126 = vunpack.c.h.b16 %v5082
          %v5127 = vunpack.c.l.b16 %v5083
          %v5128 = vunpack.c.h.b16 %v5083
          %v5129 = vunpack.c.l.b16 %v5084
          %v5130 = vunpack.c.h.b16 %v5084
          %v5131 = vunpack.c.l.b16 %v5085
          %v5132 = vunpack.c.h.b16 %v5085
          %v5133 = vunpack.c.l.b16 %v5086
          %v5134 = vunpack.c.h.b16 %v5086
          %v5135 = vunpack.c.l.b16 %v5087
          %v5136 = vunpack.c.h.b16 %v5087
          %v5137 = vpack.c.b16 %v5107, %v5105
          %v5138 = vpack.c.b16 %v5108, %v5106
          %v5139 = vpack.c.b16 %v5111, %v5109
          %v5140 = vpack.c.b16 %v5112, %v5110
          %v5141 = vpack.c.b16 %v5115, %v5113
          %v5142 = vpack.c.b16 %v5116, %v5114
          %v5143 = vpack.c.b16 %v5119, %v5117
          %v5144 = vpack.c.b16 %v5120, %v5118
          %v5145 = vpack.c.b16 %v5123, %v5121
          %v5146 = vpack.c.b16 %v5124, %v5122
          %v5147 = vpack.c.b16 %v5127, %v5125
          %v5148 = vpack.c.b16 %v5128, %v5126
          %v5149 = vpack.c.b16 %v5131, %v5129
          %v5150 = vpack.c.b16 %v5132, %v5130
          %v5151 = vpack.c.b16 %v5135, %v5133
          %v5152 = vpack.c.b16 %v5136, %v5134
          %v5170 = vlaneseq
          %v5171 = vshrl.u32 %v5170, 7
          %v5172 = vsub.s32 0, %v5171
          %v5173 = vrot.slane %v5088, %v5172
          %v5174 = vlaneseq
          %v5175 = vshrl.u32 %v5174, 7
          %v5176 = vsub.s32 1, %v5175
          %v5177 = vrot.slane %v5088, %v5176
          %5180 = vmatprep.subr.bf16.mxu0 %v5138
          %5181 = vmatpush1.bf16.msra.mxu0 %v5137
          %5182 = vmatprep.subr.bf16.mxu0 %v5140
          %5183 = vmatpush1.bf16.msra.mxu0 %v5139
          %5184 = vmatprep.subr.bf16.mxu0 %v5142
          %5185 = vmatpush1.bf16.msra.mxu0 %v5141
          %5186 = vmatprep.subr.bf16.mxu0 %v5144
          %5187 = vmatpush1.bf16.msra.mxu0 %v5143
          %5188 = vmatprep.subr.bf16.mxu0 %v5146
          %5189 = vmatpush1.bf16.msra.mxu0 %v5145
          %5190 = vmatprep.subr.bf16.mxu0 %v5148
          %5191 = vmatpush1.bf16.msra.mxu0 %v5147
          %5192 = vmatprep.subr.bf16.mxu0 %v5150
          %5193 = vmatpush1.bf16.msra.mxu0 %v5149
          %5194 = vmatprep.subr.bf16.mxu0 %v5152
          %5195 = vmatpush1.bf16.msra.mxu0 %v5151
          %5196 = vmatprep.subr.bf16.mxu0 0
          %5197 = vmatpush1.bf16.msra.mxu0 0
          %5198 = vmatprep.subr.bf16.mxu0 0
          %5199 = vmatpush1.bf16.msra.mxu0 0
          %5200 = vmatprep.subr.bf16.mxu0 0
          %5201 = vmatpush1.bf16.msra.mxu0 0
          %5202 = vmatprep.subr.bf16.mxu0 0
          %5203 = vmatpush1.bf16.msra.mxu0 0
          %5204 = vmatprep.subr.bf16.mxu0 0
          %5205 = vmatpush1.bf16.msra.mxu0 0
          %5206 = vmatprep.subr.bf16.mxu0 0
          %5207 = vmatpush1.bf16.msra.mxu0 0
          %5208 = vmatprep.subr.bf16.mxu0 0
          %5209 = vmatpush1.bf16.msra.mxu0 0
          %5210 = vmatprep.subr.bf16.mxu0 0
          %5211 = vmatpush1.bf16.msra.mxu0 0
          %5212 = vmatprep.mubr.bf16.mxu0 0
          %5213 = vmatmul.mubr.bf16.gmra.mrb[0].mxu0 %v5071
          %v5214 = vpop.f32.mrb[0].mxu0
          %v5215 = vadd.f32 %v5173, %v5214
          %v5216 = vpop.f32.mrb[0].mxu0
          %v5217 = vadd.f32 %v5177, %v5216
          %v5218 = vpop.f32.mrb[0].mxu0
          %v5219 = vpop.f32.mrb[0].mxu0
          %5220 = vdwg.mxu0
          %v5223 = vcombine.low %v5215, %v5217
          %v5225 = vunpack.c.l.s4 1966171168
          %v5226 = vunpack.c.0.s8 %v5225
          %v5227 = vlaneseq
          %v5228 = vshrl.u32 %v5227, 7
          %v5229 = vsub.s32 %v5226, %v5228
          %v5230 = vrot.slane %v5223, %v5229
          %v5232 = vunpack.c.l.s4 1966171168
          %v5233 = vunpack.c.0.s8 %v5232
          %v5234 = vlaneseq
          %v5235 = vshrl.u32 %v5234, 7
          %v5236 = vsub.s32 %v5233, %v5235
          %v5237 = vrot.slane %v5230, %v5236
          %v5239 = vlaneseq
          %vm5240 = vcmp.ge.s32.totalorder %v5239, 0
          %vm5241 = vcmp.lt.s32.totalorder %v5239, 192
          %vm5242 = vmand %vm5240, %vm5241
          %5243 = vst.msk [vmem:[%s257] sm:$0x3] %vm5242, %v5237
        $region60: #{tpu_custom_call.1} parent=39 // pred_fallthru
          _
        %s5244 = sand.u32 %s151, 1
        %s5245 = scalar_lea.sflag [#allocation5], %s5244
        %s5246 = sand.u32 %s151, 1
        %s5247 = smul.addr %s5246, 2
        %s5248 = scalar_lea.vmem [#allocation8], %s5247
        // Predicated region
        $region61: #{tpu_custom_call.1} parent=39 // pred_check
          %p5249 = pneg %p161
        $region62: #{tpu_custom_call.1} parent=39 // pred_check_branch
          %5251 = sbr.rel (%p5249) target = $region64
        $region63: #{tpu_custom_call.1} parent=39 // pred_region
          %s5253 = ssub.s32 32, 32
          %5254 = vsyncadd %s5245, %s5253
          %s5255 = smul.addr %s25, 2
          %s5256 = smul.addr %s5255, 16
          %s5257 = scalar_lea.hbm %s5, %s5256
          %s5259 = sshll.u32 %s5248, 4
          %s5260 = int_to_ptr.vmem [resolvable:$true] %s5259
          %5262 = dma.vmem_to_hbm [thread:$0]  %s5260, 32, %s5257, %s5245
        $region64: #{tpu_custom_call.1} parent=39 // pred_fallthru
          _
      $region40: #{tpu_custom_call.1} parent=5 // pred_fallthru
        _
      %p5263 = scmp.le.s32.totalorder 2, %s16
      // Predicated region
      $region65: #{tpu_custom_call.1} parent=5 // pred_check
        %p5264 = pneg %p5263
      $region66: #{tpu_custom_call.1} parent=5 // pred_check_branch
        %5266 = sbr.rel (%p5264) target = $region68
      $region67: #{tpu_custom_call.1} parent=5 // pred_region
        %s5267 = ssub.s32 %s16, 2
        // Predicated region
        $region69: #{tpu_custom_call.1} parent=67 // pred_check
          %p5268 = pneg %p167
        $region70: #{tpu_custom_call.1} parent=67 // pred_check_branch
          %5270 = sbr.rel (%p5268) target = $region72
        $region71: #{tpu_custom_call.1} parent=67 // pred_region
          %s5271 = sand.u32 %s152, 1
          %s5272 = scalar_lea.sflag [#allocation5], %s5271
          %s5273 = sand.u32 %s152, 1
          %s5274 = smul.addr %s5273, 2
          %s5275 = scalar_lea.vmem [#allocation8], %s5274
          %5276 = dma.done %s5272, 32
        $region72: #{tpu_custom_call.1} parent=67 // pred_fallthru
          _
      $region68: #{tpu_custom_call.1} parent=5 // pred_fallthru
        _
    $region6: #{tpu_custom_call.1} parent=1 // loop_footer
      %s20 = sadd.s32 1, %s16
    $region7: #{tpu_custom_call.1} parent=1 // loop_footer_branch
      %15 = sbr.rel target = $region3
    $region8: #{tpu_custom_call.1} parent=1 // loop_exit
      _
    %5277 = vsyncpa [#allocation4], 1
    %s5278 = scalar_lea.sflag [#allocation4], 1
    %5279 = vsyncpa %s5278, 1
    %5280 = vsyncpa [#allocation7], 1
    %5281 = vsyncpa [#allocation5], 1
    %s5282 = scalar_lea.sflag [#allocation5], 1
    %5283 = vsyncpa %s5282, 1

</llo_original>
